<compile_context>
chip_gen: v5e
topology: v5e:2x2
jax: 0.10.0
libtpu: 0.0.40
codegen_flags: <defaults>
</compile_context>

<pallas_src>
import functools
import math

import jax
import jax.numpy as jnp
from jax.experimental import pallas as pl
from jax.experimental.pallas import tpu as pltpu

# ---------------- model config (small synthetic sizes) ----------------
N_CLS = 4          # number of class names
N_CTX = 3          # MaPLe context tokens
CTX_DIM = 64       # text transformer width (ln_final.weight.shape[0])
VIS_DIM = 64       # vision transformer width (stands in for 768)
EMBED_DIM = 32     # shared CLIP embedding dim
TEXT_SEQ = 16      # tokenized prompt length
N_HEADS = 4
TEXT_LAYERS = 2
VIS_LAYERS = 2
PROMPT_DEPTH = 2   # => 1 deep compound prompt
IMG_SIZE = 16
PATCH = 8
IMG_CH = 3


# ---------------- small helper kernels (one-off ops) ----------------
def _linear_kernel(x_ref, w_ref, b_ref, o_ref):
    acc = jnp.dot(x_ref[...], w_ref[...], preferred_element_type=jnp.float32)
    o_ref[...] = (acc + b_ref[...]).astype(o_ref.dtype)


def pallas_linear(x, w, b):
    """x:(M,K) @ w:(K,N) + b:(N,) -> (M,N). bf16 MXU inputs, fp32 accumulate."""
    M, K = x.shape
    K2, N = w.shape
    assert K == K2
    return pl.pallas_call(
        _linear_kernel,
        out_shape=jax.ShapeDtypeStruct((M, N), jnp.float32),
        grid=(1,),
        in_specs=[pl.BlockSpec((M, K), lambda i: (0, 0)),
                  pl.BlockSpec((K, N), lambda i: (0, 0)),
                  pl.BlockSpec((1, N), lambda i: (0, 0))],
        out_specs=pl.BlockSpec((M, N), lambda i: (0, 0)),
    )(x.astype(jnp.bfloat16), w.astype(jnp.bfloat16),
      b.reshape(1, N).astype(jnp.float32))


def _layernorm_kernel(x_ref, g_ref, b_ref, o_ref):
    x = x_ref[...].astype(jnp.float32)
    mu = jnp.mean(x, axis=-1, keepdims=True)
    var = jnp.mean((x - mu) ** 2, axis=-1, keepdims=True)
    y = (x - mu) * jax.lax.rsqrt(var + 1e-5)
    o_ref[...] = (y * g_ref[...] + b_ref[...]).astype(o_ref.dtype)


def pallas_layernorm(x, g, b):
    M, D = x.shape
    return pl.pallas_call(
        _layernorm_kernel,
        out_shape=jax.ShapeDtypeStruct((M, D), jnp.float32),
        grid=(1,),
        in_specs=[pl.BlockSpec((M, D), lambda i: (0, 0)),
                  pl.BlockSpec((1, D), lambda i: (0, 0)),
                  pl.BlockSpec((1, D), lambda i: (0, 0))],
        out_specs=pl.BlockSpec((M, D), lambda i: (0, 0)),
    )(x.astype(jnp.float32), g.reshape(1, D), b.reshape(1, D))


# ---------------- fused transformer resblock kernel ----------------
def _resblock_kernel(x_ref, ln1_g_ref, ln1_b_ref, qkv_w_ref, qkv_b_ref,
                     ao_w_ref, ao_b_ref, ln2_g_ref, ln2_b_ref,
                     fc_w_ref, fc_b_ref, cp_w_ref, cp_b_ref, o_ref,
                     *, n_heads, causal):
    _, S, D = x_ref.shape
    hd = D // n_heads
    scale = 1.0 / math.sqrt(hd)
    bf16 = jnp.bfloat16

    def layer_norm(v, g_ref, b_ref):
        mu = jnp.mean(v, axis=-1, keepdims=True)
        var = jnp.mean((v - mu) ** 2, axis=-1, keepdims=True)
        return (v - mu) * jax.lax.rsqrt(var + 1e-5) * g_ref[...] + b_ref[...]

    x = x_ref[0].astype(jnp.float32)                                  # (S, D) residual stream

    # ---- attention branch: LN1 -> fused QKV -> per-head attention -> out-proj ----
    h = layer_norm(x, ln1_g_ref, ln1_b_ref)
    qkv = jnp.dot(h.astype(bf16), qkv_w_ref[...],
                  preferred_element_type=jnp.float32) + qkv_b_ref[...]  # (S, 3D) fp32

    if causal:
        row = jax.lax.broadcasted_iota(jnp.int32, (S, S), 0)
        col = jax.lax.broadcasted_iota(jnp.int32, (S, S), 1)
        mask = jnp.where(col <= row, 0.0, -1e9).astype(jnp.float32)   # built in-kernel

    ao_w = ao_w_ref[...]                                              # (D, D) bf16
    attn = jnp.zeros((S, D), jnp.float32)
    for hidx in range(n_heads):                                       # static unroll
        q_h = qkv[:, hidx * hd:(hidx + 1) * hd]
        k_h = qkv[:, D + hidx * hd:D + (hidx + 1) * hd]
        v_h = qkv[:, 2 * D + hidx * hd:2 * D + (hidx + 1) * hd]
        # scores: contract over hd without explicit transpose
        s_h = jax.lax.dot_general(
            q_h.astype(bf16), k_h.astype(bf16),
            (((1,), (1,)), ((), ())),
            preferred_element_type=jnp.float32) * scale               # (S, S) fp32
        if causal:
            s_h = s_h + mask                                          # mask add in fp32
        s_h = s_h - jnp.max(s_h, axis=-1, keepdims=True)
        p_h = jnp.exp(s_h)
        p_h = p_h * pl.reciprocal(jnp.sum(p_h, axis=-1, keepdims=True), approx=True)
        o_h = jnp.dot(p_h.astype(bf16), v_h.astype(bf16),
                      preferred_element_type=jnp.float32)             # (S, hd)
        # fused head-merge + output projection (accumulate per head)
        attn = attn + jnp.dot(o_h.astype(bf16), ao_w[hidx * hd:(hidx + 1) * hd, :],
                              preferred_element_type=jnp.float32)
    x = x + attn + ao_b_ref[...]

    # ---- MLP branch: LN2 -> FC -> QuickGELU -> c_proj ----
    h = layer_norm(x, ln2_g_ref, ln2_b_ref)
    h = jnp.dot(h.astype(bf16), fc_w_ref[...],
                preferred_element_type=jnp.float32) + fc_b_ref[...]
    h = h * jax.nn.sigmoid(1.702 * h)                                 # QuickGELU in fp32
    h = jnp.dot(h.astype(bf16), cp_w_ref[...],
                preferred_element_type=jnp.float32) + cp_b_ref[...]
    x = x + h

    o_ref[0] = x.astype(o_ref.dtype)


def pallas_resblock(x, p, n_heads, causal):
    """Fused CLIP ResidualAttentionBlock. x: (B, S, D) fp32 residual stream."""
    B, S, D = x.shape
    bf = jnp.bfloat16
    kern = functools.partial(_resblock_kernel, n_heads=n_heads, causal=causal)
    return pl.pallas_call(
        kern,
        out_shape=jax.ShapeDtypeStruct((B, S, D), jnp.float32),
        grid=(B,),
        in_specs=[
            pl.BlockSpec((1, S, D), lambda b: (b, 0, 0)),
            pl.BlockSpec((1, D), lambda b: (0, 0)),        # ln1_g
            pl.BlockSpec((1, D), lambda b: (0, 0)),        # ln1_b
            pl.BlockSpec((D, 3 * D), lambda b: (0, 0)),    # qkv_w (bf16)
            pl.BlockSpec((1, 3 * D), lambda b: (0, 0)),    # qkv_b
            pl.BlockSpec((D, D), lambda b: (0, 0)),        # attn_out_w (bf16)
            pl.BlockSpec((1, D), lambda b: (0, 0)),        # attn_out_b
            pl.BlockSpec((1, D), lambda b: (0, 0)),        # ln2_g
            pl.BlockSpec((1, D), lambda b: (0, 0)),        # ln2_b
            pl.BlockSpec((D, 4 * D), lambda b: (0, 0)),    # fc_w (bf16)
            pl.BlockSpec((1, 4 * D), lambda b: (0, 0)),    # fc_b
            pl.BlockSpec((4 * D, D), lambda b: (0, 0)),    # cproj_w (bf16)
            pl.BlockSpec((1, D), lambda b: (0, 0)),        # cproj_b
        ],
        out_specs=pl.BlockSpec((1, S, D), lambda b: (b, 0, 0)),
        compiler_params=pltpu.CompilerParams(dimension_semantics=("parallel",)),
    )(x.astype(jnp.float32),
      p['ln1_g'].reshape(1, D), p['ln1_b'].reshape(1, D),
      p['qkv_w'].astype(bf), p['qkv_b'].reshape(1, 3 * D).astype(jnp.float32),
      p['attn_out_w'].astype(bf), p['attn_out_b'].reshape(1, D).astype(jnp.float32),
      p['ln2_g'].reshape(1, D), p['ln2_b'].reshape(1, D),
      p['fc_w'].astype(bf), p['fc_b'].reshape(1, 4 * D).astype(jnp.float32),
      p['cproj_w'].astype(bf), p['cproj_b'].reshape(1, D).astype(jnp.float32))


# ---------------- fused model epilogue kernel ----------------
# ln_final + EOT gather + text_projection, ln_post + vis_proj, L2-norm + scaled logits.
def _epilogue_kernel(eot_ref, xt_ref, lnf_g_ref, lnf_b_ref, tproj_ref,
                     xv_ref, lnp_g_ref, lnp_b_ref, vproj_ref, scale_ref,
                     o_logits_ref, o_img_ref, o_txt_ref):
    n_cls, S, D = xt_ref.shape
    bf16 = jnp.bfloat16

    def layer_norm(v, g_ref, b_ref):
        mu = jnp.mean(v, axis=-1, keepdims=True)
        var = jnp.mean((v - mu) ** 2, axis=-1, keepdims=True)
        return (v - mu) * jax.lax.rsqrt(var + 1e-5) * g_ref[...] + b_ref[...]

    # --- text: gather the EOT token per class via one-hot masked sum (SMEM indices) ---
    rows = []
    for c in range(n_cls):
        sel = (jax.lax.broadcasted_iota(jnp.int32, (S, 1), 0)
               == eot_ref[c]).astype(jnp.float32)                     # (S, 1)
        rows.append(jnp.sum(xt_ref[c].astype(jnp.float32) * sel, axis=0, keepdims=True))
    xt = jnp.concatenate(rows, axis=0)                                # (n_cls, D)
    xt = layer_norm(xt, lnf_g_ref, lnf_b_ref)
    txt = jnp.dot(xt.astype(bf16), tproj_ref[...],
                  preferred_element_type=jnp.float32)                 # (n_cls, E)

    # --- vision: ln_post on CLS token, project ---
    xv = layer_norm(xv_ref[...].astype(jnp.float32), lnp_g_ref, lnp_b_ref)
    img = jnp.dot(xv.astype(bf16), vproj_ref[...],
                  preferred_element_type=jnp.float32)                 # (B, E)

    # --- L2 normalize (with eps) and scaled cosine logits ---
    img = img * jax.lax.rsqrt(jnp.sum(img * img, axis=-1, keepdims=True) + 1e-12)
    txt = txt * jax.lax.rsqrt(jnp.sum(txt * txt, axis=-1, keepdims=True) + 1e-12)
    logits = jax.lax.dot_general(img, txt, (((1,), (1,)), ((), ())),
                                 preferred_element_type=jnp.float32)
    o_logits_ref[...] = scale_ref[0, 0] * logits
    o_img_ref[...] = img.astype(o_img_ref.dtype)
    o_txt_ref[...] = txt.astype(o_txt_ref.dtype)


def pallas_clip_head(text_x, eot_idx, lnf_g, lnf_b, text_projection,
                     vis_cls, lnp_g, lnp_b, vis_proj, logit_scale):
    n_cls, S, D = text_x.shape
    B, DV = vis_cls.shape
    E = text_projection.shape[1]
    bf = jnp.bfloat16
    scale = jnp.asarray(logit_scale, jnp.float32).reshape(1, 1)
    grid_spec = pltpu.PrefetchScalarGridSpec(
        num_scalar_prefetch=1,           # EOT indices land in SMEM
        grid=(1,),
        in_specs=[
            pl.BlockSpec((n_cls, S, D), lambda i, eot: (0, 0, 0)),
            pl.BlockSpec((1, D), lambda i, eot: (0, 0)),
            pl.BlockSpec((1, D), lambda i, eot: (0, 0)),
            pl.BlockSpec((D, E), lambda i, eot: (0, 0)),
            pl.BlockSpec((B, DV), lambda i, eot: (0, 0)),
            pl.BlockSpec((1, DV), lambda i, eot: (0, 0)),
            pl.BlockSpec((1, DV), lambda i, eot: (0, 0)),
            pl.BlockSpec((DV, E), lambda i, eot: (0, 0)),
            pl.BlockSpec((1, 1), lambda i, eot: (0, 0)),
        ],
        out_specs=(pl.BlockSpec((B, n_cls), lambda i, eot: (0, 0)),
                   pl.BlockSpec((B, E), lambda i, eot: (0, 0)),
                   pl.BlockSpec((n_cls, E), lambda i, eot: (0, 0))),
    )
    return pl.pallas_call(
        _epilogue_kernel,
        out_shape=(jax.ShapeDtypeStruct((B, n_cls), jnp.float32),
                   jax.ShapeDtypeStruct((B, E), jnp.float32),
                   jax.ShapeDtypeStruct((n_cls, E), jnp.float32)),
        grid_spec=grid_spec,
    )(eot_idx.astype(jnp.int32), text_x.astype(jnp.float32),
      lnf_g.reshape(1, D), lnf_b.reshape(1, D), text_projection.astype(bf),
      vis_cls.astype(jnp.float32), lnp_g.reshape(1, DV), lnp_b.reshape(1, DV),
      vis_proj.astype(bf), scale)


# ---------------- parameter init (deterministic, synthetic) ----------------
def init_params(key):
    keys = iter(jax.random.split(key, 64))

    def nrm(shape, std=0.02):
        return jax.random.normal(next(keys), shape, jnp.float32) * std

    def block(dim):
        return dict(
            ln1_g=jnp.ones((dim,), jnp.float32), ln1_b=jnp.zeros((dim,), jnp.float32),
            qkv_w=nrm((dim, 3 * dim)), qkv_b=nrm((3 * dim,), 0.01),
            attn_out_w=nrm((dim, dim)), attn_out_b=nrm((dim,), 0.01),
            ln2_g=jnp.ones((dim,), jnp.float32), ln2_b=jnp.zeros((dim,), jnp.float32),
            fc_w=nrm((dim, 4 * dim)), fc_b=nrm((4 * dim,), 0.01),
            cproj_w=nrm((4 * dim, dim)), cproj_b=nrm((dim,), 0.01),
        )

    n_patches = (IMG_SIZE // PATCH) ** 2
    return dict(
        # ---- MultiModalPromptLearner ----
        ctx=nrm((N_CTX, CTX_DIM)),                                   # learnable ctx
        proj_w=nrm((CTX_DIM, VIS_DIM)), proj_b=nrm((VIS_DIM,), 0.01),  # nn.Linear(ctx_dim, 768)
        compound_prompts_image=[nrm((N_CTX, VIS_DIM))
                                for _ in range(PROMPT_DEPTH - 1)],
        compound_proj=[(nrm((VIS_DIM, CTX_DIM)), nrm((CTX_DIM,), 0.01))
                       for _ in range(PROMPT_DEPTH - 1)],            # Linear(768, ctx_dim)
        token_prefix=nrm((N_CLS, 1, CTX_DIM)),                       # SOT embedding
        token_suffix=nrm((N_CLS, TEXT_SEQ - 1 - N_CTX, CTX_DIM)),    # class + EOT embeddings
        # ---- TextEncoder ----
        text_pos=nrm((TEXT_SEQ, CTX_DIM), 0.01),
        text_blocks=[block(CTX_DIM) for _ in range(TEXT_LAYERS)],
        ln_final_g=jnp.ones((CTX_DIM,), jnp.float32),
        ln_final_b=jnp.zeros((CTX_DIM,), jnp.float32),
        text_projection=nrm((CTX_DIM, EMBED_DIM)),
        # ---- Image encoder (ViT, MaPLe variant) ----
        conv1_w=nrm((VIS_DIM, IMG_CH, PATCH, PATCH)),                # conv1 (no bias)
        class_embedding=nrm((VIS_DIM,)),
        vis_pos=nrm((1 + n_patches, VIS_DIM), 0.01),
        ln_pre_g=jnp.ones((VIS_DIM,), jnp.float32),
        ln_pre_b=jnp.zeros((VIS_DIM,), jnp.float32),
        vis_blocks=[block(VIS_DIM) for _ in range(VIS_LAYERS)],
        ln_post_g=jnp.ones((VIS_DIM,), jnp.float32),
        ln_post_b=jnp.zeros((VIS_DIM,), jnp.float32),
        vis_proj=nrm((VIS_DIM, EMBED_DIM)),
        logit_scale=jnp.asarray(math.log(1.0 / 0.07), jnp.float32),
    )


# ---------------- forward pieces (glue in JAX, compute in fused Pallas kernels) ----------------
def prompt_learner_forward(p):
    ctx = p['ctx']                                                   # (n_ctx, ctx_dim)
    ctx_expanded = jnp.broadcast_to(ctx[None], (N_CLS, N_CTX, CTX_DIM))
    prompts = jnp.concatenate([p['token_prefix'], ctx_expanded, p['token_suffix']], axis=1)
    shared_ctx = pallas_linear(ctx, p['proj_w'], p['proj_b'])        # (n_ctx, vis_dim)
    deep_text = [pallas_linear(cpi, w, b)
                 for cpi, (w, b) in zip(p['compound_prompts_image'], p['compound_proj'])]
    deep_vision = p['compound_prompts_image']
    return prompts, shared_ctx, deep_text, deep_vision


def text_encoder_backbone(p, prompts, deep_text):
    x = prompts + p['text_pos'][None]                                # (n_cls, seq, ctx_dim)
    for i, blk in enumerate(p['text_blocks']):
        if 0 < i <= len(deep_text):  # MaPLe deep prompt swap of tokens [1:1+n_ctx]
            tctx = jnp.broadcast_to(deep_text[i - 1][None], (N_CLS, N_CTX, CTX_DIM))
            x = jnp.concatenate([x[:, :1], tctx, x[:, 1 + N_CTX:]], axis=1)
        x = pallas_resblock(x, blk, N_HEADS, causal=True)
    # ln_final + EOT gather + text_projection are fused into the CLIP head kernel
    return x                                                         # (n_cls, seq, ctx_dim)


def image_encoder_backbone(p, image, shared_ctx, deep_vision):
    B, C, H, W = image.shape
    gh, gw = H // PATCH, W // PATCH
    n_patches = gh * gw
    # patchify NCHW -> (B*P, C*ph*pw); conv1 (stride=patch) becomes a matmul
    patches = image.reshape(B, C, gh, PATCH, gw, PATCH).transpose(0, 2, 4, 1, 3, 5)
    patches = patches.reshape(B * n_patches, C * PATCH * PATCH)
    conv_w = p['conv1_w'].reshape(VIS_DIM, C * PATCH * PATCH).T
    x = pallas_linear(patches, conv_w, jnp.zeros((VIS_DIM,), jnp.float32))
    x = x.reshape(B, n_patches, VIS_DIM)
    cls = jnp.broadcast_to(p['class_embedding'][None, None], (B, 1, VIS_DIM))
    x = jnp.concatenate([cls, x], axis=1) + p['vis_pos'][None]
    x = pallas_layernorm(x.reshape(B * (1 + n_patches), VIS_DIM),
                         p['ln_pre_g'], p['ln_pre_b']).reshape(B, 1 + n_patches, VIS_DIM)
    # MaPLe: append projected shared ctx as extra visual prompt tokens
    vctx = jnp.broadcast_to(shared_ctx[None], (B, N_CTX, VIS_DIM))
    x = jnp.concatenate([x, vctx], axis=1)
    S = 1 + n_patches + N_CTX
    for i, blk in enumerate(p['vis_blocks']):
        if 0 < i <= len(deep_vision):  # swap last n_ctx tokens with deep vision prompts
            dctx = jnp.broadcast_to(deep_vision[i - 1][None], (B, N_CTX, VIS_DIM))
            x = jnp.concatenate([x[:, :S - N_CTX], dctx], axis=1)
        x = pallas_resblock(x, blk, N_HEADS, causal=False)           # no mask on vision path
    # ln_post + vis_proj are fused into the CLIP head kernel
    return x[:, 0, :]                                                # CLS token (B, vis_dim)


def custom_clip_forward(p, image, tokenized_prompts, return_features=False):
    logit_scale = jnp.exp(p['logit_scale'])
    prompts, shared_ctx, deep_text, deep_vision = prompt_learner_forward(p)
    text_x = text_encoder_backbone(p, prompts, deep_text)
    vis_cls = image_encoder_backbone(p, image, shared_ctx, deep_vision)
    eot = jnp.argmax(tokenized_prompts, axis=-1).astype(jnp.int32)
    logits, img_feat, txt_feat = pallas_clip_head(
        text_x, eot, p['ln_final_g'], p['ln_final_b'], p['text_projection'],
        vis_cls, p['ln_post_g'], p['ln_post_b'], p['vis_proj'], logit_scale)
    if return_features:
        return logits, img_feat, txt_feat
    return logits


# ---------------- main ----------------
if __name__ == "__main__":
    key = jax.random.PRNGKey(0)
    pkey, ikey = jax.random.split(key)
    params = init_params(pkey)

    image = jax.random.normal(ikey, (2, IMG_CH, IMG_SIZE, IMG_SIZE), jnp.float32)

    # synthetic tokenized prompts: argmax(dim=-1) must land on the EOT position
    eot_positions = jnp.array([6, 9, 12, 15], jnp.int32)
    base = jnp.tile((jnp.arange(TEXT_SEQ, dtype=jnp.int32) % 100) + 1, (N_CLS, 1))
    tokenized_prompts = base.at[jnp.arange(N_CLS), eot_positions].set(49407)

    fwd = jax.jit(custom_clip_forward)
    logits = jax.block_until_ready(fwd(params, image, tokenized_prompts))

    assert logits.shape == (2, N_CLS), logits.shape
    assert bool(jnp.all(jnp.isfinite(logits)))
    print("KERNEL_OK")
</pallas_src>

<mosaic_0001>
module attributes {stable_mosaic.version = 11 : i64} {
  func.func @_linear_kernel(%arg0: i32, %arg1: memref<3x64xbf16, #tpu.memory_space<vmem>>, %arg2: memref<64x64xbf16, #tpu.memory_space<vmem>>, %arg3: memref<1x64xf32, #tpu.memory_space<vmem>>, %arg4: memref<3x64xf32, #tpu.memory_space<vmem>>) attributes {dimension_semantics = [#tpu.dimension_semantics<arbitrary>], iteration_bounds = array<i64: 1>, scalar_prefetch = 0 : i64, scratch_operands = 0 : i64, tpu.core_type = #tpu.core_type<tc>, window_params = [{pipeline_mode = #tpu.pipeline_mode<synchronous>, transform_indices = @transform_0, window_bounds = array<i64: 3, 64>}, {pipeline_mode = #tpu.pipeline_mode<synchronous>, transform_indices = @transform_1, window_bounds = array<i64: 64, 64>}, {pipeline_mode = #tpu.pipeline_mode<synchronous>, transform_indices = @transform_2, window_bounds = array<i64: 1, 64>}, {pipeline_mode = #tpu.pipeline_mode<synchronous>, transform_indices = @transform_3, window_bounds = array<i64: 3, 64>}]} {
    %c0 = arith.constant 0 : index
    %c0_0 = arith.constant 0 : index
    %0 = vector.load %arg1[%c0, %c0_0] : memref<3x64xbf16, #tpu.memory_space<vmem>>, vector<3x64xbf16>
    %c0_1 = arith.constant 0 : index
    %c0_2 = arith.constant 0 : index
    %1 = vector.load %arg2[%c0_1, %c0_2] : memref<64x64xbf16, #tpu.memory_space<vmem>>, vector<64x64xbf16>
    %cst = arith.constant dense<0.000000e+00> : vector<3x64xf32>
    %2 = tpu.matmul %0, %1, %cst {dimension_numbers = #tpu.dot_dimension_numbers<[1], [0], [0], [1], [0, 0, 1, 1], [], []>} : vector<3x64xbf16>, vector<64x64xbf16>, vector<3x64xf32> -> vector<3x64xf32>
    %c0_3 = arith.constant 0 : index
    %c0_4 = arith.constant 0 : index
    %3 = vector.load %arg3[%c0_3, %c0_4] : memref<1x64xf32, #tpu.memory_space<vmem>>, vector<1x64xf32>
    %4 = vector.broadcast %3 : vector<1x64xf32> to vector<3x64xf32>
    %5 = arith.addf %2, %4 : vector<3x64xf32>
    %c0_5 = arith.constant 0 : index
    %c0_6 = arith.constant 0 : index
    %6 = vector.load %arg4[%c0_5, %c0_6] : memref<3x64xf32, #tpu.memory_space<vmem>>, vector<3x64xf32>
    tpu.vector_store %arg4[%c0_5, %c0_6], %5 {strides = array<i32>} : memref<3x64xf32, #tpu.memory_space<vmem>>, vector<3x64xf32>,
    return
  }
  func.func @transform_0(%arg0: i32) -> (i32, i32) {
    %c0_i32 = arith.constant 0 : i32
    %c0_i32_0 = arith.constant 0 : i32
    %c0_i32_1 = arith.constant 0 : i32
    return %c0_i32, %c0_i32_0 : i32, i32
  }
  func.func @transform_1(%arg0: i32) -> (i32, i32) {
    %c0_i32 = arith.constant 0 : i32
    %c0_i32_0 = arith.constant 0 : i32
    %c0_i32_1 = arith.constant 0 : i32
    return %c0_i32, %c0_i32_0 : i32, i32
  }
  func.func @transform_2(%arg0: i32) -> (i32, i32) {
    %c0_i32 = arith.constant 0 : i32
    %c0_i32_0 = arith.constant 0 : i32
    %c0_i32_1 = arith.constant 0 : i32
    return %c0_i32, %c0_i32_0 : i32, i32
  }
  func.func @transform_3(%arg0: i32) -> (i32, i32) {
    %c0_i32 = arith.constant 0 : i32
    %c0_i32_0 = arith.constant 0 : i32
    %c0_i32_1 = arith.constant 0 : i32
    return %c0_i32, %c0_i32_0 : i32, i32
  }
}

module attributes {stable_mosaic.version = 11 : i64} {
  func.func @_resblock_kernel(%arg0: i32, %arg1: memref<1x16x64xf32, #tpu.memory_space<vmem>>, %arg2: memref<1x64xf32, #tpu.memory_space<vmem>>, %arg3: memref<1x64xf32, #tpu.memory_space<vmem>>, %arg4: memref<64x192xbf16, #tpu.memory_space<vmem>>, %arg5: memref<1x192xf32, #tpu.memory_space<vmem>>, %arg6: memref<64x64xbf16, #tpu.memory_space<vmem>>, %arg7: memref<1x64xf32, #tpu.memory_space<vmem>>, %arg8: memref<1x64xf32, #tpu.memory_space<vmem>>, %arg9: memref<1x64xf32, #tpu.memory_space<vmem>>, %arg10: memref<64x256xbf16, #tpu.memory_space<vmem>>, %arg11: memref<1x256xf32, #tpu.memory_space<vmem>>, %arg12: memref<256x64xbf16, #tpu.memory_space<vmem>>, %arg13: memref<1x64xf32, #tpu.memory_space<vmem>>, %arg14: memref<1x16x64xf32, #tpu.memory_space<vmem>>) attributes {dimension_semantics = [#tpu.dimension_semantics<parallel>], iteration_bounds = array<i64: 4>, scalar_prefetch = 0 : i64, scratch_operands = 0 : i64, tpu.core_type = #tpu.core_type<tc>, window_params = [{transform_indices = @transform_0, window_bounds = array<i64: 1, 16, 64>}, {pipeline_mode = #tpu.pipeline_mode<synchronous>, transform_indices = @transform_1, window_bounds = array<i64: 1, 64>}, {pipeline_mode = #tpu.pipeline_mode<synchronous>, transform_indices = @transform_2, window_bounds = array<i64: 1, 64>}, {pipeline_mode = #tpu.pipeline_mode<synchronous>, transform_indices = @transform_3, window_bounds = array<i64: 64, 192>}, {pipeline_mode = #tpu.pipeline_mode<synchronous>, transform_indices = @transform_4, window_bounds = array<i64: 1, 192>}, {pipeline_mode = #tpu.pipeline_mode<synchronous>, transform_indices = @transform_5, window_bounds = array<i64: 64, 64>}, {pipeline_mode = #tpu.pipeline_mode<synchronous>, transform_indices = @transform_6, window_bounds = array<i64: 1, 64>}, {pipeline_mode = #tpu.pipeline_mode<synchronous>, transform_indices = @transform_7, window_bounds = array<i64: 1, 64>}, {pipeline_mode = #tpu.pipeline_mode<synchronous>, transform_indices = @transform_8, window_bounds = array<i64: 1, 64>}, {pipeline_mode = #tpu.pipeline_mode<synchronous>, transform_indices = @transform_9, window_bounds = array<i64: 64, 256>}, {pipeline_mode = #tpu.pipeline_mode<synchronous>, transform_indices = @transform_10, window_bounds = array<i64: 1, 256>}, {pipeline_mode = #tpu.pipeline_mode<synchronous>, transform_indices = @transform_11, window_bounds = array<i64: 256, 64>}, {pipeline_mode = #tpu.pipeline_mode<synchronous>, transform_indices = @transform_12, window_bounds = array<i64: 1, 64>}, {transform_indices = @transform_13, window_bounds = array<i64: 1, 16, 64>}]} {
    %c0 = arith.constant 0 : index
    %c0_0 = arith.constant 0 : index
    %c0_1 = arith.constant 0 : index
    %0 = vector.load %arg1[%c0, %c0_0, %c0_1] : memref<1x16x64xf32, #tpu.memory_space<vmem>>, vector<1x16x64xf32>
    %1 = vector.shape_cast %0 : vector<1x16x64xf32> to vector<16x64xf32>
    %cst = arith.constant dense<0.000000e+00> : vector<16xf32>
    %2 = vector.multi_reduction <add>, %1, %cst [1] : vector<16x64xf32> to vector<16xf32>
    %3 = vector.shape_cast %2 : vector<16xf32> to vector<16x1xf32>
    %cst_2 = arith.constant 6.400000e+01 : f32
    %4 = vector.broadcast %cst_2 : f32 to vector<16x1xf32>
    %5 = arith.divf %3, %4 : vector<16x1xf32>
    %6 = vector.broadcast %5 : vector<16x1xf32> to vector<16x64xf32>
    %7 = arith.subf %1, %6 : vector<16x64xf32>
    %8 = arith.mulf %7, %7 : vector<16x64xf32>
    %cst_3 = arith.constant dense<0.000000e+00> : vector<16xf32>
    %9 = vector.multi_reduction <add>, %8, %cst_3 [1] : vector<16x64xf32> to vector<16xf32>
    %10 = vector.shape_cast %9 : vector<16xf32> to vector<16x1xf32>
    %cst_4 = arith.constant 6.400000e+01 : f32
    %11 = vector.broadcast %cst_4 : f32 to vector<16x1xf32>
    %12 = arith.divf %10, %11 : vector<16x1xf32>
    %13 = vector.broadcast %5 : vector<16x1xf32> to vector<16x64xf32>
    %14 = arith.subf %1, %13 : vector<16x64xf32>
    %cst_5 = arith.constant 9.99999974E-6 : f32
    %15 = vector.broadcast %cst_5 : f32 to vector<16x1xf32>
    %16 = arith.addf %12, %15 : vector<16x1xf32>
    %17 = math.rsqrt %16 : vector<16x1xf32>
    %18 = vector.broadcast %17 : vector<16x1xf32> to vector<16x64xf32>
    %19 = arith.mulf %14, %18 : vector<16x64xf32>
    %c0_6 = arith.constant 0 : index
    %c0_7 = arith.constant 0 : index
    %20 = vector.load %arg2[%c0_6, %c0_7] : memref<1x64xf32, #tpu.memory_space<vmem>>, vector<1x64xf32>
    %21 = vector.broadcast %20 : vector<1x64xf32> to vector<16x64xf32>
    %22 = arith.mulf %19, %21 : vector<16x64xf32>
    %c0_8 = arith.constant 0 : index
    %c0_9 = arith.constant 0 : index
    %23 = vector.load %arg3[%c0_8, %c0_9] : memref<1x64xf32, #tpu.memory_space<vmem>>, vector<1x64xf32>
    %24 = vector.broadcast %23 : vector<1x64xf32> to vector<16x64xf32>
    %25 = arith.addf %22, %24 : vector<16x64xf32>
    %26 = arith.truncf %25 : vector<16x64xf32> to vector<16x64xbf16>
    %c0_10 = arith.constant 0 : index
    %c0_11 = arith.constant 0 : index
    %27 = vector.load %arg4[%c0_10, %c0_11] : memref<64x192xbf16, #tpu.memory_space<vmem>>, vector<64x192xbf16>
    %cst_12 = arith.constant dense<0.000000e+00> : vector<16x192xf32>
    %28 = tpu.matmul %26, %27, %cst_12 {dimension_numbers = #tpu.dot_dimension_numbers<[1], [0], [0], [1], [0, 0, 1, 1], [], []>} : vector<16x64xbf16>, vector<64x192xbf16>, vector<16x192xf32> -> vector<16x192xf32>
    %c0_13 = arith.constant 0 : index
    %c0_14 = arith.constant 0 : index
    %29 = vector.load %arg5[%c0_13, %c0_14] : memref<1x192xf32, #tpu.memory_space<vmem>>, vector<1x192xf32>
    %30 = vector.broadcast %29 : vector<1x192xf32> to vector<16x192xf32>
    %31 = arith.addf %28, %30 : vector<16x192xf32>
    %32 = tpu.iota {dimensions = array<i32: 0>} : vector<16x16xi32>
    %33 = tpu.iota {dimensions = array<i32: 1>} : vector<16x16xi32>
    %34 = arith.cmpi sle, %33, %32 : vector<16x16xi32>
    %cst_15 = arith.constant 0.000000e+00 : f32
    %cst_16 = arith.constant -1.000000e+09 : f32
    %35 = vector.broadcast %cst_15 : f32 to vector<16x16xf32>
    %36 = vector.broadcast %cst_16 : f32 to vector<16x16xf32>
    %37 = arith.select %34, %35, %36 : vector<16x16xi1>, vector<16x16xf32>
    %c0_17 = arith.constant 0 : index
    %c0_18 = arith.constant 0 : index
    %38 = vector.load %arg6[%c0_17, %c0_18] : memref<64x64xbf16, #tpu.memory_space<vmem>>, vector<64x64xbf16>
    %cst_19 = arith.constant 0.000000e+00 : f32
    %39 = vector.broadcast %cst_19 : f32 to vector<16x64xf32>
    %40 = vector.extract_strided_slice %31 {offsets = [0, 0], sizes = [16, 16], strides = [1, 1]} : vector<16x192xf32> to vector<16x16xf32>
    %41 = vector.extract_strided_slice %31 {offsets = [0, 64], sizes = [16, 16], strides = [1, 1]} : vector<16x192xf32> to vector<16x16xf32>
    %42 = vector.extract_strided_slice %31 {offsets = [0, 128], sizes = [16, 16], strides = [1, 1]} : vector<16x192xf32> to vector<16x16xf32>
    %43 = arith.truncf %40 : vector<16x16xf32> to vector<16x16xbf16>
    %44 = arith.truncf %41 : vector<16x16xf32> to vector<16x16xbf16>
    %cst_20 = arith.constant dense<0.000000e+00> : vector<16x16xf32>
    %45 = tpu.matmul %43, %44, %cst_20 {dimension_numbers = #tpu.dot_dimension_numbers<[1], [1], [0], [0], [0, 0, 1, 0], [], []>} : vector<16x16xbf16>, vector<16x16xbf16>, vector<16x16xf32> -> vector<16x16xf32>
    %cst_21 = arith.constant 2.500000e-01 : f32
    %46 = vector.broadcast %cst_21 : f32 to vector<16x16xf32>
    %47 = arith.mulf %45, %46 : vector<16x16xf32>
    %48 = arith.addf %47, %37 : vector<16x16xf32>
    %cst_22 = arith.constant dense<0xFF800000> : vector<16xf32>
    %49 = vector.multi_reduction <maximumf>, %48, %cst_22 [1] : vector<16x16xf32> to vector<16xf32>
    %50 = vector.shape_cast %49 : vector<16xf32> to vector<16x1xf32>
    %51 = vector.broadcast %50 : vector<16x1xf32> to vector<16x16xf32>
    %52 = arith.subf %48, %51 : vector<16x16xf32>
    %53 = math.exp %52 : vector<16x16xf32>
    %cst_23 = arith.constant dense<0.000000e+00> : vector<16xf32>
    %54 = vector.multi_reduction <add>, %53, %cst_23 [1] : vector<16x16xf32> to vector<16xf32>
    %55 = vector.shape_cast %54 : vector<16xf32> to vector<16x1xf32>
    %56 = tpu.reciprocal %55 {approx = true} : vector<16x1xf32> -> vector<16x1xf32>
    %57 = vector.broadcast %56 : vector<16x1xf32> to vector<16x16xf32>
    %58 = arith.mulf %53, %57 : vector<16x16xf32>
    %59 = arith.truncf %58 : vector<16x16xf32> to vector<16x16xbf16>
    %60 = arith.truncf %42 : vector<16x16xf32> to vector<16x16xbf16>
    %cst_24 = arith.constant dense<0.000000e+00> : vector<16x16xf32>
    %61 = tpu.matmul %59, %60, %cst_24 {dimension_numbers = #tpu.dot_dimension_numbers<[1], [0], [0], [1], [0, 0, 1, 1], [], []>} : vector<16x16xbf16>, vector<16x16xbf16>, vector<16x16xf32> -> vector<16x16xf32>
    %62 = arith.truncf %61 : vector<16x16xf32> to vector<16x16xbf16>
    %63 = vector.extract_strided_slice %38 {offsets = [0, 0], sizes = [16, 64], strides = [1, 1]} : vector<64x64xbf16> to vector<16x64xbf16>
    %cst_25 = arith.constant dense<0.000000e+00> : vector<16x64xf32>
    %64 = tpu.matmul %62, %63, %cst_25 {dimension_numbers = #tpu.dot_dimension_numbers<[1], [0], [0], [1], [0, 0, 1, 1], [], []>} : vector<16x16xbf16>, vector<16x64xbf16>, vector<16x64xf32> -> vector<16x64xf32>
    %65 = arith.addf %39, %64 : vector<16x64xf32>
    %66 = vector.extract_strided_slice %31 {offsets = [0, 16], sizes = [16, 16], strides = [1, 1]} : vector<16x192xf32> to vector<16x16xf32>
    %67 = vector.extract_strided_slice %31 {offsets = [0, 80], sizes = [16, 16], strides = [1, 1]} : vector<16x192xf32> to vector<16x16xf32>
    %68 = vector.extract_strided_slice %31 {offsets = [0, 144], sizes = [16, 16], strides = [1, 1]} : vector<16x192xf32> to vector<16x16xf32>
    %69 = arith.truncf %66 : vector<16x16xf32> to vector<16x16xbf16>
    %70 = arith.truncf %67 : vector<16x16xf32> to vector<16x16xbf16>
    %cst_26 = arith.constant dense<0.000000e+00> : vector<16x16xf32>
    %71 = tpu.matmul %69, %70, %cst_26 {dimension_numbers = #tpu.dot_dimension_numbers<[1], [1], [0], [0], [0, 0, 1, 0], [], []>} : vector<16x16xbf16>, vector<16x16xbf16>, vector<16x16xf32> -> vector<16x16xf32>
    %cst_27 = arith.constant 2.500000e-01 : f32
    %72 = vector.broadcast %cst_27 : f32 to vector<16x16xf32>
    %73 = arith.mulf %71, %72 : vector<16x16xf32>
    %74 = arith.addf %73, %37 : vector<16x16xf32>
    %cst_28 = arith.constant dense<0xFF800000> : vector<16xf32>
    %75 = vector.multi_reduction <maximumf>, %74, %cst_28 [1] : vector<16x16xf32> to vector<16xf32>
    %76 = vector.shape_cast %75 : vector<16xf32> to vector<16x1xf32>
    %77 = vector.broadcast %76 : vector<16x1xf32> to vector<16x16xf32>
    %78 = arith.subf %74, %77 : vector<16x16xf32>
    %79 = math.exp %78 : vector<16x16xf32>
    %cst_29 = arith.constant dense<0.000000e+00> : vector<16xf32>
    %80 = vector.multi_reduction <add>, %79, %cst_29 [1] : vector<16x16xf32> to vector<16xf32>
    %81 = vector.shape_cast %80 : vector<16xf32> to vector<16x1xf32>
    %82 = tpu.reciprocal %81 {approx = true} : vector<16x1xf32> -> vector<16x1xf32>
    %83 = vector.broadcast %82 : vector<16x1xf32> to vector<16x16xf32>
    %84 = arith.mulf %79, %83 : vector<16x16xf32>
    %85 = arith.truncf %84 : vector<16x16xf32> to vector<16x16xbf16>
    %86 = arith.truncf %68 : vector<16x16xf32> to vector<16x16xbf16>
    %cst_30 = arith.constant dense<0.000000e+00> : vector<16x16xf32>
    %87 = tpu.matmul %85, %86, %cst_30 {dimension_numbers = #tpu.dot_dimension_numbers<[1], [0], [0], [1], [0, 0, 1, 1], [], []>} : vector<16x16xbf16>, vector<16x16xbf16>, vector<16x16xf32> -> vector<16x16xf32>
    %88 = arith.truncf %87 : vector<16x16xf32> to vector<16x16xbf16>
    %89 = vector.extract_strided_slice %38 {offsets = [16, 0], sizes = [16, 64], strides = [1, 1]} : vector<64x64xbf16> to vector<16x64xbf16>
    %cst_31 = arith.constant dense<0.000000e+00> : vector<16x64xf32>
    %90 = tpu.matmul %88, %89, %cst_31 {dimension_numbers = #tpu.dot_dimension_numbers<[1], [0], [0], [1], [0, 0, 1, 1], [], []>} : vector<16x16xbf16>, vector<16x64xbf16>, vector<16x64xf32> -> vector<16x64xf32>
    %91 = arith.addf %65, %90 : vector<16x64xf32>
    %92 = vector.extract_strided_slice %31 {offsets = [0, 32], sizes = [16, 16], strides = [1, 1]} : vector<16x192xf32> to vector<16x16xf32>
    %93 = vector.extract_strided_slice %31 {offsets = [0, 96], sizes = [16, 16], strides = [1, 1]} : vector<16x192xf32> to vector<16x16xf32>
    %94 = vector.extract_strided_slice %31 {offsets = [0, 160], sizes = [16, 16], strides = [1, 1]} : vector<16x192xf32> to vector<16x16xf32>
    %95 = arith.truncf %92 : vector<16x16xf32> to vector<16x16xbf16>
    %96 = arith.truncf %93 : vector<16x16xf32> to vector<16x16xbf16>
    %cst_32 = arith.constant dense<0.000000e+00> : vector<16x16xf32>
    %97 = tpu.matmul %95, %96, %cst_32 {dimension_numbers = #tpu.dot_dimension_numbers<[1], [1], [0], [0], [0, 0, 1, 0], [], []>} : vector<16x16xbf16>, vector<16x16xbf16>, vector<16x16xf32> -> vector<16x16xf32>
    %cst_33 = arith.constant 2.500000e-01 : f32
    %98 = vector.broadcast %cst_33 : f32 to vector<16x16xf32>
    %99 = arith.mulf %97, %98 : vector<16x16xf32>
    %100 = arith.addf %99, %37 : vector<16x16xf32>
    %cst_34 = arith.constant dense<0xFF800000> : vector<16xf32>
    %101 = vector.multi_reduction <maximumf>, %100, %cst_34 [1] : vector<16x16xf32> to vector<16xf32>
    %102 = vector.shape_cast %101 : vector<16xf32> to vector<16x1xf32>
    %103 = vector.broadcast %102 : vector<16x1xf32> to vector<16x16xf32>
    %104 = arith.subf %100, %103 : vector<16x16xf32>
    %105 = math.exp %104 : vector<16x16xf32>
    %cst_35 = arith.constant dense<0.000000e+00> : vector<16xf32>
    %106 = vector.multi_reduction <add>, %105, %cst_35 [1] : vector<16x16xf32> to vector<16xf32>
    %107 = vector.shape_cast %106 : vector<16xf32> to vector<16x1xf32>
    %108 = tpu.reciprocal %107 {approx = true} : vector<16x1xf32> -> vector<16x1xf32>
    %109 = vector.broadcast %108 : vector<16x1xf32> to vector<16x16xf32>
    %110 = arith.mulf %105, %109 : vector<16x16xf32>
    %111 = arith.truncf %110 : vector<16x16xf32> to vector<16x16xbf16>
    %112 = arith.truncf %94 : vector<16x16xf32> to vector<16x16xbf16>
    %cst_36 = arith.constant dense<0.000000e+00> : vector<16x16xf32>
    %113 = tpu.matmul %111, %112, %cst_36 {dimension_numbers = #tpu.dot_dimension_numbers<[1], [0], [0], [1], [0, 0, 1, 1], [], []>} : vector<16x16xbf16>, vector<16x16xbf16>, vector<16x16xf32> -> vector<16x16xf32>
    %114 = arith.truncf %113 : vector<16x16xf32> to vector<16x16xbf16>
    %115 = vector.extract_strided_slice %38 {offsets = [32, 0], sizes = [16, 64], strides = [1, 1]} : vector<64x64xbf16> to vector<16x64xbf16>
    %cst_37 = arith.constant dense<0.000000e+00> : vector<16x64xf32>
    %116 = tpu.matmul %114, %115, %cst_37 {dimension_numbers = #tpu.dot_dimension_numbers<[1], [0], [0], [1], [0, 0, 1, 1], [], []>} : vector<16x16xbf16>, vector<16x64xbf16>, vector<16x64xf32> -> vector<16x64xf32>
    %117 = arith.addf %91, %116 : vector<16x64xf32>
    %118 = vector.extract_strided_slice %31 {offsets = [0, 48], sizes = [16, 16], strides = [1, 1]} : vector<16x192xf32> to vector<16x16xf32>
    %119 = vector.extract_strided_slice %31 {offsets = [0, 112], sizes = [16, 16], strides = [1, 1]} : vector<16x192xf32> to vector<16x16xf32>
    %120 = vector.extract_strided_slice %31 {offsets = [0, 176], sizes = [16, 16], strides = [1, 1]} : vector<16x192xf32> to vector<16x16xf32>
    %121 = arith.truncf %118 : vector<16x16xf32> to vector<16x16xbf16>
    %122 = arith.truncf %119 : vector<16x16xf32> to vector<16x16xbf16>
    %cst_38 = arith.constant dense<0.000000e+00> : vector<16x16xf32>
    %123 = tpu.matmul %121, %122, %cst_38 {dimension_numbers = #tpu.dot_dimension_numbers<[1], [1], [0], [0], [0, 0, 1, 0], [], []>} : vector<16x16xbf16>, vector<16x16xbf16>, vector<16x16xf32> -> vector<16x16xf32>
    %cst_39 = arith.constant 2.500000e-01 : f32
    %124 = vector.broadcast %cst_39 : f32 to vector<16x16xf32>
    %125 = arith.mulf %123, %124 : vector<16x16xf32>
    %126 = arith.addf %125, %37 : vector<16x16xf32>
    %cst_40 = arith.constant dense<0xFF800000> : vector<16xf32>
    %127 = vector.multi_reduction <maximumf>, %126, %cst_40 [1] : vector<16x16xf32> to vector<16xf32>
    %128 = vector.shape_cast %127 : vector<16xf32> to vector<16x1xf32>
    %129 = vector.broadcast %128 : vector<16x1xf32> to vector<16x16xf32>
    %130 = arith.subf %126, %129 : vector<16x16xf32>
    %131 = math.exp %130 : vector<16x16xf32>
    %cst_41 = arith.constant dense<0.000000e+00> : vector<16xf32>
    %132 = vector.multi_reduction <add>, %131, %cst_41 [1] : vector<16x16xf32> to vector<16xf32>
    %133 = vector.shape_cast %132 : vector<16xf32> to vector<16x1xf32>
    %134 = tpu.reciprocal %133 {approx = true} : vector<16x1xf32> -> vector<16x1xf32>
    %135 = vector.broadcast %134 : vector<16x1xf32> to vector<16x16xf32>
    %136 = arith.mulf %131, %135 : vector<16x16xf32>
    %137 = arith.truncf %136 : vector<16x16xf32> to vector<16x16xbf16>
    %138 = arith.truncf %120 : vector<16x16xf32> to vector<16x16xbf16>
    %cst_42 = arith.constant dense<0.000000e+00> : vector<16x16xf32>
    %139 = tpu.matmul %137, %138, %cst_42 {dimension_numbers = #tpu.dot_dimension_numbers<[1], [0], [0], [1], [0, 0, 1, 1], [], []>} : vector<16x16xbf16>, vector<16x16xbf16>, vector<16x16xf32> -> vector<16x16xf32>
    %140 = arith.truncf %139 : vector<16x16xf32> to vector<16x16xbf16>
    %141 = vector.extract_strided_slice %38 {offsets = [48, 0], sizes = [16, 64], strides = [1, 1]} : vector<64x64xbf16> to vector<16x64xbf16>
    %cst_43 = arith.constant dense<0.000000e+00> : vector<16x64xf32>
    %142 = tpu.matmul %140, %141, %cst_43 {dimension_numbers = #tpu.dot_dimension_numbers<[1], [0], [0], [1], [0, 0, 1, 1], [], []>} : vector<16x16xbf16>, vector<16x64xbf16>, vector<16x64xf32> -> vector<16x64xf32>
    %143 = arith.addf %117, %142 : vector<16x64xf32>
    %144 = arith.addf %1, %143 : vector<16x64xf32>
    %c0_44 = arith.constant 0 : index
    %c0_45 = arith.constant 0 : index
    %145 = vector.load %arg7[%c0_44, %c0_45] : memref<1x64xf32, #tpu.memory_space<vmem>>, vector<1x64xf32>
    %146 = vector.broadcast %145 : vector<1x64xf32> to vector<16x64xf32>
    %147 = arith.addf %144, %146 : vector<16x64xf32>
    %cst_46 = arith.constant dense<0.000000e+00> : vector<16xf32>
    %148 = vector.multi_reduction <add>, %147, %cst_46 [1] : vector<16x64xf32> to vector<16xf32>
    %149 = vector.shape_cast %148 : vector<16xf32> to vector<16x1xf32>
    %cst_47 = arith.constant 6.400000e+01 : f32
    %150 = vector.broadcast %cst_47 : f32 to vector<16x1xf32>
    %151 = arith.divf %149, %150 : vector<16x1xf32>
    %152 = vector.broadcast %151 : vector<16x1xf32> to vector<16x64xf32>
    %153 = arith.subf %147, %152 : vector<16x64xf32>
    %154 = arith.mulf %153, %153 : vector<16x64xf32>
    %cst_48 = arith.constant dense<0.000000e+00> : vector<16xf32>
    %155 = vector.multi_reduction <add>, %154, %cst_48 [1] : vector<16x64xf32> to vector<16xf32>
    %156 = vector.shape_cast %155 : vector<16xf32> to vector<16x1xf32>
    %cst_49 = arith.constant 6.400000e+01 : f32
    %157 = vector.broadcast %cst_49 : f32 to vector<16x1xf32>
    %158 = arith.divf %156, %157 : vector<16x1xf32>
    %159 = vector.broadcast %151 : vector<16x1xf32> to vector<16x64xf32>
    %160 = arith.subf %147, %159 : vector<16x64xf32>
    %cst_50 = arith.constant 9.99999974E-6 : f32
    %161 = vector.broadcast %cst_50 : f32 to vector<16x1xf32>
    %162 = arith.addf %158, %161 : vector<16x1xf32>
    %163 = math.rsqrt %162 : vector<16x1xf32>
    %164 = vector.broadcast %163 : vector<16x1xf32> to vector<16x64xf32>
    %165 = arith.mulf %160, %164 : vector<16x64xf32>
    %c0_51 = arith.constant 0 : index
    %c0_52 = arith.constant 0 : index
    %166 = vector.load %arg8[%c0_51, %c0_52] : memref<1x64xf32, #tpu.memory_space<vmem>>, vector<1x64xf32>
    %167 = vector.broadcast %166 : vector<1x64xf32> to vector<16x64xf32>
    %168 = arith.mulf %165, %167 : vector<16x64xf32>
    %c0_53 = arith.constant 0 : index
    %c0_54 = arith.constant 0 : index
    %169 = vector.load %arg9[%c0_53, %c0_54] : memref<1x64xf32, #tpu.memory_space<vmem>>, vector<1x64xf32>
    %170 = vector.broadcast %169 : vector<1x64xf32> to vector<16x64xf32>
    %171 = arith.addf %168, %170 : vector<16x64xf32>
    %172 = arith.truncf %171 : vector<16x64xf32> to vector<16x64xbf16>
    %c0_55 = arith.constant 0 : index
    %c0_56 = arith.constant 0 : index
    %173 = vector.load %arg10[%c0_55, %c0_56] : memref<64x256xbf16, #tpu.memory_space<vmem>>, vector<64x256xbf16>
    %cst_57 = arith.constant dense<0.000000e+00> : vector<16x256xf32>
    %174 = tpu.matmul %172, %173, %cst_57 {dimension_numbers = #tpu.dot_dimension_numbers<[1], [0], [0], [1], [0, 0, 1, 1], [], []>} : vector<16x64xbf16>, vector<64x256xbf16>, vector<16x256xf32> -> vector<16x256xf32>
    %c0_58 = arith.constant 0 : index
    %c0_59 = arith.constant 0 : index
    %175 = vector.load %arg11[%c0_58, %c0_59] : memref<1x256xf32, #tpu.memory_space<vmem>>, vector<1x256xf32>
    %176 = vector.broadcast %175 : vector<1x256xf32> to vector<16x256xf32>
    %177 = arith.addf %174, %176 : vector<16x256xf32>
    %cst_60 = arith.constant 1.702000e+00 : f32
    %178 = vector.broadcast %cst_60 : f32 to vector<16x256xf32>
    %179 = arith.mulf %178, %177 : vector<16x256xf32>
    %180 = arith.negf %179 : vector<16x256xf32>
    %181 = math.exp %180 : vector<16x256xf32>
    %cst_61 = arith.constant 1.000000e+00 : f32
    %182 = vector.broadcast %cst_61 : f32 to vector<16x256xf32>
    %183 = arith.addf %182, %181 : vector<16x256xf32>
    %184 = arith.divf %182, %183 : vector<16x256xf32>
    %185 = arith.mulf %177, %184 : vector<16x256xf32>
    %186 = arith.truncf %185 : vector<16x256xf32> to vector<16x256xbf16>
    %c0_62 = arith.constant 0 : index
    %c0_63 = arith.constant 0 : index
    %187 = vector.load %arg12[%c0_62, %c0_63] : memref<256x64xbf16, #tpu.memory_space<vmem>>, vector<256x64xbf16>
    %cst_64 = arith.constant dense<0.000000e+00> : vector<16x64xf32>
    %188 = tpu.matmul %186, %187, %cst_64 {dimension_numbers = #tpu.dot_dimension_numbers<[1], [0], [0], [1], [0, 0, 1, 1], [], []>} : vector<16x256xbf16>, vector<256x64xbf16>, vector<16x64xf32> -> vector<16x64xf32>
    %c0_65 = arith.constant 0 : index
    %c0_66 = arith.constant 0 : index
    %189 = vector.load %arg13[%c0_65, %c0_66] : memref<1x64xf32, #tpu.memory_space<vmem>>, vector<1x64xf32>
    %190 = vector.broadcast %189 : vector<1x64xf32> to vector<16x64xf32>
    %191 = arith.addf %188, %190 : vector<16x64xf32>
    %192 = arith.addf %147, %191 : vector<16x64xf32>
    %c0_67 = arith.constant 0 : index
    %c0_68 = arith.constant 0 : index
    %c0_69 = arith.constant 0 : index
    %193 = vector.load %arg14[%c0_67, %c0_68, %c0_69] : memref<1x16x64xf32, #tpu.memory_space<vmem>>, vector<1x16x64xf32>
    %194 = vector.shape_cast %193 : vector<1x16x64xf32> to vector<16x64xf32>
    %195 = vector.shape_cast %192 : vector<16x64xf32> to vector<1x16x64xf32>
    tpu.vector_store %arg14[%c0_67, %c0_68, %c0_69], %195 {strides = array<i32>} : memref<1x16x64xf32, #tpu.memory_space<vmem>>, vector<1x16x64xf32>,
    return
  }
  func.func @transform_0(%arg0: i32) -> (i32, i32, i32) {
    %c0_i32 = arith.constant 0 : i32
    %c0_i32_0 = arith.constant 0 : i32
    %c0_i32_1 = arith.constant 0 : i32
    return %arg0, %c0_i32, %c0_i32_0 : i32, i32, i32
  }
  func.func @transform_1(%arg0: i32) -> (i32, i32) {
    %c0_i32 = arith.constant 0 : i32
    %c0_i32_0 = arith.constant 0 : i32
    %c0_i32_1 = arith.constant 0 : i32
    return %c0_i32, %c0_i32_0 : i32, i32
  }
  func.func @transform_2(%arg0: i32) -> (i32, i32) {
    %c0_i32 = arith.constant 0 : i32
    %c0_i32_0 = arith.constant 0 : i32
    %c0_i32_1 = arith.constant 0 : i32
    return %c0_i32, %c0_i32_0 : i32, i32
  }
  func.func @transform_3(%arg0: i32) -> (i32, i32) {
    %c0_i32 = arith.constant 0 : i32
    %c0_i32_0 = arith.constant 0 : i32
    %c0_i32_1 = arith.constant 0 : i32
    return %c0_i32, %c0_i32_0 : i32, i32
  }
  func.func @transform_4(%arg0: i32) -> (i32, i32) {
    %c0_i32 = arith.constant 0 : i32
    %c0_i32_0 = arith.constant 0 : i32
    %c0_i32_1 = arith.constant 0 : i32
    return %c0_i32, %c0_i32_0 : i32, i32
  }
  func.func @transform_5(%arg0: i32) -> (i32, i32) {
    %c0_i32 = arith.constant 0 : i32
    %c0_i32_0 = arith.constant 0 : i32
    %c0_i32_1 = arith.constant 0 : i32
    return %c0_i32, %c0_i32_0 : i32, i32
  }
  func.func @transform_6(%arg0: i32) -> (i32, i32) {
    %c0_i32 = arith.constant 0 : i32
    %c0_i32_0 = arith.constant 0 : i32
    %c0_i32_1 = arith.constant 0 : i32
    return %c0_i32, %c0_i32_0 : i32, i32
  }
  func.func @transform_7(%arg0: i32) -> (i32, i32) {
    %c0_i32 = arith.constant 0 : i32
    %c0_i32_0 = arith.constant 0 : i32
    %c0_i32_1 = arith.constant 0 : i32
    return %c0_i32, %c0_i32_0 : i32, i32
  }
  func.func @transform_8(%arg0: i32) -> (i32, i32) {
    %c0_i32 = arith.constant 0 : i32
    %c0_i32_0 = arith.constant 0 : i32
    %c0_i32_1 = arith.constant 0 : i32
    return %c0_i32, %c0_i32_0 : i32, i32
  }
  func.func @transform_9(%arg0: i32) -> (i32, i32) {
    %c0_i32 = arith.constant 0 : i32
    %c0_i32_0 = arith.constant 0 : i32
    %c0_i32_1 = arith.constant 0 : i32
    return %c0_i32, %c0_i32_0 : i32, i32
  }
  func.func @transform_10(%arg0: i32) -> (i32, i32) {
    %c0_i32 = arith.constant 0 : i32
    %c0_i32_0 = arith.constant 0 : i32
    %c0_i32_1 = arith.constant 0 : i32
    return %c0_i32, %c0_i32_0 : i32, i32
  }
  func.func @transform_11(%arg0: i32) -> (i32, i32) {
    %c0_i32 = arith.constant 0 : i32
    %c0_i32_0 = arith.constant 0 : i32
    %c0_i32_1 = arith.constant 0 : i32
    return %c0_i32, %c0_i32_0 : i32, i32
  }
  func.func @transform_12(%arg0: i32) -> (i32, i32) {
    %c0_i32 = arith.constant 0 : i32
    %c0_i32_0 = arith.constant 0 : i32
    %c0_i32_1 = arith.constant 0 : i32
    return %c0_i32, %c0_i32_0 : i32, i32
  }
  func.func @transform_13(%arg0: i32) -> (i32, i32, i32) {
    %c0_i32 = arith.constant 0 : i32
    %c0_i32_0 = arith.constant 0 : i32
    %c0_i32_1 = arith.constant 0 : i32
    return %arg0, %c0_i32, %c0_i32_0 : i32, i32, i32
  }
}

module attributes {stable_mosaic.version = 11 : i64} {
  func.func @_linear_kernel(%arg0: i32, %arg1: memref<8x192xbf16, #tpu.memory_space<vmem>>, %arg2: memref<192x64xbf16, #tpu.memory_space<vmem>>, %arg3: memref<1x64xf32, #tpu.memory_space<vmem>>, %arg4: memref<8x64xf32, #tpu.memory_space<vmem>>) attributes {dimension_semantics = [#tpu.dimension_semantics<arbitrary>], iteration_bounds = array<i64: 1>, scalar_prefetch = 0 : i64, scratch_operands = 0 : i64, tpu.core_type = #tpu.core_type<tc>, window_params = [{pipeline_mode = #tpu.pipeline_mode<synchronous>, transform_indices = @transform_0, window_bounds = array<i64: 8, 192>}, {pipeline_mode = #tpu.pipeline_mode<synchronous>, transform_indices = @transform_1, window_bounds = array<i64: 192, 64>}, {pipeline_mode = #tpu.pipeline_mode<synchronous>, transform_indices = @transform_2, window_bounds = array<i64: 1, 64>}, {pipeline_mode = #tpu.pipeline_mode<synchronous>, transform_indices = @transform_3, window_bounds = array<i64: 8, 64>}]} {
    %c0 = arith.constant 0 : index
    %c0_0 = arith.constant 0 : index
    %0 = vector.load %arg1[%c0, %c0_0] : memref<8x192xbf16, #tpu.memory_space<vmem>>, vector<8x192xbf16>
    %c0_1 = arith.constant 0 : index
    %c0_2 = arith.constant 0 : index
    %1 = vector.load %arg2[%c0_1, %c0_2] : memref<192x64xbf16, #tpu.memory_space<vmem>>, vector<192x64xbf16>
    %cst = arith.constant dense<0.000000e+00> : vector<8x64xf32>
    %2 = tpu.matmul %0, %1, %cst {dimension_numbers = #tpu.dot_dimension_numbers<[1], [0], [0], [1], [0, 0, 1, 1], [], []>} : vector<8x192xbf16>, vector<192x64xbf16>, vector<8x64xf32> -> vector<8x64xf32>
    %c0_3 = arith.constant 0 : index
    %c0_4 = arith.constant 0 : index
    %3 = vector.load %arg3[%c0_3, %c0_4] : memref<1x64xf32, #tpu.memory_space<vmem>>, vector<1x64xf32>
    %4 = vector.broadcast %3 : vector<1x64xf32> to vector<8x64xf32>
    %5 = arith.addf %2, %4 : vector<8x64xf32>
    %c0_5 = arith.constant 0 : index
    %c0_6 = arith.constant 0 : index
    %6 = vector.load %arg4[%c0_5, %c0_6] : memref<8x64xf32, #tpu.memory_space<vmem>>, vector<8x64xf32>
    tpu.vector_store %arg4[%c0_5, %c0_6], %5 {strides = array<i32>} : memref<8x64xf32, #tpu.memory_space<vmem>>, vector<8x64xf32>,
    return
  }
  func.func @transform_0(%arg0: i32) -> (i32, i32) {
    %c0_i32 = arith.constant 0 : i32
    %c0_i32_0 = arith.constant 0 : i32
    %c0_i32_1 = arith.constant 0 : i32
    return %c0_i32, %c0_i32_0 : i32, i32
  }
  func.func @transform_1(%arg0: i32) -> (i32, i32) {
    %c0_i32 = arith.constant 0 : i32
    %c0_i32_0 = arith.constant 0 : i32
    %c0_i32_1 = arith.constant 0 : i32
    return %c0_i32, %c0_i32_0 : i32, i32
  }
  func.func @transform_2(%arg0: i32) -> (i32, i32) {
    %c0_i32 = arith.constant 0 : i32
    %c0_i32_0 = arith.constant 0 : i32
    %c0_i32_1 = arith.constant 0 : i32
    return %c0_i32, %c0_i32_0 : i32, i32
  }
  func.func @transform_3(%arg0: i32) -> (i32, i32) {
    %c0_i32 = arith.constant 0 : i32
    %c0_i32_0 = arith.constant 0 : i32
    %c0_i32_1 = arith.constant 0 : i32
    return %c0_i32, %c0_i32_0 : i32, i32
  }
}

module attributes {stable_mosaic.version = 11 : i64} {
  func.func @_layernorm_kernel(%arg0: i32, %arg1: memref<10x64xf32, #tpu.memory_space<vmem>>, %arg2: memref<1x64xf32, #tpu.memory_space<vmem>>, %arg3: memref<1x64xf32, #tpu.memory_space<vmem>>, %arg4: memref<10x64xf32, #tpu.memory_space<vmem>>) attributes {dimension_semantics = [#tpu.dimension_semantics<arbitrary>], iteration_bounds = array<i64: 1>, scalar_prefetch = 0 : i64, scratch_operands = 0 : i64, tpu.core_type = #tpu.core_type<tc>, window_params = [{pipeline_mode = #tpu.pipeline_mode<synchronous>, transform_indices = @transform_0, window_bounds = array<i64: 10, 64>}, {pipeline_mode = #tpu.pipeline_mode<synchronous>, transform_indices = @transform_1, window_bounds = array<i64: 1, 64>}, {pipeline_mode = #tpu.pipeline_mode<synchronous>, transform_indices = @transform_2, window_bounds = array<i64: 1, 64>}, {pipeline_mode = #tpu.pipeline_mode<synchronous>, transform_indices = @transform_3, window_bounds = array<i64: 10, 64>}]} {
    %c0 = arith.constant 0 : index
    %c0_0 = arith.constant 0 : index
    %0 = vector.load %arg1[%c0, %c0_0] : memref<10x64xf32, #tpu.memory_space<vmem>>, vector<10x64xf32>
    %cst = arith.constant dense<0.000000e+00> : vector<10xf32>
    %1 = vector.multi_reduction <add>, %0, %cst [1] : vector<10x64xf32> to vector<10xf32>
    %2 = vector.shape_cast %1 : vector<10xf32> to vector<10x1xf32>
    %cst_1 = arith.constant 6.400000e+01 : f32
    %3 = vector.broadcast %cst_1 : f32 to vector<10x1xf32>
    %4 = arith.divf %2, %3 : vector<10x1xf32>
    %5 = vector.broadcast %4 : vector<10x1xf32> to vector<10x64xf32>
    %6 = arith.subf %0, %5 : vector<10x64xf32>
    %7 = arith.mulf %6, %6 : vector<10x64xf32>
    %cst_2 = arith.constant dense<0.000000e+00> : vector<10xf32>
    %8 = vector.multi_reduction <add>, %7, %cst_2 [1] : vector<10x64xf32> to vector<10xf32>
    %9 = vector.shape_cast %8 : vector<10xf32> to vector<10x1xf32>
    %cst_3 = arith.constant 6.400000e+01 : f32
    %10 = vector.broadcast %cst_3 : f32 to vector<10x1xf32>
    %11 = arith.divf %9, %10 : vector<10x1xf32>
    %12 = vector.broadcast %4 : vector<10x1xf32> to vector<10x64xf32>
    %13 = arith.subf %0, %12 : vector<10x64xf32>
    %cst_4 = arith.constant 9.99999974E-6 : f32
    %14 = vector.broadcast %cst_4 : f32 to vector<10x1xf32>
    %15 = arith.addf %11, %14 : vector<10x1xf32>
    %16 = math.rsqrt %15 : vector<10x1xf32>
    %17 = vector.broadcast %16 : vector<10x1xf32> to vector<10x64xf32>
    %18 = arith.mulf %13, %17 : vector<10x64xf32>
    %c0_5 = arith.constant 0 : index
    %c0_6 = arith.constant 0 : index
    %19 = vector.load %arg2[%c0_5, %c0_6] : memref<1x64xf32, #tpu.memory_space<vmem>>, vector<1x64xf32>
    %20 = vector.broadcast %19 : vector<1x64xf32> to vector<10x64xf32>
    %21 = arith.mulf %18, %20 : vector<10x64xf32>
    %c0_7 = arith.constant 0 : index
    %c0_8 = arith.constant 0 : index
    %22 = vector.load %arg3[%c0_7, %c0_8] : memref<1x64xf32, #tpu.memory_space<vmem>>, vector<1x64xf32>
    %23 = vector.broadcast %22 : vector<1x64xf32> to vector<10x64xf32>
    %24 = arith.addf %21, %23 : vector<10x64xf32>
    %c0_9 = arith.constant 0 : index
    %c0_10 = arith.constant 0 : index
    %25 = vector.load %arg4[%c0_9, %c0_10] : memref<10x64xf32, #tpu.memory_space<vmem>>, vector<10x64xf32>
    tpu.vector_store %arg4[%c0_9, %c0_10], %24 {strides = array<i32>} : memref<10x64xf32, #tpu.memory_space<vmem>>, vector<10x64xf32>,
    return
  }
  func.func @transform_0(%arg0: i32) -> (i32, i32) {
    %c0_i32 = arith.constant 0 : i32
    %c0_i32_0 = arith.constant 0 : i32
    %c0_i32_1 = arith.constant 0 : i32
    return %c0_i32, %c0_i32_0 : i32, i32
  }
  func.func @transform_1(%arg0: i32) -> (i32, i32) {
    %c0_i32 = arith.constant 0 : i32
    %c0_i32_0 = arith.constant 0 : i32
    %c0_i32_1 = arith.constant 0 : i32
    return %c0_i32, %c0_i32_0 : i32, i32
  }
  func.func @transform_2(%arg0: i32) -> (i32, i32) {
    %c0_i32 = arith.constant 0 : i32
    %c0_i32_0 = arith.constant 0 : i32
    %c0_i32_1 = arith.constant 0 : i32
    return %c0_i32, %c0_i32_0 : i32, i32
  }
  func.func @transform_3(%arg0: i32) -> (i32, i32) {
    %c0_i32 = arith.constant 0 : i32
    %c0_i32_0 = arith.constant 0 : i32
    %c0_i32_1 = arith.constant 0 : i32
    return %c0_i32, %c0_i32_0 : i32, i32
  }
}

module attributes {stable_mosaic.version = 11 : i64} {
  func.func @_resblock_kernel(%arg0: i32, %arg1: memref<1x8x64xf32, #tpu.memory_space<vmem>>, %arg2: memref<1x64xf32, #tpu.memory_space<vmem>>, %arg3: memref<1x64xf32, #tpu.memory_space<vmem>>, %arg4: memref<64x192xbf16, #tpu.memory_space<vmem>>, %arg5: memref<1x192xf32, #tpu.memory_space<vmem>>, %arg6: memref<64x64xbf16, #tpu.memory_space<vmem>>, %arg7: memref<1x64xf32, #tpu.memory_space<vmem>>, %arg8: memref<1x64xf32, #tpu.memory_space<vmem>>, %arg9: memref<1x64xf32, #tpu.memory_space<vmem>>, %arg10: memref<64x256xbf16, #tpu.memory_space<vmem>>, %arg11: memref<1x256xf32, #tpu.memory_space<vmem>>, %arg12: memref<256x64xbf16, #tpu.memory_space<vmem>>, %arg13: memref<1x64xf32, #tpu.memory_space<vmem>>, %arg14: memref<1x8x64xf32, #tpu.memory_space<vmem>>) attributes {dimension_semantics = [#tpu.dimension_semantics<parallel>], iteration_bounds = array<i64: 2>, scalar_prefetch = 0 : i64, scratch_operands = 0 : i64, tpu.core_type = #tpu.core_type<tc>, window_params = [{transform_indices = @transform_0, window_bounds = array<i64: 1, 8, 64>}, {pipeline_mode = #tpu.pipeline_mode<synchronous>, transform_indices = @transform_1, window_bounds = array<i64: 1, 64>}, {pipeline_mode = #tpu.pipeline_mode<synchronous>, transform_indices = @transform_2, window_bounds = array<i64: 1, 64>}, {pipeline_mode = #tpu.pipeline_mode<synchronous>, transform_indices = @transform_3, window_bounds = array<i64: 64, 192>}, {pipeline_mode = #tpu.pipeline_mode<synchronous>, transform_indices = @transform_4, window_bounds = array<i64: 1, 192>}, {pipeline_mode = #tpu.pipeline_mode<synchronous>, transform_indices = @transform_5, window_bounds = array<i64: 64, 64>}, {pipeline_mode = #tpu.pipeline_mode<synchronous>, transform_indices = @transform_6, window_bounds = array<i64: 1, 64>}, {pipeline_mode = #tpu.pipeline_mode<synchronous>, transform_indices = @transform_7, window_bounds = array<i64: 1, 64>}, {pipeline_mode = #tpu.pipeline_mode<synchronous>, transform_indices = @transform_8, window_bounds = array<i64: 1, 64>}, {pipeline_mode = #tpu.pipeline_mode<synchronous>, transform_indices = @transform_9, window_bounds = array<i64: 64, 256>}, {pipeline_mode = #tpu.pipeline_mode<synchronous>, transform_indices = @transform_10, window_bounds = array<i64: 1, 256>}, {pipeline_mode = #tpu.pipeline_mode<synchronous>, transform_indices = @transform_11, window_bounds = array<i64: 256, 64>}, {pipeline_mode = #tpu.pipeline_mode<synchronous>, transform_indices = @transform_12, window_bounds = array<i64: 1, 64>}, {transform_indices = @transform_13, window_bounds = array<i64: 1, 8, 64>}]} {
    %c0 = arith.constant 0 : index
    %c0_0 = arith.constant 0 : index
    %c0_1 = arith.constant 0 : index
    %0 = vector.load %arg1[%c0, %c0_0, %c0_1] : memref<1x8x64xf32, #tpu.memory_space<vmem>>, vector<1x8x64xf32>
    %1 = vector.shape_cast %0 : vector<1x8x64xf32> to vector<8x64xf32>
    %cst = arith.constant dense<0.000000e+00> : vector<8xf32>
    %2 = vector.multi_reduction <add>, %1, %cst [1] : vector<8x64xf32> to vector<8xf32>
    %3 = vector.shape_cast %2 : vector<8xf32> to vector<8x1xf32>
    %cst_2 = arith.constant 6.400000e+01 : f32
    %4 = vector.broadcast %cst_2 : f32 to vector<8x1xf32>
    %5 = arith.divf %3, %4 : vector<8x1xf32>
    %6 = vector.broadcast %5 : vector<8x1xf32> to vector<8x64xf32>
    %7 = arith.subf %1, %6 : vector<8x64xf32>
    %8 = arith.mulf %7, %7 : vector<8x64xf32>
    %cst_3 = arith.constant dense<0.000000e+00> : vector<8xf32>
    %9 = vector.multi_reduction <add>, %8, %cst_3 [1] : vector<8x64xf32> to vector<8xf32>
    %10 = vector.shape_cast %9 : vector<8xf32> to vector<8x1xf32>
    %cst_4 = arith.constant 6.400000e+01 : f32
    %11 = vector.broadcast %cst_4 : f32 to vector<8x1xf32>
    %12 = arith.divf %10, %11 : vector<8x1xf32>
    %13 = vector.broadcast %5 : vector<8x1xf32> to vector<8x64xf32>
    %14 = arith.subf %1, %13 : vector<8x64xf32>
    %cst_5 = arith.constant 9.99999974E-6 : f32
    %15 = vector.broadcast %cst_5 : f32 to vector<8x1xf32>
    %16 = arith.addf %12, %15 : vector<8x1xf32>
    %17 = math.rsqrt %16 : vector<8x1xf32>
    %18 = vector.broadcast %17 : vector<8x1xf32> to vector<8x64xf32>
    %19 = arith.mulf %14, %18 : vector<8x64xf32>
    %c0_6 = arith.constant 0 : index
    %c0_7 = arith.constant 0 : index
    %20 = vector.load %arg2[%c0_6, %c0_7] : memref<1x64xf32, #tpu.memory_space<vmem>>, vector<1x64xf32>
    %21 = vector.broadcast %20 : vector<1x64xf32> to vector<8x64xf32>
    %22 = arith.mulf %19, %21 : vector<8x64xf32>
    %c0_8 = arith.constant 0 : index
    %c0_9 = arith.constant 0 : index
    %23 = vector.load %arg3[%c0_8, %c0_9] : memref<1x64xf32, #tpu.memory_space<vmem>>, vector<1x64xf32>
    %24 = vector.broadcast %23 : vector<1x64xf32> to vector<8x64xf32>
    %25 = arith.addf %22, %24 : vector<8x64xf32>
    %26 = arith.truncf %25 : vector<8x64xf32> to vector<8x64xbf16>
    %c0_10 = arith.constant 0 : index
    %c0_11 = arith.constant 0 : index
    %27 = vector.load %arg4[%c0_10, %c0_11] : memref<64x192xbf16, #tpu.memory_space<vmem>>, vector<64x192xbf16>
    %cst_12 = arith.constant dense<0.000000e+00> : vector<8x192xf32>
    %28 = tpu.matmul %26, %27, %cst_12 {dimension_numbers = #tpu.dot_dimension_numbers<[1], [0], [0], [1], [0, 0, 1, 1], [], []>} : vector<8x64xbf16>, vector<64x192xbf16>, vector<8x192xf32> -> vector<8x192xf32>
    %c0_13 = arith.constant 0 : index
    %c0_14 = arith.constant 0 : index
    %29 = vector.load %arg5[%c0_13, %c0_14] : memref<1x192xf32, #tpu.memory_space<vmem>>, vector<1x192xf32>
    %30 = vector.broadcast %29 : vector<1x192xf32> to vector<8x192xf32>
    %31 = arith.addf %28, %30 : vector<8x192xf32>
    %c0_15 = arith.constant 0 : index
    %c0_16 = arith.constant 0 : index
    %32 = vector.load %arg6[%c0_15, %c0_16] : memref<64x64xbf16, #tpu.memory_space<vmem>>, vector<64x64xbf16>
    %cst_17 = arith.constant 0.000000e+00 : f32
    %33 = vector.broadcast %cst_17 : f32 to vector<8x64xf32>
    %34 = vector.extract_strided_slice %31 {offsets = [0, 0], sizes = [8, 16], strides = [1, 1]} : vector<8x192xf32> to vector<8x16xf32>
    %35 = vector.extract_strided_slice %31 {offsets = [0, 64], sizes = [8, 16], strides = [1, 1]} : vector<8x192xf32> to vector<8x16xf32>
    %36 = vector.extract_strided_slice %31 {offsets = [0, 128], sizes = [8, 16], strides = [1, 1]} : vector<8x192xf32> to vector<8x16xf32>
    %37 = arith.truncf %34 : vector<8x16xf32> to vector<8x16xbf16>
    %38 = arith.truncf %35 : vector<8x16xf32> to vector<8x16xbf16>
    %cst_18 = arith.constant dense<0.000000e+00> : vector<8x8xf32>
    %39 = tpu.matmul %37, %38, %cst_18 {dimension_numbers = #tpu.dot_dimension_numbers<[1], [1], [0], [0], [0, 0, 1, 0], [], []>} : vector<8x16xbf16>, vector<8x16xbf16>, vector<8x8xf32> -> vector<8x8xf32>
    %cst_19 = arith.constant 2.500000e-01 : f32
    %40 = vector.broadcast %cst_19 : f32 to vector<8x8xf32>
    %41 = arith.mulf %39, %40 : vector<8x8xf32>
    %cst_20 = arith.constant dense<0xFF800000> : vector<8xf32>
    %42 = vector.multi_reduction <maximumf>, %41, %cst_20 [1] : vector<8x8xf32> to vector<8xf32>
    %43 = vector.shape_cast %42 : vector<8xf32> to vector<8x1xf32>
    %44 = vector.broadcast %43 : vector<8x1xf32> to vector<8x8xf32>
    %45 = arith.subf %41, %44 : vector<8x8xf32>
    %46 = math.exp %45 : vector<8x8xf32>
    %cst_21 = arith.constant dense<0.000000e+00> : vector<8xf32>
    %47 = vector.multi_reduction <add>, %46, %cst_21 [1] : vector<8x8xf32> to vector<8xf32>
    %48 = vector.shape_cast %47 : vector<8xf32> to vector<8x1xf32>
    %49 = tpu.reciprocal %48 {approx = true} : vector<8x1xf32> -> vector<8x1xf32>
    %50 = vector.broadcast %49 : vector<8x1xf32> to vector<8x8xf32>
    %51 = arith.mulf %46, %50 : vector<8x8xf32>
    %52 = arith.truncf %51 : vector<8x8xf32> to vector<8x8xbf16>
    %53 = arith.truncf %36 : vector<8x16xf32> to vector<8x16xbf16>
    %cst_22 = arith.constant dense<0.000000e+00> : vector<8x16xf32>
    %54 = tpu.matmul %52, %53, %cst_22 {dimension_numbers = #tpu.dot_dimension_numbers<[1], [0], [0], [1], [0, 0, 1, 1], [], []>} : vector<8x8xbf16>, vector<8x16xbf16>, vector<8x16xf32> -> vector<8x16xf32>
    %55 = arith.truncf %54 : vector<8x16xf32> to vector<8x16xbf16>
    %56 = vector.extract_strided_slice %32 {offsets = [0, 0], sizes = [16, 64], strides = [1, 1]} : vector<64x64xbf16> to vector<16x64xbf16>
    %cst_23 = arith.constant dense<0.000000e+00> : vector<8x64xf32>
    %57 = tpu.matmul %55, %56, %cst_23 {dimension_numbers = #tpu.dot_dimension_numbers<[1], [0], [0], [1], [0, 0, 1, 1], [], []>} : vector<8x16xbf16>, vector<16x64xbf16>, vector<8x64xf32> -> vector<8x64xf32>
    %58 = arith.addf %33, %57 : vector<8x64xf32>
    %59 = vector.extract_strided_slice %31 {offsets = [0, 16], sizes = [8, 16], strides = [1, 1]} : vector<8x192xf32> to vector<8x16xf32>
    %60 = vector.extract_strided_slice %31 {offsets = [0, 80], sizes = [8, 16], strides = [1, 1]} : vector<8x192xf32> to vector<8x16xf32>
    %61 = vector.extract_strided_slice %31 {offsets = [0, 144], sizes = [8, 16], strides = [1, 1]} : vector<8x192xf32> to vector<8x16xf32>
    %62 = arith.truncf %59 : vector<8x16xf32> to vector<8x16xbf16>
    %63 = arith.truncf %60 : vector<8x16xf32> to vector<8x16xbf16>
    %cst_24 = arith.constant dense<0.000000e+00> : vector<8x8xf32>
    %64 = tpu.matmul %62, %63, %cst_24 {dimension_numbers = #tpu.dot_dimension_numbers<[1], [1], [0], [0], [0, 0, 1, 0], [], []>} : vector<8x16xbf16>, vector<8x16xbf16>, vector<8x8xf32> -> vector<8x8xf32>
    %cst_25 = arith.constant 2.500000e-01 : f32
    %65 = vector.broadcast %cst_25 : f32 to vector<8x8xf32>
    %66 = arith.mulf %64, %65 : vector<8x8xf32>
    %cst_26 = arith.constant dense<0xFF800000> : vector<8xf32>
    %67 = vector.multi_reduction <maximumf>, %66, %cst_26 [1] : vector<8x8xf32> to vector<8xf32>
    %68 = vector.shape_cast %67 : vector<8xf32> to vector<8x1xf32>
    %69 = vector.broadcast %68 : vector<8x1xf32> to vector<8x8xf32>
    %70 = arith.subf %66, %69 : vector<8x8xf32>
    %71 = math.exp %70 : vector<8x8xf32>
    %cst_27 = arith.constant dense<0.000000e+00> : vector<8xf32>
    %72 = vector.multi_reduction <add>, %71, %cst_27 [1] : vector<8x8xf32> to vector<8xf32>
    %73 = vector.shape_cast %72 : vector<8xf32> to vector<8x1xf32>
    %74 = tpu.reciprocal %73 {approx = true} : vector<8x1xf32> -> vector<8x1xf32>
    %75 = vector.broadcast %74 : vector<8x1xf32> to vector<8x8xf32>
    %76 = arith.mulf %71, %75 : vector<8x8xf32>
    %77 = arith.truncf %76 : vector<8x8xf32> to vector<8x8xbf16>
    %78 = arith.truncf %61 : vector<8x16xf32> to vector<8x16xbf16>
    %cst_28 = arith.constant dense<0.000000e+00> : vector<8x16xf32>
    %79 = tpu.matmul %77, %78, %cst_28 {dimension_numbers = #tpu.dot_dimension_numbers<[1], [0], [0], [1], [0, 0, 1, 1], [], []>} : vector<8x8xbf16>, vector<8x16xbf16>, vector<8x16xf32> -> vector<8x16xf32>
    %80 = arith.truncf %79 : vector<8x16xf32> to vector<8x16xbf16>
    %81 = vector.extract_strided_slice %32 {offsets = [16, 0], sizes = [16, 64], strides = [1, 1]} : vector<64x64xbf16> to vector<16x64xbf16>
    %cst_29 = arith.constant dense<0.000000e+00> : vector<8x64xf32>
    %82 = tpu.matmul %80, %81, %cst_29 {dimension_numbers = #tpu.dot_dimension_numbers<[1], [0], [0], [1], [0, 0, 1, 1], [], []>} : vector<8x16xbf16>, vector<16x64xbf16>, vector<8x64xf32> -> vector<8x64xf32>
    %83 = arith.addf %58, %82 : vector<8x64xf32>
    %84 = vector.extract_strided_slice %31 {offsets = [0, 32], sizes = [8, 16], strides = [1, 1]} : vector<8x192xf32> to vector<8x16xf32>
    %85 = vector.extract_strided_slice %31 {offsets = [0, 96], sizes = [8, 16], strides = [1, 1]} : vector<8x192xf32> to vector<8x16xf32>
    %86 = vector.extract_strided_slice %31 {offsets = [0, 160], sizes = [8, 16], strides = [1, 1]} : vector<8x192xf32> to vector<8x16xf32>
    %87 = arith.truncf %84 : vector<8x16xf32> to vector<8x16xbf16>
    %88 = arith.truncf %85 : vector<8x16xf32> to vector<8x16xbf16>
    %cst_30 = arith.constant dense<0.000000e+00> : vector<8x8xf32>
    %89 = tpu.matmul %87, %88, %cst_30 {dimension_numbers = #tpu.dot_dimension_numbers<[1], [1], [0], [0], [0, 0, 1, 0], [], []>} : vector<8x16xbf16>, vector<8x16xbf16>, vector<8x8xf32> -> vector<8x8xf32>
    %cst_31 = arith.constant 2.500000e-01 : f32
    %90 = vector.broadcast %cst_31 : f32 to vector<8x8xf32>
    %91 = arith.mulf %89, %90 : vector<8x8xf32>
    %cst_32 = arith.constant dense<0xFF800000> : vector<8xf32>
    %92 = vector.multi_reduction <maximumf>, %91, %cst_32 [1] : vector<8x8xf32> to vector<8xf32>
    %93 = vector.shape_cast %92 : vector<8xf32> to vector<8x1xf32>
    %94 = vector.broadcast %93 : vector<8x1xf32> to vector<8x8xf32>
    %95 = arith.subf %91, %94 : vector<8x8xf32>
    %96 = math.exp %95 : vector<8x8xf32>
    %cst_33 = arith.constant dense<0.000000e+00> : vector<8xf32>
    %97 = vector.multi_reduction <add>, %96, %cst_33 [1] : vector<8x8xf32> to vector<8xf32>
    %98 = vector.shape_cast %97 : vector<8xf32> to vector<8x1xf32>
    %99 = tpu.reciprocal %98 {approx = true} : vector<8x1xf32> -> vector<8x1xf32>
    %100 = vector.broadcast %99 : vector<8x1xf32> to vector<8x8xf32>
    %101 = arith.mulf %96, %100 : vector<8x8xf32>
    %102 = arith.truncf %101 : vector<8x8xf32> to vector<8x8xbf16>
    %103 = arith.truncf %86 : vector<8x16xf32> to vector<8x16xbf16>
    %cst_34 = arith.constant dense<0.000000e+00> : vector<8x16xf32>
    %104 = tpu.matmul %102, %103, %cst_34 {dimension_numbers = #tpu.dot_dimension_numbers<[1], [0], [0], [1], [0, 0, 1, 1], [], []>} : vector<8x8xbf16>, vector<8x16xbf16>, vector<8x16xf32> -> vector<8x16xf32>
    %105 = arith.truncf %104 : vector<8x16xf32> to vector<8x16xbf16>
    %106 = vector.extract_strided_slice %32 {offsets = [32, 0], sizes = [16, 64], strides = [1, 1]} : vector<64x64xbf16> to vector<16x64xbf16>
    %cst_35 = arith.constant dense<0.000000e+00> : vector<8x64xf32>
    %107 = tpu.matmul %105, %106, %cst_35 {dimension_numbers = #tpu.dot_dimension_numbers<[1], [0], [0], [1], [0, 0, 1, 1], [], []>} : vector<8x16xbf16>, vector<16x64xbf16>, vector<8x64xf32> -> vector<8x64xf32>
    %108 = arith.addf %83, %107 : vector<8x64xf32>
    %109 = vector.extract_strided_slice %31 {offsets = [0, 48], sizes = [8, 16], strides = [1, 1]} : vector<8x192xf32> to vector<8x16xf32>
    %110 = vector.extract_strided_slice %31 {offsets = [0, 112], sizes = [8, 16], strides = [1, 1]} : vector<8x192xf32> to vector<8x16xf32>
    %111 = vector.extract_strided_slice %31 {offsets = [0, 176], sizes = [8, 16], strides = [1, 1]} : vector<8x192xf32> to vector<8x16xf32>
    %112 = arith.truncf %109 : vector<8x16xf32> to vector<8x16xbf16>
    %113 = arith.truncf %110 : vector<8x16xf32> to vector<8x16xbf16>
    %cst_36 = arith.constant dense<0.000000e+00> : vector<8x8xf32>
    %114 = tpu.matmul %112, %113, %cst_36 {dimension_numbers = #tpu.dot_dimension_numbers<[1], [1], [0], [0], [0, 0, 1, 0], [], []>} : vector<8x16xbf16>, vector<8x16xbf16>, vector<8x8xf32> -> vector<8x8xf32>
    %cst_37 = arith.constant 2.500000e-01 : f32
    %115 = vector.broadcast %cst_37 : f32 to vector<8x8xf32>
    %116 = arith.mulf %114, %115 : vector<8x8xf32>
    %cst_38 = arith.constant dense<0xFF800000> : vector<8xf32>
    %117 = vector.multi_reduction <maximumf>, %116, %cst_38 [1] : vector<8x8xf32> to vector<8xf32>
    %118 = vector.shape_cast %117 : vector<8xf32> to vector<8x1xf32>
    %119 = vector.broadcast %118 : vector<8x1xf32> to vector<8x8xf32>
    %120 = arith.subf %116, %119 : vector<8x8xf32>
    %121 = math.exp %120 : vector<8x8xf32>
    %cst_39 = arith.constant dense<0.000000e+00> : vector<8xf32>
    %122 = vector.multi_reduction <add>, %121, %cst_39 [1] : vector<8x8xf32> to vector<8xf32>
    %123 = vector.shape_cast %122 : vector<8xf32> to vector<8x1xf32>
    %124 = tpu.reciprocal %123 {approx = true} : vector<8x1xf32> -> vector<8x1xf32>
    %125 = vector.broadcast %124 : vector<8x1xf32> to vector<8x8xf32>
    %126 = arith.mulf %121, %125 : vector<8x8xf32>
    %127 = arith.truncf %126 : vector<8x8xf32> to vector<8x8xbf16>
    %128 = arith.truncf %111 : vector<8x16xf32> to vector<8x16xbf16>
    %cst_40 = arith.constant dense<0.000000e+00> : vector<8x16xf32>
    %129 = tpu.matmul %127, %128, %cst_40 {dimension_numbers = #tpu.dot_dimension_numbers<[1], [0], [0], [1], [0, 0, 1, 1], [], []>} : vector<8x8xbf16>, vector<8x16xbf16>, vector<8x16xf32> -> vector<8x16xf32>
    %130 = arith.truncf %129 : vector<8x16xf32> to vector<8x16xbf16>
    %131 = vector.extract_strided_slice %32 {offsets = [48, 0], sizes = [16, 64], strides = [1, 1]} : vector<64x64xbf16> to vector<16x64xbf16>
    %cst_41 = arith.constant dense<0.000000e+00> : vector<8x64xf32>
    %132 = tpu.matmul %130, %131, %cst_41 {dimension_numbers = #tpu.dot_dimension_numbers<[1], [0], [0], [1], [0, 0, 1, 1], [], []>} : vector<8x16xbf16>, vector<16x64xbf16>, vector<8x64xf32> -> vector<8x64xf32>
    %133 = arith.addf %108, %132 : vector<8x64xf32>
    %134 = arith.addf %1, %133 : vector<8x64xf32>
    %c0_42 = arith.constant 0 : index
    %c0_43 = arith.constant 0 : index
    %135 = vector.load %arg7[%c0_42, %c0_43] : memref<1x64xf32, #tpu.memory_space<vmem>>, vector<1x64xf32>
    %136 = vector.broadcast %135 : vector<1x64xf32> to vector<8x64xf32>
    %137 = arith.addf %134, %136 : vector<8x64xf32>
    %cst_44 = arith.constant dense<0.000000e+00> : vector<8xf32>
    %138 = vector.multi_reduction <add>, %137, %cst_44 [1] : vector<8x64xf32> to vector<8xf32>
    %139 = vector.shape_cast %138 : vector<8xf32> to vector<8x1xf32>
    %cst_45 = arith.constant 6.400000e+01 : f32
    %140 = vector.broadcast %cst_45 : f32 to vector<8x1xf32>
    %141 = arith.divf %139, %140 : vector<8x1xf32>
    %142 = vector.broadcast %141 : vector<8x1xf32> to vector<8x64xf32>
    %143 = arith.subf %137, %142 : vector<8x64xf32>
    %144 = arith.mulf %143, %143 : vector<8x64xf32>
    %cst_46 = arith.constant dense<0.000000e+00> : vector<8xf32>
    %145 = vector.multi_reduction <add>, %144, %cst_46 [1] : vector<8x64xf32> to vector<8xf32>
    %146 = vector.shape_cast %145 : vector<8xf32> to vector<8x1xf32>
    %cst_47 = arith.constant 6.400000e+01 : f32
    %147 = vector.broadcast %cst_47 : f32 to vector<8x1xf32>
    %148 = arith.divf %146, %147 : vector<8x1xf32>
    %149 = vector.broadcast %141 : vector<8x1xf32> to vector<8x64xf32>
    %150 = arith.subf %137, %149 : vector<8x64xf32>
    %cst_48 = arith.constant 9.99999974E-6 : f32
    %151 = vector.broadcast %cst_48 : f32 to vector<8x1xf32>
    %152 = arith.addf %148, %151 : vector<8x1xf32>
    %153 = math.rsqrt %152 : vector<8x1xf32>
    %154 = vector.broadcast %153 : vector<8x1xf32> to vector<8x64xf32>
    %155 = arith.mulf %150, %154 : vector<8x64xf32>
    %c0_49 = arith.constant 0 : index
    %c0_50 = arith.constant 0 : index
    %156 = vector.load %arg8[%c0_49, %c0_50] : memref<1x64xf32, #tpu.memory_space<vmem>>, vector<1x64xf32>
    %157 = vector.broadcast %156 : vector<1x64xf32> to vector<8x64xf32>
    %158 = arith.mulf %155, %157 : vector<8x64xf32>
    %c0_51 = arith.constant 0 : index
    %c0_52 = arith.constant 0 : index
    %159 = vector.load %arg9[%c0_51, %c0_52] : memref<1x64xf32, #tpu.memory_space<vmem>>, vector<1x64xf32>
    %160 = vector.broadcast %159 : vector<1x64xf32> to vector<8x64xf32>
    %161 = arith.addf %158, %160 : vector<8x64xf32>
    %162 = arith.truncf %161 : vector<8x64xf32> to vector<8x64xbf16>
    %c0_53 = arith.constant 0 : index
    %c0_54 = arith.constant 0 : index
    %163 = vector.load %arg10[%c0_53, %c0_54] : memref<64x256xbf16, #tpu.memory_space<vmem>>, vector<64x256xbf16>
    %cst_55 = arith.constant dense<0.000000e+00> : vector<8x256xf32>
    %164 = tpu.matmul %162, %163, %cst_55 {dimension_numbers = #tpu.dot_dimension_numbers<[1], [0], [0], [1], [0, 0, 1, 1], [], []>} : vector<8x64xbf16>, vector<64x256xbf16>, vector<8x256xf32> -> vector<8x256xf32>
    %c0_56 = arith.constant 0 : index
    %c0_57 = arith.constant 0 : index
    %165 = vector.load %arg11[%c0_56, %c0_57] : memref<1x256xf32, #tpu.memory_space<vmem>>, vector<1x256xf32>
    %166 = vector.broadcast %165 : vector<1x256xf32> to vector<8x256xf32>
    %167 = arith.addf %164, %166 : vector<8x256xf32>
    %cst_58 = arith.constant 1.702000e+00 : f32
    %168 = vector.broadcast %cst_58 : f32 to vector<8x256xf32>
    %169 = arith.mulf %168, %167 : vector<8x256xf32>
    %170 = arith.negf %169 : vector<8x256xf32>
    %171 = math.exp %170 : vector<8x256xf32>
    %cst_59 = arith.constant 1.000000e+00 : f32
    %172 = vector.broadcast %cst_59 : f32 to vector<8x256xf32>
    %173 = arith.addf %172, %171 : vector<8x256xf32>
    %174 = arith.divf %172, %173 : vector<8x256xf32>
    %175 = arith.mulf %167, %174 : vector<8x256xf32>
    %176 = arith.truncf %175 : vector<8x256xf32> to vector<8x256xbf16>
    %c0_60 = arith.constant 0 : index
    %c0_61 = arith.constant 0 : index
    %177 = vector.load %arg12[%c0_60, %c0_61] : memref<256x64xbf16, #tpu.memory_space<vmem>>, vector<256x64xbf16>
    %cst_62 = arith.constant dense<0.000000e+00> : vector<8x64xf32>
    %178 = tpu.matmul %176, %177, %cst_62 {dimension_numbers = #tpu.dot_dimension_numbers<[1], [0], [0], [1], [0, 0, 1, 1], [], []>} : vector<8x256xbf16>, vector<256x64xbf16>, vector<8x64xf32> -> vector<8x64xf32>
    %c0_63 = arith.constant 0 : index
    %c0_64 = arith.constant 0 : index
    %179 = vector.load %arg13[%c0_63, %c0_64] : memref<1x64xf32, #tpu.memory_space<vmem>>, vector<1x64xf32>
    %180 = vector.broadcast %179 : vector<1x64xf32> to vector<8x64xf32>
    %181 = arith.addf %178, %180 : vector<8x64xf32>
    %182 = arith.addf %137, %181 : vector<8x64xf32>
    %c0_65 = arith.constant 0 : index
    %c0_66 = arith.constant 0 : index
    %c0_67 = arith.constant 0 : index
    %183 = vector.load %arg14[%c0_65, %c0_66, %c0_67] : memref<1x8x64xf32, #tpu.memory_space<vmem>>, vector<1x8x64xf32>
    %184 = vector.shape_cast %183 : vector<1x8x64xf32> to vector<8x64xf32>
    %185 = vector.shape_cast %182 : vector<8x64xf32> to vector<1x8x64xf32>
    tpu.vector_store %arg14[%c0_65, %c0_66, %c0_67], %185 {strides = array<i32>} : memref<1x8x64xf32, #tpu.memory_space<vmem>>, vector<1x8x64xf32>,
    return
  }
  func.func @transform_0(%arg0: i32) -> (i32, i32, i32) {
    %c0_i32 = arith.constant 0 : i32
    %c0_i32_0 = arith.constant 0 : i32
    %c0_i32_1 = arith.constant 0 : i32
    return %arg0, %c0_i32, %c0_i32_0 : i32, i32, i32
  }
  func.func @transform_1(%arg0: i32) -> (i32, i32) {
    %c0_i32 = arith.constant 0 : i32
    %c0_i32_0 = arith.constant 0 : i32
    %c0_i32_1 = arith.constant 0 : i32
    return %c0_i32, %c0_i32_0 : i32, i32
  }
  func.func @transform_2(%arg0: i32) -> (i32, i32) {
    %c0_i32 = arith.constant 0 : i32
    %c0_i32_0 = arith.constant 0 : i32
    %c0_i32_1 = arith.constant 0 : i32
    return %c0_i32, %c0_i32_0 : i32, i32
  }
  func.func @transform_3(%arg0: i32) -> (i32, i32) {
    %c0_i32 = arith.constant 0 : i32
    %c0_i32_0 = arith.constant 0 : i32
    %c0_i32_1 = arith.constant 0 : i32
    return %c0_i32, %c0_i32_0 : i32, i32
  }
  func.func @transform_4(%arg0: i32) -> (i32, i32) {
    %c0_i32 = arith.constant 0 : i32
    %c0_i32_0 = arith.constant 0 : i32
    %c0_i32_1 = arith.constant 0 : i32
    return %c0_i32, %c0_i32_0 : i32, i32
  }
  func.func @transform_5(%arg0: i32) -> (i32, i32) {
    %c0_i32 = arith.constant 0 : i32
    %c0_i32_0 = arith.constant 0 : i32
    %c0_i32_1 = arith.constant 0 : i32
    return %c0_i32, %c0_i32_0 : i32, i32
  }
  func.func @transform_6(%arg0: i32) -> (i32, i32) {
    %c0_i32 = arith.constant 0 : i32
    %c0_i32_0 = arith.constant 0 : i32
    %c0_i32_1 = arith.constant 0 : i32
    return %c0_i32, %c0_i32_0 : i32, i32
  }
  func.func @transform_7(%arg0: i32) -> (i32, i32) {
    %c0_i32 = arith.constant 0 : i32
    %c0_i32_0 = arith.constant 0 : i32
    %c0_i32_1 = arith.constant 0 : i32
    return %c0_i32, %c0_i32_0 : i32, i32
  }
  func.func @transform_8(%arg0: i32) -> (i32, i32) {
    %c0_i32 = arith.constant 0 : i32
    %c0_i32_0 = arith.constant 0 : i32
    %c0_i32_1 = arith.constant 0 : i32
    return %c0_i32, %c0_i32_0 : i32, i32
  }
  func.func @transform_9(%arg0: i32) -> (i32, i32) {
    %c0_i32 = arith.constant 0 : i32
    %c0_i32_0 = arith.constant 0 : i32
    %c0_i32_1 = arith.constant 0 : i32
    return %c0_i32, %c0_i32_0 : i32, i32
  }
  func.func @transform_10(%arg0: i32) -> (i32, i32) {
    %c0_i32 = arith.constant 0 : i32
    %c0_i32_0 = arith.constant 0 : i32
    %c0_i32_1 = arith.constant 0 : i32
    return %c0_i32, %c0_i32_0 : i32, i32
  }
  func.func @transform_11(%arg0: i32) -> (i32, i32) {
    %c0_i32 = arith.constant 0 : i32
    %c0_i32_0 = arith.constant 0 : i32
    %c0_i32_1 = arith.constant 0 : i32
    return %c0_i32, %c0_i32_0 : i32, i32
  }
  func.func @transform_12(%arg0: i32) -> (i32, i32) {
    %c0_i32 = arith.constant 0 : i32
    %c0_i32_0 = arith.constant 0 : i32
    %c0_i32_1 = arith.constant 0 : i32
    return %c0_i32, %c0_i32_0 : i32, i32
  }
  func.func @transform_13(%arg0: i32) -> (i32, i32, i32) {
    %c0_i32 = arith.constant 0 : i32
    %c0_i32_0 = arith.constant 0 : i32
    %c0_i32_1 = arith.constant 0 : i32
    return %arg0, %c0_i32, %c0_i32_0 : i32, i32, i32
  }
}

module attributes {stable_mosaic.version = 11 : i64} {
  func.func @_epilogue_kernel(%arg0: i32, %arg1: memref<4xi32, #tpu.memory_space<smem>>, %arg2: memref<4x16x64xf32, #tpu.memory_space<vmem>>, %arg3: memref<1x64xf32, #tpu.memory_space<vmem>>, %arg4: memref<1x64xf32, #tpu.memory_space<vmem>>, %arg5: memref<64x32xbf16, #tpu.memory_space<vmem>>, %arg6: memref<2x64xf32, #tpu.memory_space<vmem>>, %arg7: memref<1x64xf32, #tpu.memory_space<vmem>>, %arg8: memref<1x64xf32, #tpu.memory_space<vmem>>, %arg9: memref<64x32xbf16, #tpu.memory_space<vmem>>, %arg10: memref<1x1xf32, #tpu.memory_space<vmem>>, %arg11: memref<2x4xf32, #tpu.memory_space<vmem>>, %arg12: memref<2x32xf32, #tpu.memory_space<vmem>>, %arg13: memref<4x32xf32, #tpu.memory_space<vmem>>) attributes {dimension_semantics = [#tpu.dimension_semantics<arbitrary>], iteration_bounds = array<i64: 1>, scalar_prefetch = 1 : i64, scratch_operands = 0 : i64, tpu.core_type = #tpu.core_type<tc>, window_params = [{pipeline_mode = #tpu.pipeline_mode<synchronous>, transform_indices = @transform_0, window_bounds = array<i64: 4, 16, 64>}, {pipeline_mode = #tpu.pipeline_mode<synchronous>, transform_indices = @transform_1, window_bounds = array<i64: 1, 64>}, {pipeline_mode = #tpu.pipeline_mode<synchronous>, transform_indices = @transform_2, window_bounds = array<i64: 1, 64>}, {pipeline_mode = #tpu.pipeline_mode<synchronous>, transform_indices = @transform_3, window_bounds = array<i64: 64, 32>}, {pipeline_mode = #tpu.pipeline_mode<synchronous>, transform_indices = @transform_4, window_bounds = array<i64: 2, 64>}, {pipeline_mode = #tpu.pipeline_mode<synchronous>, transform_indices = @transform_5, window_bounds = array<i64: 1, 64>}, {pipeline_mode = #tpu.pipeline_mode<synchronous>, transform_indices = @transform_6, window_bounds = array<i64: 1, 64>}, {pipeline_mode = #tpu.pipeline_mode<synchronous>, transform_indices = @transform_7, window_bounds = array<i64: 64, 32>}, {pipeline_mode = #tpu.pipeline_mode<synchronous>, transform_indices = @transform_8, window_bounds = array<i64: 1, 1>}, {pipeline_mode = #tpu.pipeline_mode<synchronous>, transform_indices = @transform_9, window_bounds = array<i64: 2, 4>}, {pipeline_mode = #tpu.pipeline_mode<synchronous>, transform_indices = @transform_10, window_bounds = array<i64: 2, 32>}, {pipeline_mode = #tpu.pipeline_mode<synchronous>, transform_indices = @transform_11, window_bounds = array<i64: 4, 32>}]} {
    %0 = tpu.iota {dimensions = array<i32: 0>} : vector<16x1xi32>
    %c0 = arith.constant 0 : index
    %1 = memref.load %arg1[%c0] : memref<4xi32, #tpu.memory_space<smem>>
    %2 = vector.broadcast %1 : i32 to vector<16x1xi32>
    %3 = arith.cmpi eq, %0, %2 : vector<16x1xi32>
    %4 = arith.extui %3 : vector<16x1xi1> to vector<16x1xi32>
    %5 = arith.sitofp %4 : vector<16x1xi32> to vector<16x1xf32>
    %c0_0 = arith.constant 0 : index
    %c0_1 = arith.constant 0 : index
    %c0_2 = arith.constant 0 : index
    %6 = vector.load %arg2[%c0_0, %c0_1, %c0_2] : memref<4x16x64xf32, #tpu.memory_space<vmem>>, vector<1x16x64xf32>
    %7 = vector.shape_cast %6 : vector<1x16x64xf32> to vector<16x64xf32>
    %8 = vector.broadcast %5 : vector<16x1xf32> to vector<16x64xf32>
    %9 = arith.mulf %7, %8 : vector<16x64xf32>
    %cst = arith.constant dense<0.000000e+00> : vector<64xf32>
    %10 = vector.multi_reduction <add>, %9, %cst [0] : vector<16x64xf32> to vector<64xf32>
    %11 = vector.shape_cast %10 : vector<64xf32> to vector<1x64xf32>
    %12 = tpu.iota {dimensions = array<i32: 0>} : vector<16x1xi32>
    %c1 = arith.constant 1 : index
    %13 = memref.load %arg1[%c1] : memref<4xi32, #tpu.memory_space<smem>>
    %14 = vector.broadcast %13 : i32 to vector<16x1xi32>
    %15 = arith.cmpi eq, %12, %14 : vector<16x1xi32>
    %16 = arith.extui %15 : vector<16x1xi1> to vector<16x1xi32>
    %17 = arith.sitofp %16 : vector<16x1xi32> to vector<16x1xf32>
    %c1_3 = arith.constant 1 : index
    %c0_4 = arith.constant 0 : index
    %c0_5 = arith.constant 0 : index
    %18 = vector.load %arg2[%c1_3, %c0_4, %c0_5] : memref<4x16x64xf32, #tpu.memory_space<vmem>>, vector<1x16x64xf32>
    %19 = vector.shape_cast %18 : vector<1x16x64xf32> to vector<16x64xf32>
    %20 = vector.broadcast %17 : vector<16x1xf32> to vector<16x64xf32>
    %21 = arith.mulf %19, %20 : vector<16x64xf32>
    %cst_6 = arith.constant dense<0.000000e+00> : vector<64xf32>
    %22 = vector.multi_reduction <add>, %21, %cst_6 [0] : vector<16x64xf32> to vector<64xf32>
    %23 = vector.shape_cast %22 : vector<64xf32> to vector<1x64xf32>
    %24 = tpu.iota {dimensions = array<i32: 0>} : vector<16x1xi32>
    %c2 = arith.constant 2 : index
    %25 = memref.load %arg1[%c2] : memref<4xi32, #tpu.memory_space<smem>>
    %26 = vector.broadcast %25 : i32 to vector<16x1xi32>
    %27 = arith.cmpi eq, %24, %26 : vector<16x1xi32>
    %28 = arith.extui %27 : vector<16x1xi1> to vector<16x1xi32>
    %29 = arith.sitofp %28 : vector<16x1xi32> to vector<16x1xf32>
    %c2_7 = arith.constant 2 : index
    %c0_8 = arith.constant 0 : index
    %c0_9 = arith.constant 0 : index
    %30 = vector.load %arg2[%c2_7, %c0_8, %c0_9] : memref<4x16x64xf32, #tpu.memory_space<vmem>>, vector<1x16x64xf32>
    %31 = vector.shape_cast %30 : vector<1x16x64xf32> to vector<16x64xf32>
    %32 = vector.broadcast %29 : vector<16x1xf32> to vector<16x64xf32>
    %33 = arith.mulf %31, %32 : vector<16x64xf32>
    %cst_10 = arith.constant dense<0.000000e+00> : vector<64xf32>
    %34 = vector.multi_reduction <add>, %33, %cst_10 [0] : vector<16x64xf32> to vector<64xf32>
    %35 = vector.shape_cast %34 : vector<64xf32> to vector<1x64xf32>
    %36 = tpu.iota {dimensions = array<i32: 0>} : vector<16x1xi32>
    %c3 = arith.constant 3 : index
    %37 = memref.load %arg1[%c3] : memref<4xi32, #tpu.memory_space<smem>>
    %38 = vector.broadcast %37 : i32 to vector<16x1xi32>
    %39 = arith.cmpi eq, %36, %38 : vector<16x1xi32>
    %40 = arith.extui %39 : vector<16x1xi1> to vector<16x1xi32>
    %41 = arith.sitofp %40 : vector<16x1xi32> to vector<16x1xf32>
    %c3_11 = arith.constant 3 : index
    %c0_12 = arith.constant 0 : index
    %c0_13 = arith.constant 0 : index
    %42 = vector.load %arg2[%c3_11, %c0_12, %c0_13] : memref<4x16x64xf32, #tpu.memory_space<vmem>>, vector<1x16x64xf32>
    %43 = vector.shape_cast %42 : vector<1x16x64xf32> to vector<16x64xf32>
    %44 = vector.broadcast %41 : vector<16x1xf32> to vector<16x64xf32>
    %45 = arith.mulf %43, %44 : vector<16x64xf32>
    %cst_14 = arith.constant dense<0.000000e+00> : vector<64xf32>
    %46 = vector.multi_reduction <add>, %45, %cst_14 [0] : vector<16x64xf32> to vector<64xf32>
    %47 = vector.shape_cast %46 : vector<64xf32> to vector<1x64xf32>
    %48 = tpu.concatenate %11, %23, %35, %47 in 0 : vector<1x64xf32>, vector<1x64xf32>, vector<1x64xf32>, vector<1x64xf32> -> vector<4x64xf32>
    %cst_15 = arith.constant dense<0.000000e+00> : vector<4xf32>
    %49 = vector.multi_reduction <add>, %48, %cst_15 [1] : vector<4x64xf32> to vector<4xf32>
    %50 = vector.shape_cast %49 : vector<4xf32> to vector<4x1xf32>
    %cst_16 = arith.constant 6.400000e+01 : f32
    %51 = vector.broadcast %cst_16 : f32 to vector<4x1xf32>
    %52 = arith.divf %50, %51 : vector<4x1xf32>
    %53 = vector.broadcast %52 : vector<4x1xf32> to vector<4x64xf32>
    %54 = arith.subf %48, %53 : vector<4x64xf32>
    %55 = arith.mulf %54, %54 : vector<4x64xf32>
    %cst_17 = arith.constant dense<0.000000e+00> : vector<4xf32>
    %56 = vector.multi_reduction <add>, %55, %cst_17 [1] : vector<4x64xf32> to vector<4xf32>
    %57 = vector.shape_cast %56 : vector<4xf32> to vector<4x1xf32>
    %cst_18 = arith.constant 6.400000e+01 : f32
    %58 = vector.broadcast %cst_18 : f32 to vector<4x1xf32>
    %59 = arith.divf %57, %58 : vector<4x1xf32>
    %60 = vector.broadcast %52 : vector<4x1xf32> to vector<4x64xf32>
    %61 = arith.subf %48, %60 : vector<4x64xf32>
    %cst_19 = arith.constant 9.99999974E-6 : f32
    %62 = vector.broadcast %cst_19 : f32 to vector<4x1xf32>
    %63 = arith.addf %59, %62 : vector<4x1xf32>
    %64 = math.rsqrt %63 : vector<4x1xf32>
    %65 = vector.broadcast %64 : vector<4x1xf32> to vector<4x64xf32>
    %66 = arith.mulf %61, %65 : vector<4x64xf32>
    %c0_20 = arith.constant 0 : index
    %c0_21 = arith.constant 0 : index
    %67 = vector.load %arg3[%c0_20, %c0_21] : memref<1x64xf32, #tpu.memory_space<vmem>>, vector<1x64xf32>
    %68 = vector.broadcast %67 : vector<1x64xf32> to vector<4x64xf32>
    %69 = arith.mulf %66, %68 : vector<4x64xf32>
    %c0_22 = arith.constant 0 : index
    %c0_23 = arith.constant 0 : index
    %70 = vector.load %arg4[%c0_22, %c0_23] : memref<1x64xf32, #tpu.memory_space<vmem>>, vector<1x64xf32>
    %71 = vector.broadcast %70 : vector<1x64xf32> to vector<4x64xf32>
    %72 = arith.addf %69, %71 : vector<4x64xf32>
    %73 = arith.truncf %72 : vector<4x64xf32> to vector<4x64xbf16>
    %c0_24 = arith.constant 0 : index
    %c0_25 = arith.constant 0 : index
    %74 = vector.load %arg5[%c0_24, %c0_25] : memref<64x32xbf16, #tpu.memory_space<vmem>>, vector<64x32xbf16>
    %cst_26 = arith.constant dense<0.000000e+00> : vector<4x32xf32>
    %75 = tpu.matmul %73, %74, %cst_26 {dimension_numbers = #tpu.dot_dimension_numbers<[1], [0], [0], [1], [0, 0, 1, 1], [], []>} : vector<4x64xbf16>, vector<64x32xbf16>, vector<4x32xf32> -> vector<4x32xf32>
    %c0_27 = arith.constant 0 : index
    %c0_28 = arith.constant 0 : index
    %76 = vector.load %arg6[%c0_27, %c0_28] : memref<2x64xf32, #tpu.memory_space<vmem>>, vector<2x64xf32>
    %cst_29 = arith.constant dense<0.000000e+00> : vector<2xf32>
    %77 = vector.multi_reduction <add>, %76, %cst_29 [1] : vector<2x64xf32> to vector<2xf32>
    %78 = vector.shape_cast %77 : vector<2xf32> to vector<2x1xf32>
    %cst_30 = arith.constant 6.400000e+01 : f32
    %79 = vector.broadcast %cst_30 : f32 to vector<2x1xf32>
    %80 = arith.divf %78, %79 : vector<2x1xf32>
    %81 = vector.broadcast %80 : vector<2x1xf32> to vector<2x64xf32>
    %82 = arith.subf %76, %81 : vector<2x64xf32>
    %83 = arith.mulf %82, %82 : vector<2x64xf32>
    %cst_31 = arith.constant dense<0.000000e+00> : vector<2xf32>
    %84 = vector.multi_reduction <add>, %83, %cst_31 [1] : vector<2x64xf32> to vector<2xf32>
    %85 = vector.shape_cast %84 : vector<2xf32> to vector<2x1xf32>
    %cst_32 = arith.constant 6.400000e+01 : f32
    %86 = vector.broadcast %cst_32 : f32 to vector<2x1xf32>
    %87 = arith.divf %85, %86 : vector<2x1xf32>
    %88 = vector.broadcast %80 : vector<2x1xf32> to vector<2x64xf32>
    %89 = arith.subf %76, %88 : vector<2x64xf32>
    %cst_33 = arith.constant 9.99999974E-6 : f32
    %90 = vector.broadcast %cst_33 : f32 to vector<2x1xf32>
    %91 = arith.addf %87, %90 : vector<2x1xf32>
    %92 = math.rsqrt %91 : vector<2x1xf32>
    %93 = vector.broadcast %92 : vector<2x1xf32> to vector<2x64xf32>
    %94 = arith.mulf %89, %93 : vector<2x64xf32>
    %c0_34 = arith.constant 0 : index
    %c0_35 = arith.constant 0 : index
    %95 = vector.load %arg7[%c0_34, %c0_35] : memref<1x64xf32, #tpu.memory_space<vmem>>, vector<1x64xf32>
    %96 = vector.broadcast %95 : vector<1x64xf32> to vector<2x64xf32>
    %97 = arith.mulf %94, %96 : vector<2x64xf32>
    %c0_36 = arith.constant 0 : index
    %c0_37 = arith.constant 0 : index
    %98 = vector.load %arg8[%c0_36, %c0_37] : memref<1x64xf32, #tpu.memory_space<vmem>>, vector<1x64xf32>
    %99 = vector.broadcast %98 : vector<1x64xf32> to vector<2x64xf32>
    %100 = arith.addf %97, %99 : vector<2x64xf32>
    %101 = arith.truncf %100 : vector<2x64xf32> to vector<2x64xbf16>
    %c0_38 = arith.constant 0 : index
    %c0_39 = arith.constant 0 : index
    %102 = vector.load %arg9[%c0_38, %c0_39] : memref<64x32xbf16, #tpu.memory_space<vmem>>, vector<64x32xbf16>
    %cst_40 = arith.constant dense<0.000000e+00> : vector<2x32xf32>
    %103 = tpu.matmul %101, %102, %cst_40 {dimension_numbers = #tpu.dot_dimension_numbers<[1], [0], [0], [1], [0, 0, 1, 1], [], []>} : vector<2x64xbf16>, vector<64x32xbf16>, vector<2x32xf32> -> vector<2x32xf32>
    %104 = arith.mulf %103, %103 : vector<2x32xf32>
    %cst_41 = arith.constant dense<0.000000e+00> : vector<2xf32>
    %105 = vector.multi_reduction <add>, %104, %cst_41 [1] : vector<2x32xf32> to vector<2xf32>
    %106 = vector.shape_cast %105 : vector<2xf32> to vector<2x1xf32>
    %cst_42 = arith.constant 9.99999996E-13 : f32
    %107 = vector.broadcast %cst_42 : f32 to vector<2x1xf32>
    %108 = arith.addf %106, %107 : vector<2x1xf32>
    %109 = math.rsqrt %108 : vector<2x1xf32>
    %110 = vector.broadcast %109 : vector<2x1xf32> to vector<2x32xf32>
    %111 = arith.mulf %103, %110 : vector<2x32xf32>
    %112 = arith.mulf %75, %75 : vector<4x32xf32>
    %cst_43 = arith.constant dense<0.000000e+00> : vector<4xf32>
    %113 = vector.multi_reduction <add>, %112, %cst_43 [1] : vector<4x32xf32> to vector<4xf32>
    %114 = vector.shape_cast %113 : vector<4xf32> to vector<4x1xf32>
    %cst_44 = arith.constant 9.99999996E-13 : f32
    %115 = vector.broadcast %cst_44 : f32 to vector<4x1xf32>
    %116 = arith.addf %114, %115 : vector<4x1xf32>
    %117 = math.rsqrt %116 : vector<4x1xf32>
    %118 = vector.broadcast %117 : vector<4x1xf32> to vector<4x32xf32>
    %119 = arith.mulf %75, %118 : vector<4x32xf32>
    %cst_45 = arith.constant dense<0.000000e+00> : vector<2x4xf32>
    %120 = tpu.matmul %111, %119, %cst_45 {dimension_numbers = #tpu.dot_dimension_numbers<[1], [1], [0], [0], [0, 0, 1, 0], [], []>} : vector<2x32xf32>, vector<4x32xf32>, vector<2x4xf32> -> vector<2x4xf32>
    %c0_46 = arith.constant 0 : index
    %c0_47 = arith.constant 0 : index
    %121 = vector.load %arg10[%c0_46, %c0_47] : memref<1x1xf32, #tpu.memory_space<vmem>>, vector<1x1xf32>
    %122 = vector.extract %121[0, 0] : f32 from vector<1x1xf32>
    %123 = vector.broadcast %122 : f32 to vector<2x4xf32>
    %124 = arith.mulf %123, %120 : vector<2x4xf32>
    %c0_48 = arith.constant 0 : index
    %c0_49 = arith.constant 0 : index
    %125 = vector.load %arg11[%c0_48, %c0_49] : memref<2x4xf32, #tpu.memory_space<vmem>>, vector<2x4xf32>
    tpu.vector_store %arg11[%c0_48, %c0_49], %124 {strides = array<i32>} : memref<2x4xf32, #tpu.memory_space<vmem>>, vector<2x4xf32>,
    %c0_50 = arith.constant 0 : index
    %c0_51 = arith.constant 0 : index
    %126 = vector.load %arg12[%c0_50, %c0_51] : memref<2x32xf32, #tpu.memory_space<vmem>>, vector<2x32xf32>
    tpu.vector_store %arg12[%c0_50, %c0_51], %111 {strides = array<i32>} : memref<2x32xf32, #tpu.memory_space<vmem>>, vector<2x32xf32>,
    %c0_52 = arith.constant 0 : index
    %c0_53 = arith.constant 0 : index
    %127 = vector.load %arg13[%c0_52, %c0_53] : memref<4x32xf32, #tpu.memory_space<vmem>>, vector<4x32xf32>
    tpu.vector_store %arg13[%c0_52, %c0_53], %119 {strides = array<i32>} : memref<4x32xf32, #tpu.memory_space<vmem>>, vector<4x32xf32>,
    return
  }
  func.func @transform_0(%arg0: i32, %arg1: memref<4xi32, #tpu.memory_space<smem>>) -> (i32, i32, i32) {
    %c0_i32 = arith.constant 0 : i32
    %c0_i32_0 = arith.constant 0 : i32
    %c0_i32_1 = arith.constant 0 : i32
    %c0_i32_2 = arith.constant 0 : i32
    return %c0_i32, %c0_i32_0, %c0_i32_1 : i32, i32, i32
  }
  func.func @transform_1(%arg0: i32, %arg1: memref<4xi32, #tpu.memory_space<smem>>) -> (i32, i32) {
    %c0_i32 = arith.constant 0 : i32
    %c0_i32_0 = arith.constant 0 : i32
    %c0_i32_1 = arith.constant 0 : i32
    return %c0_i32, %c0_i32_0 : i32, i32
  }
  func.func @transform_2(%arg0: i32, %arg1: memref<4xi32, #tpu.memory_space<smem>>) -> (i32, i32) {
    %c0_i32 = arith.constant 0 : i32
    %c0_i32_0 = arith.constant 0 : i32
    %c0_i32_1 = arith.constant 0 : i32
    return %c0_i32, %c0_i32_0 : i32, i32
  }
  func.func @transform_3(%arg0: i32, %arg1: memref<4xi32, #tpu.memory_space<smem>>) -> (i32, i32) {
    %c0_i32 = arith.constant 0 : i32
    %c0_i32_0 = arith.constant 0 : i32
    %c0_i32_1 = arith.constant 0 : i32
    return %c0_i32, %c0_i32_0 : i32, i32
  }
  func.func @transform_4(%arg0: i32, %arg1: memref<4xi32, #tpu.memory_space<smem>>) -> (i32, i32) {
    %c0_i32 = arith.constant 0 : i32
    %c0_i32_0 = arith.constant 0 : i32
    %c0_i32_1 = arith.constant 0 : i32
    return %c0_i32, %c0_i32_0 : i32, i32
  }
  func.func @transform_5(%arg0: i32, %arg1: memref<4xi32, #tpu.memory_space<smem>>) -> (i32, i32) {
    %c0_i32 = arith.constant 0 : i32
    %c0_i32_0 = arith.constant 0 : i32
    %c0_i32_1 = arith.constant 0 : i32
    return %c0_i32, %c0_i32_0 : i32, i32
  }
  func.func @transform_6(%arg0: i32, %arg1: memref<4xi32, #tpu.memory_space<smem>>) -> (i32, i32) {
    %c0_i32 = arith.constant 0 : i32
    %c0_i32_0 = arith.constant 0 : i32
    %c0_i32_1 = arith.constant 0 : i32
    return %c0_i32, %c0_i32_0 : i32, i32
  }
  func.func @transform_7(%arg0: i32, %arg1: memref<4xi32, #tpu.memory_space<smem>>) -> (i32, i32) {
    %c0_i32 = arith.constant 0 : i32
    %c0_i32_0 = arith.constant 0 : i32
    %c0_i32_1 = arith.constant 0 : i32
    return %c0_i32, %c0_i32_0 : i32, i32
  }
  func.func @transform_8(%arg0: i32, %arg1: memref<4xi32, #tpu.memory_space<smem>>) -> (i32, i32) {
    %c0_i32 = arith.constant 0 : i32
    %c0_i32_0 = arith.constant 0 : i32
    %c0_i32_1 = arith.constant 0 : i32
    return %c0_i32, %c0_i32_0 : i32, i32
  }
  func.func @transform_9(%arg0: i32, %arg1: memref<4xi32, #tpu.memory_space<smem>>) -> (i32, i32) {
    %c0_i32 = arith.constant 0 : i32
    %c0_i32_0 = arith.constant 0 : i32
    %c0_i32_1 = arith.constant 0 : i32
    return %c0_i32, %c0_i32_0 : i32, i32
  }
  func.func @transform_10(%arg0: i32, %arg1: memref<4xi32, #tpu.memory_space<smem>>) -> (i32, i32) {
    %c0_i32 = arith.constant 0 : i32
    %c0_i32_0 = arith.constant 0 : i32
    %c0_i32_1 = arith.constant 0 : i32
    return %c0_i32, %c0_i32_0 : i32, i32
  }
  func.func @transform_11(%arg0: i32, %arg1: memref<4xi32, #tpu.memory_space<smem>>) -> (i32, i32) {
    %c0_i32 = arith.constant 0 : i32
    %c0_i32_0 = arith.constant 0 : i32
    %c0_i32_1 = arith.constant 0 : i32
    return %c0_i32, %c0_i32_0 : i32, i32
  }
}

</mosaic_0001>

<llo_original>
// kernel: custom_clip_forward.10
$region0: #{custom_clip_forward.10}
  #allocation0 [shape = 'u32[]', space=smem, size = 0x4, offset = 0x4, fixed_abs, tag = 'smem constant byte address 0x4 - core index']
  #allocation1 [shape = 'u32[72,128]{1,0:T(1,128)}', space=vmem, size = 0x9000, scoped, tag = 'internal scratch']
  %s0 = inlined_call_operand.vmem [shape: bf16[3,64], index: 0, kind: input, shape index: {}]
  %s1 = inlined_call_operand.vmem [shape: bf16[64,64], index: 1, kind: input, shape index: {}]
  %s2 = inlined_call_operand.vmem [shape: f32[1,64], index: 2, kind: input, shape index: {}]
  %s3 = inlined_call_operand.vmem [shape: f32[3,64], index: 3, kind: output, shape index: {}]
  %s4 = sld [smem:[#allocation0]]
  $region22: #{custom_clip_forward.10} parent=0
    _
  %s6 = ssub.s32 1, %s4
  %s7 = scalar_select 0, %s6, %s4
  // Predicated region
  $region2: #{custom_clip_forward.10} parent=0 // pred_check
    _
  $region3: #{custom_clip_forward.10} parent=0 // pred_check_branch
    %9 = sbr.rel (0) target = $region5
  $region4: #{custom_clip_forward.10} parent=0 // pred_region
    _
  $region5: #{custom_clip_forward.10} parent=0 // pred_fallthru
    _
  // Predicated region
  $region6: #{custom_clip_forward.10} parent=0 // pred_check
    _
  $region7: #{custom_clip_forward.10} parent=0 // pred_check_branch
    %11 = sbr.rel (0) target = $region9
  $region8: #{custom_clip_forward.10} parent=0 // pred_region
    _
  $region9: #{custom_clip_forward.10} parent=0 // pred_fallthru
    _
  // Predicated region
  $region10: #{custom_clip_forward.10} parent=0 // pred_check
    _
  $region11: #{custom_clip_forward.10} parent=0 // pred_check_branch
    %13 = sbr.rel (0) target = $region13
  $region12: #{custom_clip_forward.10} parent=0 // pred_region
    _
  $region13: #{custom_clip_forward.10} parent=0 // pred_fallthru
    _
  %v15 = vld [vmem:[%s0] sm:$0x3]
  %v16 = vld [vmem:[%s1] sm:$0xf]
  %v17 = vld [vmem:[%s1 + $0x4] sm:$0xf]
  %v18 = vld [vmem:[%s1 + $0x8] sm:$0xf]
  %v19 = vld [vmem:[%s1 + $0xc] sm:$0xf]
  %v20 = vld [vmem:[%s1 + $0x10] sm:$0xf]
  %v21 = vld [vmem:[%s1 + $0x14] sm:$0xf]
  %v22 = vld [vmem:[%s1 + $0x18] sm:$0xf]
  %v23 = vld [vmem:[%s1 + $0x1c] sm:$0xf]
  %v24 = vld [vmem:[%s2] sm:$0x1]
  %v26 = vperm.slane %v24, 0
  %v36 = vunpack.c.l.b16 %v16
  %v37 = vunpack.c.l.b16 %v17
  %v38 = vunpack.c.l.b16 %v18
  %v39 = vunpack.c.l.b16 %v19
  %v40 = vunpack.c.l.b16 %v20
  %v41 = vunpack.c.l.b16 %v21
  %v42 = vunpack.c.l.b16 %v22
  %v43 = vunpack.c.l.b16 %v23
  %v44 = vpack.c.b16 %v37, %v36
  %v45 = vpack.c.b16 %v39, %v38
  %v46 = vpack.c.b16 %v41, %v40
  %v47 = vpack.c.b16 %v43, %v42
  %vm52 = vcmask 523264
  %v54 = vsel %vm52, %v15, 0
  %56 = vmatpush.bf16.msra.mxu0 0
  %57 = vmatpush.bf16.msra.mxu0 0
  %58 = vmatpush.bf16.msra.mxu0 0
  %59 = vmatpush.bf16.msra.mxu0 0
  %60 = vmatpush.bf16.msra.mxu0 %v47
  %61 = vmatpush.bf16.msra.mxu0 %v46
  %62 = vmatpush.bf16.msra.mxu0 %v45
  %63 = vmatpush.bf16.msra.mxu0 %v44
  %64 = vmatmul.bf16.gmra.mxu0 %v54
  %v65 = vpop.f32.mrf.mxu0
  %v66 = vadd.f32 %v26, %v65
  %v67 = vpop.f32.mrf.mxu0
  %68 = vdwg.mxu0
  %vm69 = vcmask 518144
  %70 = vst.msk [vmem:[%s3] sm:$0x7] %vm69, %v66
  // Predicated region
  $region14: #{custom_clip_forward.10} parent=0 // pred_check
    _
  $region15: #{custom_clip_forward.10} parent=0 // pred_check_branch
    %72 = sbr.rel (0) target = $region17
  $region16: #{custom_clip_forward.10} parent=0 // pred_region
    _
  $region17: #{custom_clip_forward.10} parent=0 // pred_fallthru
    _
  // Predicated region
  $region18: #{custom_clip_forward.10} parent=0 // pred_check
    _
  $region19: #{custom_clip_forward.10} parent=0 // pred_check_branch
    %74 = sbr.rel (0) target = $region21
  $region20: #{custom_clip_forward.10} parent=0 // pred_region
    _
  $region21: #{custom_clip_forward.10} parent=0 // pred_fallthru
    _

// kernel: custom_clip_forward.13
$region0: #{custom_clip_forward.13}
  #allocation0 [shape = 'u32[]', space=smem, size = 0x4, offset = 0x4, fixed_abs, tag = 'smem constant byte address 0x4 - core index']
  #allocation1 [shape = 'u32[72,128]{1,0:T(1,128)}', space=vmem, size = 0x9000, scoped, tag = 'internal scratch']
  %s0 = inlined_call_operand.vmem [shape: bf16[8,192], index: 0, kind: input, shape index: {}]
  %s1 = inlined_call_operand.vmem [shape: bf16[192,64], index: 1, kind: input, shape index: {}]
  %s2 = inlined_call_operand.vmem [shape: f32[1,64], index: 2, kind: input, shape index: {}]
  %s3 = inlined_call_operand.vmem [shape: f32[8,64], index: 3, kind: output, shape index: {}]
  %s4 = sld [smem:[#allocation0]]
  $region22: #{custom_clip_forward.13} parent=0
    _
  %s6 = ssub.s32 1, %s4
  %s7 = scalar_select 0, %s6, %s4
  // Predicated region
  $region2: #{custom_clip_forward.13} parent=0 // pred_check
    _
  $region3: #{custom_clip_forward.13} parent=0 // pred_check_branch
    %9 = sbr.rel (0) target = $region5
  $region4: #{custom_clip_forward.13} parent=0 // pred_region
    _
  $region5: #{custom_clip_forward.13} parent=0 // pred_fallthru
    _
  // Predicated region
  $region6: #{custom_clip_forward.13} parent=0 // pred_check
    _
  $region7: #{custom_clip_forward.13} parent=0 // pred_check_branch
    %11 = sbr.rel (0) target = $region9
  $region8: #{custom_clip_forward.13} parent=0 // pred_region
    _
  $region9: #{custom_clip_forward.13} parent=0 // pred_fallthru
    _
  // Predicated region
  $region10: #{custom_clip_forward.13} parent=0 // pred_check
    _
  $region11: #{custom_clip_forward.13} parent=0 // pred_check_branch
    %13 = sbr.rel (0) target = $region13
  $region12: #{custom_clip_forward.13} parent=0 // pred_region
    _
  $region13: #{custom_clip_forward.13} parent=0 // pred_fallthru
    _
  %v15 = vld [vmem:[%s0] sm:$0xff]
  %v16 = vld [vmem:[%s1] sm:$0xf]
  %v17 = vld [vmem:[%s1 + $0x4] sm:$0xf]
  %v18 = vld [vmem:[%s1 + $0x8] sm:$0xf]
  %v19 = vld [vmem:[%s1 + $0xc] sm:$0xf]
  %v20 = vld [vmem:[%s1 + $0x10] sm:$0xf]
  %v21 = vld [vmem:[%s1 + $0x14] sm:$0xf]
  %v22 = vld [vmem:[%s1 + $0x18] sm:$0xf]
  %v23 = vld [vmem:[%s1 + $0x1c] sm:$0xf]
  %v24 = vld [vmem:[%s1 + $0x20] sm:$0xf]
  %v25 = vld [vmem:[%s1 + $0x24] sm:$0xf]
  %v26 = vld [vmem:[%s1 + $0x28] sm:$0xf]
  %v27 = vld [vmem:[%s1 + $0x2c] sm:$0xf]
  %v28 = vld [vmem:[%s1 + $0x30] sm:$0xf]
  %v29 = vld [vmem:[%s1 + $0x34] sm:$0xf]
  %v30 = vld [vmem:[%s1 + $0x38] sm:$0xf]
  %v31 = vld [vmem:[%s1 + $0x3c] sm:$0xf]
  %v32 = vld [vmem:[%s1 + $0x40] sm:$0xf]
  %v33 = vld [vmem:[%s1 + $0x44] sm:$0xf]
  %v34 = vld [vmem:[%s1 + $0x48] sm:$0xf]
  %v35 = vld [vmem:[%s1 + $0x4c] sm:$0xf]
  %v36 = vld [vmem:[%s1 + $0x50] sm:$0xf]
  %v37 = vld [vmem:[%s1 + $0x54] sm:$0xf]
  %v38 = vld [vmem:[%s1 + $0x58] sm:$0xf]
  %v39 = vld [vmem:[%s1 + $0x5c] sm:$0xf]
  %v40 = vld [vmem:[%s2] sm:$0x1]
  %v42 = vperm.slane %v40, 0
  %v45 = vunpack.c.l.b16 %v15
  %v46 = vunpack.c.h.b16 %v15
  %v47 = vpack.c.b16 %v45, %v45
  %v48 = vpack.c.b16 %v46, %v46
  %v74 = vunpack.c.l.b16 %v16
  %v75 = vunpack.c.l.b16 %v17
  %v76 = vunpack.c.l.b16 %v18
  %v77 = vunpack.c.l.b16 %v19
  %v78 = vunpack.c.l.b16 %v20
  %v79 = vunpack.c.l.b16 %v21
  %v80 = vunpack.c.l.b16 %v22
  %v81 = vunpack.c.l.b16 %v23
  %v82 = vunpack.c.l.b16 %v24
  %v83 = vunpack.c.l.b16 %v25
  %v84 = vunpack.c.l.b16 %v26
  %v85 = vunpack.c.l.b16 %v27
  %v86 = vunpack.c.l.b16 %v28
  %v87 = vunpack.c.l.b16 %v29
  %v88 = vunpack.c.l.b16 %v30
  %v89 = vunpack.c.l.b16 %v31
  %v90 = vunpack.c.l.b16 %v32
  %v91 = vunpack.c.l.b16 %v33
  %v92 = vunpack.c.l.b16 %v34
  %v93 = vunpack.c.l.b16 %v35
  %v94 = vunpack.c.l.b16 %v36
  %v95 = vunpack.c.l.b16 %v37
  %v96 = vunpack.c.l.b16 %v38
  %v97 = vunpack.c.l.b16 %v39
  %v98 = vpack.c.b16 %v75, %v74
  %v99 = vpack.c.b16 %v77, %v76
  %v100 = vpack.c.b16 %v79, %v78
  %v101 = vpack.c.b16 %v81, %v80
  %v102 = vpack.c.b16 %v83, %v82
  %v103 = vpack.c.b16 %v85, %v84
  %v104 = vpack.c.b16 %v87, %v86
  %v105 = vpack.c.b16 %v89, %v88
  %v106 = vpack.c.b16 %v91, %v90
  %v107 = vpack.c.b16 %v93, %v92
  %v108 = vpack.c.b16 %v95, %v94
  %v109 = vpack.c.b16 %v97, %v96
  %vm122 = vcmask 523264
  %v124 = vsel %vm122, %v48, 0
  %126 = vmatpush.bf16.msra.mxu0 %v105
  %127 = vmatpush.bf16.msra.mxu0 %v104
  %128 = vmatpush.bf16.msra.mxu0 %v103
  %129 = vmatpush.bf16.msra.mxu0 %v102
  %130 = vmatpush.bf16.msra.mxu0 %v101
  %131 = vmatpush.bf16.msra.mxu0 %v100
  %132 = vmatpush.bf16.msra.mxu0 %v99
  %133 = vmatpush.bf16.msra.mxu0 %v98
  %134 = vmatmul.bf16.gmra.mxu0 %v47
  %v135 = vpop.f32.mrf.mxu0
  %v136 = vadd.f32 %v42, %v135
  %v137 = vpop.f32.mrf.mxu0
  %138 = vdwg.mxu0
  %139 = vmatpush.bf16.msra.mxu0 0
  %140 = vmatpush.bf16.msra.mxu0 0
  %141 = vmatpush.bf16.msra.mxu0 0
  %142 = vmatpush.bf16.msra.mxu0 0
  %143 = vmatpush.bf16.msra.mxu0 %v109
  %144 = vmatpush.bf16.msra.mxu0 %v108
  %145 = vmatpush.bf16.msra.mxu0 %v107
  %146 = vmatpush.bf16.msra.mxu0 %v106
  %147 = vmatmul.bf16.gmra.mxu0 %v124
  %v148 = vpop.f32.mrf.mxu0
  %v149 = vadd.f32 %v136, %v148
  %v150 = vpop.f32.mrf.mxu0
  %151 = vdwg.mxu0
  %152 = vst.msk [vmem:[%s3] sm:$0xff] %vm122, %v149
  // Predicated region
  $region14: #{custom_clip_forward.13} parent=0 // pred_check
    _
  $region15: #{custom_clip_forward.13} parent=0 // pred_check_branch
    %154 = sbr.rel (0) target = $region17
  $region16: #{custom_clip_forward.13} parent=0 // pred_region
    _
  $region17: #{custom_clip_forward.13} parent=0 // pred_fallthru
    _
  // Predicated region
  $region18: #{custom_clip_forward.13} parent=0 // pred_check
    _
  $region19: #{custom_clip_forward.13} parent=0 // pred_check_branch
    %156 = sbr.rel (0) target = $region21
  $region20: #{custom_clip_forward.13} parent=0 // pred_region
    _
  $region21: #{custom_clip_forward.13} parent=0 // pred_fallthru
    _

// kernel: custom_clip_forward.11
$region0: #{custom_clip_forward.11}
  #allocation0 [shape = 'u32[]', space=smem, size = 0x4, offset = 0x4, fixed_abs, tag = 'smem constant byte address 0x4 - core index']
  #allocation1 [shape = 'u32[72,128]{1,0:T(1,128)}', space=vmem, size = 0x9000, scoped, tag = 'internal scratch']
  %s0 = inlined_call_operand.vmem [shape: f32[4,16,64], index: 0, kind: input, shape index: {}]
  %s1 = inlined_call_operand.vmem [shape: f32[1,64], index: 1, kind: input, shape index: {}]
  %s2 = inlined_call_operand.vmem [shape: f32[1,64], index: 2, kind: input, shape index: {}]
  %s3 = inlined_call_operand.vmem [shape: bf16[64,192], index: 3, kind: input, shape index: {}]
  %s4 = inlined_call_operand.vmem [shape: f32[1,192], index: 4, kind: input, shape index: {}]
  %s5 = inlined_call_operand.vmem [shape: bf16[64,64], index: 5, kind: input, shape index: {}]
  %s6 = inlined_call_operand.vmem [shape: f32[1,64], index: 6, kind: input, shape index: {}]
  %s7 = inlined_call_operand.vmem [shape: f32[1,64], index: 7, kind: input, shape index: {}]
  %s8 = inlined_call_operand.vmem [shape: f32[1,64], index: 8, kind: input, shape index: {}]
  %s9 = inlined_call_operand.vmem [shape: bf16[64,256], index: 9, kind: input, shape index: {}]
  %s10 = inlined_call_operand.vmem [shape: f32[1,256], index: 10, kind: input, shape index: {}]
  %s11 = inlined_call_operand.vmem [shape: bf16[256,64], index: 11, kind: input, shape index: {}]
  %s12 = inlined_call_operand.vmem [shape: f32[1,64], index: 12, kind: input, shape index: {}]
  %s13 = inlined_call_operand.vmem [shape: f32[4,16,64], index: 13, kind: output, shape index: {}]
  %s14 = sld [smem:[#allocation0]]
  $region85: #{custom_clip_forward.11} parent=0
    _
  %s16 = ssub.s32 1, %s14
  %s17 = scalar_select 0, %s16, %s14
  loop: start=0, step=1, limit=6
  $region2: #{custom_clip_forward.11} parent=0 // loop_pre_header
    _
  $region3: #{custom_clip_forward.11} parent=0 // loop_header
    %s19 = sphi 0, %s23
    %p20 = scmp.ge.s32.totalorder %s19, 6
    %s29 = sphi 0, %s31
    %s32 = sphi 0, %s29
    %s33 = sphi 0, %s32
    %s49 = sphi 0, %s33
    %s53 = sphi 0, %s53
    %s55 = sphi 0, %s53
    %s56 = sphi 0, %s55
    %s70 = sphi 0, %s56
    %s74 = sphi 0, %s74
    %s76 = sphi 0, %s74
    %s77 = sphi 0, %s76
    %s91 = sphi 0, %s77
    %s95 = sphi 0, %s95
    %s97 = sphi 0, %s95
    %s98 = sphi 0, %s97
    %s112 = sphi 0, %s98
    %s116 = sphi 0, %s116
    %s118 = sphi 0, %s116
    %s119 = sphi 0, %s118
    %s133 = sphi 0, %s119
    %s137 = sphi 0, %s137
    %s139 = sphi 0, %s137
    %s140 = sphi 0, %s139
    %s154 = sphi 0, %s140
    %s158 = sphi 0, %s158
    %s160 = sphi 0, %s158
    %s161 = sphi 0, %s160
    %s175 = sphi 0, %s161
    %s179 = sphi 0, %s179
    %s181 = sphi 0, %s179
    %s182 = sphi 0, %s181
    %s196 = sphi 0, %s182
    %s200 = sphi 0, %s200
    %s202 = sphi 0, %s200
    %s203 = sphi 0, %s202
    %s217 = sphi 0, %s203
    %s221 = sphi 0, %s221
    %s223 = sphi 0, %s221
    %s224 = sphi 0, %s223
    %s238 = sphi 0, %s224
    %s242 = sphi 0, %s242
    %s244 = sphi 0, %s242
    %s245 = sphi 0, %s244
    %s259 = sphi 0, %s245
    %s263 = sphi 0, %s263
    %s265 = sphi 0, %s263
    %s266 = sphi 0, %s265
    %s280 = sphi 0, %s266
    %s284 = sphi 0, %s284
    %s286 = sphi 0, %s284
    %s287 = sphi 0, %s286
    %s301 = sphi 0, %s287
    %s307 = sphi 0, %s309
    %s310 = sphi 0, %s307
    %s311 = sphi 0, %s310
    %s327 = sphi 0, %s311
  $region4: #{custom_clip_forward.11} parent=0 // loop_header_branch
    %22 = sbr.rel (%p20) target = $region8
  $region5: #{custom_clip_forward.11} parent=0 // loop_body
    %s24 = ssub.s32 %s19, 1
    %s25 = ssub.s32 %s19, 2
    %s26 = sadd.s32 %s19, 1
    %s27 = ssub.s32 %s19, %s26
    %p28 = scmp.eq.s32.totalorder %s27, 0
    %s30 = sadd.s32 %s29, 1
    %s31 = scalar_select %p28, %s29, %s30
    %p34 = pneg %p28
    %p35 = scmp.eq.s32.totalorder %s19, 3
    %p36 = por %p34, %p35
    %p37 = scmp.ne.s32.totalorder %s29, %s32
    %p38 = scmp.eq.s32.totalorder %s19, 0
    %p39 = por %p37, %p38
    %p40 = scmp.ne.s32.totalorder %s29, %s32
    %p41 = scmp.eq.s32.totalorder %s24, 3
    %p42 = por %p40, %p41
    %p43 = scmp.ne.s32.totalorder %s32, %s33
    %p44 = scmp.eq.s32.totalorder %s24, 0
    %p45 = por %p43, %p44
    %p46 = scmp.ne.s32.totalorder %s32, %s33
    %p47 = scmp.eq.s32.totalorder %s25, 3
    %p48 = por %p46, %p47
    %p50 = scmp.ne.s32.totalorder %s33, %s49
    %p51 = scmp.eq.s32.totalorder %s25, 0
    %p52 = por %p50, %p51
    %s54 = sadd.s32 %s53, 1
    %p57 = scmp.eq.s32.totalorder %s19, 3
    %p58 = scmp.ne.s32.totalorder %s53, %s55
    %p59 = scmp.eq.s32.totalorder %s19, 0
    %p60 = por %p58, %p59
    %p61 = scmp.ne.s32.totalorder %s53, %s55
    %p62 = scmp.eq.s32.totalorder %s24, 3
    %p63 = por %p61, %p62
    %p64 = scmp.ne.s32.totalorder %s55, %s56
    %p65 = scmp.eq.s32.totalorder %s24, 0
    %p66 = por %p64, %p65
    %p67 = scmp.ne.s32.totalorder %s55, %s56
    %p68 = scmp.eq.s32.totalorder %s25, 3
    %p69 = por %p67, %p68
    %p71 = scmp.ne.s32.totalorder %s56, %s70
    %p72 = scmp.eq.s32.totalorder %s25, 0
    %p73 = por %p71, %p72
    %s75 = sadd.s32 %s74, 1
    %p78 = scmp.eq.s32.totalorder %s19, 3
    %p79 = scmp.ne.s32.totalorder %s74, %s76
    %p80 = scmp.eq.s32.totalorder %s19, 0
    %p81 = por %p79, %p80
    %p82 = scmp.ne.s32.totalorder %s74, %s76
    %p83 = scmp.eq.s32.totalorder %s24, 3
    %p84 = por %p82, %p83
    %p85 = scmp.ne.s32.totalorder %s76, %s77
    %p86 = scmp.eq.s32.totalorder %s24, 0
    %p87 = por %p85, %p86
    %p88 = scmp.ne.s32.totalorder %s76, %s77
    %p89 = scmp.eq.s32.totalorder %s25, 3
    %p90 = por %p88, %p89
    %p92 = scmp.ne.s32.totalorder %s77, %s91
    %p93 = scmp.eq.s32.totalorder %s25, 0
    %p94 = por %p92, %p93
    %s96 = sadd.s32 %s95, 1
    %p99 = scmp.eq.s32.totalorder %s19, 3
    %p100 = scmp.ne.s32.totalorder %s95, %s97
    %p101 = scmp.eq.s32.totalorder %s19, 0
    %p102 = por %p100, %p101
    %p103 = scmp.ne.s32.totalorder %s95, %s97
    %p104 = scmp.eq.s32.totalorder %s24, 3
    %p105 = por %p103, %p104
    %p106 = scmp.ne.s32.totalorder %s97, %s98
    %p107 = scmp.eq.s32.totalorder %s24, 0
    %p108 = por %p106, %p107
    %p109 = scmp.ne.s32.totalorder %s97, %s98
    %p110 = scmp.eq.s32.totalorder %s25, 3
    %p111 = por %p109, %p110
    %p113 = scmp.ne.s32.totalorder %s98, %s112
    %p114 = scmp.eq.s32.totalorder %s25, 0
    %p115 = por %p113, %p114
    %s117 = sadd.s32 %s116, 1
    %p120 = scmp.eq.s32.totalorder %s19, 3
    %p121 = scmp.ne.s32.totalorder %s116, %s118
    %p122 = scmp.eq.s32.totalorder %s19, 0
    %p123 = por %p121, %p122
    %p124 = scmp.ne.s32.totalorder %s116, %s118
    %p125 = scmp.eq.s32.totalorder %s24, 3
    %p126 = por %p124, %p125
    %p127 = scmp.ne.s32.totalorder %s118, %s119
    %p128 = scmp.eq.s32.totalorder %s24, 0
    %p129 = por %p127, %p128
    %p130 = scmp.ne.s32.totalorder %s118, %s119
    %p131 = scmp.eq.s32.totalorder %s25, 3
    %p132 = por %p130, %p131
    %p134 = scmp.ne.s32.totalorder %s119, %s133
    %p135 = scmp.eq.s32.totalorder %s25, 0
    %p136 = por %p134, %p135
    %s138 = sadd.s32 %s137, 1
    %p141 = scmp.eq.s32.totalorder %s19, 3
    %p142 = scmp.ne.s32.totalorder %s137, %s139
    %p143 = scmp.eq.s32.totalorder %s19, 0
    %p144 = por %p142, %p143
    %p145 = scmp.ne.s32.totalorder %s137, %s139
    %p146 = scmp.eq.s32.totalorder %s24, 3
    %p147 = por %p145, %p146
    %p148 = scmp.ne.s32.totalorder %s139, %s140
    %p149 = scmp.eq.s32.totalorder %s24, 0
    %p150 = por %p148, %p149
    %p151 = scmp.ne.s32.totalorder %s139, %s140
    %p152 = scmp.eq.s32.totalorder %s25, 3
    %p153 = por %p151, %p152
    %p155 = scmp.ne.s32.totalorder %s140, %s154
    %p156 = scmp.eq.s32.totalorder %s25, 0
    %p157 = por %p155, %p156
    %s159 = sadd.s32 %s158, 1
    %p162 = scmp.eq.s32.totalorder %s19, 3
    %p163 = scmp.ne.s32.totalorder %s158, %s160
    %p164 = scmp.eq.s32.totalorder %s19, 0
    %p165 = por %p163, %p164
    %p166 = scmp.ne.s32.totalorder %s158, %s160
    %p167 = scmp.eq.s32.totalorder %s24, 3
    %p168 = por %p166, %p167
    %p169 = scmp.ne.s32.totalorder %s160, %s161
    %p170 = scmp.eq.s32.totalorder %s24, 0
    %p171 = por %p169, %p170
    %p172 = scmp.ne.s32.totalorder %s160, %s161
    %p173 = scmp.eq.s32.totalorder %s25, 3
    %p174 = por %p172, %p173
    %p176 = scmp.ne.s32.totalorder %s161, %s175
    %p177 = scmp.eq.s32.totalorder %s25, 0
    %p178 = por %p176, %p177
    %s180 = sadd.s32 %s179, 1
    %p183 = scmp.eq.s32.totalorder %s19, 3
    %p184 = scmp.ne.s32.totalorder %s179, %s181
    %p185 = scmp.eq.s32.totalorder %s19, 0
    %p186 = por %p184, %p185
    %p187 = scmp.ne.s32.totalorder %s179, %s181
    %p188 = scmp.eq.s32.totalorder %s24, 3
    %p189 = por %p187, %p188
    %p190 = scmp.ne.s32.totalorder %s181, %s182
    %p191 = scmp.eq.s32.totalorder %s24, 0
    %p192 = por %p190, %p191
    %p193 = scmp.ne.s32.totalorder %s181, %s182
    %p194 = scmp.eq.s32.totalorder %s25, 3
    %p195 = por %p193, %p194
    %p197 = scmp.ne.s32.totalorder %s182, %s196
    %p198 = scmp.eq.s32.totalorder %s25, 0
    %p199 = por %p197, %p198
    %s201 = sadd.s32 %s200, 1
    %p204 = scmp.eq.s32.totalorder %s19, 3
    %p205 = scmp.ne.s32.totalorder %s200, %s202
    %p206 = scmp.eq.s32.totalorder %s19, 0
    %p207 = por %p205, %p206
    %p208 = scmp.ne.s32.totalorder %s200, %s202
    %p209 = scmp.eq.s32.totalorder %s24, 3
    %p210 = por %p208, %p209
    %p211 = scmp.ne.s32.totalorder %s202, %s203
    %p212 = scmp.eq.s32.totalorder %s24, 0
    %p213 = por %p211, %p212
    %p214 = scmp.ne.s32.totalorder %s202, %s203
    %p215 = scmp.eq.s32.totalorder %s25, 3
    %p216 = por %p214, %p215
    %p218 = scmp.ne.s32.totalorder %s203, %s217
    %p219 = scmp.eq.s32.totalorder %s25, 0
    %p220 = por %p218, %p219
    %s222 = sadd.s32 %s221, 1
    %p225 = scmp.eq.s32.totalorder %s19, 3
    %p226 = scmp.ne.s32.totalorder %s221, %s223
    %p227 = scmp.eq.s32.totalorder %s19, 0
    %p228 = por %p226, %p227
    %p229 = scmp.ne.s32.totalorder %s221, %s223
    %p230 = scmp.eq.s32.totalorder %s24, 3
    %p231 = por %p229, %p230
    %p232 = scmp.ne.s32.totalorder %s223, %s224
    %p233 = scmp.eq.s32.totalorder %s24, 0
    %p234 = por %p232, %p233
    %p235 = scmp.ne.s32.totalorder %s223, %s224
    %p236 = scmp.eq.s32.totalorder %s25, 3
    %p237 = por %p235, %p236
    %p239 = scmp.ne.s32.totalorder %s224, %s238
    %p240 = scmp.eq.s32.totalorder %s25, 0
    %p241 = por %p239, %p240
    %s243 = sadd.s32 %s242, 1
    %p246 = scmp.eq.s32.totalorder %s19, 3
    %p247 = scmp.ne.s32.totalorder %s242, %s244
    %p248 = scmp.eq.s32.totalorder %s19, 0
    %p249 = por %p247, %p248
    %p250 = scmp.ne.s32.totalorder %s242, %s244
    %p251 = scmp.eq.s32.totalorder %s24, 3
    %p252 = por %p250, %p251
    %p253 = scmp.ne.s32.totalorder %s244, %s245
    %p254 = scmp.eq.s32.totalorder %s24, 0
    %p255 = por %p253, %p254
    %p256 = scmp.ne.s32.totalorder %s244, %s245
    %p257 = scmp.eq.s32.totalorder %s25, 3
    %p258 = por %p256, %p257
    %p260 = scmp.ne.s32.totalorder %s245, %s259
    %p261 = scmp.eq.s32.totalorder %s25, 0
    %p262 = por %p260, %p261
    %s264 = sadd.s32 %s263, 1
    %p267 = scmp.eq.s32.totalorder %s19, 3
    %p268 = scmp.ne.s32.totalorder %s263, %s265
    %p269 = scmp.eq.s32.totalorder %s19, 0
    %p270 = por %p268, %p269
    %p271 = scmp.ne.s32.totalorder %s263, %s265
    %p272 = scmp.eq.s32.totalorder %s24, 3
    %p273 = por %p271, %p272
    %p274 = scmp.ne.s32.totalorder %s265, %s266
    %p275 = scmp.eq.s32.totalorder %s24, 0
    %p276 = por %p274, %p275
    %p277 = scmp.ne.s32.totalorder %s265, %s266
    %p278 = scmp.eq.s32.totalorder %s25, 3
    %p279 = por %p277, %p278
    %p281 = scmp.ne.s32.totalorder %s266, %s280
    %p282 = scmp.eq.s32.totalorder %s25, 0
    %p283 = por %p281, %p282
    %s285 = sadd.s32 %s284, 1
    %p288 = scmp.eq.s32.totalorder %s19, 3
    %p289 = scmp.ne.s32.totalorder %s284, %s286
    %p290 = scmp.eq.s32.totalorder %s19, 0
    %p291 = por %p289, %p290
    %p292 = scmp.ne.s32.totalorder %s284, %s286
    %p293 = scmp.eq.s32.totalorder %s24, 3
    %p294 = por %p292, %p293
    %p295 = scmp.ne.s32.totalorder %s286, %s287
    %p296 = scmp.eq.s32.totalorder %s24, 0
    %p297 = por %p295, %p296
    %p298 = scmp.ne.s32.totalorder %s286, %s287
    %p299 = scmp.eq.s32.totalorder %s25, 3
    %p300 = por %p298, %p299
    %p302 = scmp.ne.s32.totalorder %s287, %s301
    %p303 = scmp.eq.s32.totalorder %s25, 0
    %p304 = por %p302, %p303
    %s305 = ssub.s32 %s19, %s26
    %p306 = scmp.eq.s32.totalorder %s305, 0
    %s308 = sadd.s32 %s307, 1
    %s309 = scalar_select %p306, %s307, %s308
    %p312 = pneg %p306
    %p313 = scmp.eq.s32.totalorder %s19, 3
    %p314 = por %p312, %p313
    %p315 = scmp.ne.s32.totalorder %s307, %s310
    %p316 = scmp.eq.s32.totalorder %s19, 0
    %p317 = por %p315, %p316
    %p318 = scmp.ne.s32.totalorder %s307, %s310
    %p319 = scmp.eq.s32.totalorder %s24, 3
    %p320 = por %p318, %p319
    %p321 = scmp.ne.s32.totalorder %s310, %s311
    %p322 = scmp.eq.s32.totalorder %s24, 0
    %p323 = por %p321, %p322
    %p324 = scmp.ne.s32.totalorder %s310, %s311
    %p325 = scmp.eq.s32.totalorder %s25, 3
    %p326 = por %p324, %p325
    %p328 = scmp.ne.s32.totalorder %s311, %s327
    %p329 = scmp.eq.s32.totalorder %s25, 0
    %p330 = por %p328, %p329
    %p331 = scmp.le.s32.totalorder 1, %s19
    %p332 = scmp.lt.s32.totalorder %s19, 5
    %p333 = pnand %p331, %p332
    %p334 = pneg %p333
    // Predicated region
    $region9: #{custom_clip_forward.11} parent=5 // pred_check
      _
    $region10: #{custom_clip_forward.11} parent=5 // pred_check_branch
      %336 = sbr.rel (%p333) target = $region12
    $region11: #{custom_clip_forward.11} parent=5 // pred_region
      %s337 = ssub.s32 %s19, 1
      // Predicated region
      $region13: #{custom_clip_forward.11} parent=11 // pred_check
        %p338 = pneg %p66
      $region14: #{custom_clip_forward.11} parent=11 // pred_check_branch
        %340 = sbr.rel (%p338) target = $region16
      $region15: #{custom_clip_forward.11} parent=11 // pred_region
        _
      $region16: #{custom_clip_forward.11} parent=11 // pred_fallthru
        _
      // Predicated region
      $region17: #{custom_clip_forward.11} parent=11 // pred_check
        %p341 = pneg %p87
      $region18: #{custom_clip_forward.11} parent=11 // pred_check_branch
        %343 = sbr.rel (%p341) target = $region20
      $region19: #{custom_clip_forward.11} parent=11 // pred_region
        _
      $region20: #{custom_clip_forward.11} parent=11 // pred_fallthru
        _
      // Predicated region
      $region21: #{custom_clip_forward.11} parent=11 // pred_check
        %p344 = pneg %p108
      $region22: #{custom_clip_forward.11} parent=11 // pred_check_branch
        %346 = sbr.rel (%p344) target = $region24
      $region23: #{custom_clip_forward.11} parent=11 // pred_region
        _
      $region24: #{custom_clip_forward.11} parent=11 // pred_fallthru
        _
      // Predicated region
      $region25: #{custom_clip_forward.11} parent=11 // pred_check
        %p347 = pneg %p129
      $region26: #{custom_clip_forward.11} parent=11 // pred_check_branch
        %349 = sbr.rel (%p347) target = $region28
      $region27: #{custom_clip_forward.11} parent=11 // pred_region
        _
      $region28: #{custom_clip_forward.11} parent=11 // pred_fallthru
        _
      // Predicated region
      $region29: #{custom_clip_forward.11} parent=11 // pred_check
        %p350 = pneg %p150
      $region30: #{custom_clip_forward.11} parent=11 // pred_check_branch
        %352 = sbr.rel (%p350) target = $region32
      $region31: #{custom_clip_forward.11} parent=11 // pred_region
        _
      $region32: #{custom_clip_forward.11} parent=11 // pred_fallthru
        _
      // Predicated region
      $region33: #{custom_clip_forward.11} parent=11 // pred_check
        %p353 = pneg %p171
      $region34: #{custom_clip_forward.11} parent=11 // pred_check_branch
        %355 = sbr.rel (%p353) target = $region36
      $region35: #{custom_clip_forward.11} parent=11 // pred_region
        _
      $region36: #{custom_clip_forward.11} parent=11 // pred_fallthru
        _
      // Predicated region
      $region37: #{custom_clip_forward.11} parent=11 // pred_check
        %p356 = pneg %p192
      $region38: #{custom_clip_forward.11} parent=11 // pred_check_branch
        %358 = sbr.rel (%p356) target = $region40
      $region39: #{custom_clip_forward.11} parent=11 // pred_region
        _
      $region40: #{custom_clip_forward.11} parent=11 // pred_fallthru
        _
      // Predicated region
      $region41: #{custom_clip_forward.11} parent=11 // pred_check
        %p359 = pneg %p213
      $region42: #{custom_clip_forward.11} parent=11 // pred_check_branch
        %361 = sbr.rel (%p359) target = $region44
      $region43: #{custom_clip_forward.11} parent=11 // pred_region
        _
      $region44: #{custom_clip_forward.11} parent=11 // pred_fallthru
        _
      // Predicated region
      $region45: #{custom_clip_forward.11} parent=11 // pred_check
        %p362 = pneg %p234
      $region46: #{custom_clip_forward.11} parent=11 // pred_check_branch
        %364 = sbr.rel (%p362) target = $region48
      $region47: #{custom_clip_forward.11} parent=11 // pred_region
        _
      $region48: #{custom_clip_forward.11} parent=11 // pred_fallthru
        _
      // Predicated region
      $region49: #{custom_clip_forward.11} parent=11 // pred_check
        %p365 = pneg %p255
      $region50: #{custom_clip_forward.11} parent=11 // pred_check_branch
        %367 = sbr.rel (%p365) target = $region52
      $region51: #{custom_clip_forward.11} parent=11 // pred_region
        _
      $region52: #{custom_clip_forward.11} parent=11 // pred_fallthru
        _
      // Predicated region
      $region53: #{custom_clip_forward.11} parent=11 // pred_check
        %p368 = pneg %p276
      $region54: #{custom_clip_forward.11} parent=11 // pred_check_branch
        %370 = sbr.rel (%p368) target = $region56
      $region55: #{custom_clip_forward.11} parent=11 // pred_region
        _
      $region56: #{custom_clip_forward.11} parent=11 // pred_fallthru
        _
      // Predicated region
      $region57: #{custom_clip_forward.11} parent=11 // pred_check
        %p371 = pneg %p297
      $region58: #{custom_clip_forward.11} parent=11 // pred_check_branch
        %373 = sbr.rel (%p371) target = $region60
      $region59: #{custom_clip_forward.11} parent=11 // pred_region
        _
      $region60: #{custom_clip_forward.11} parent=11 // pred_fallthru
        _
    $region12: #{custom_clip_forward.11} parent=5 // pred_fallthru
      _
    %p374 = scmp.lt.s32.totalorder %s19, 4
    // Predicated region
    $region61: #{custom_clip_forward.11} parent=5 // pred_check
      %p375 = pneg %p374
    $region62: #{custom_clip_forward.11} parent=5 // pred_check_branch
      %377 = sbr.rel (%p375) target = $region64
    $region63: #{custom_clip_forward.11} parent=5 // pred_region
      // Predicated region
      $region65: #{custom_clip_forward.11} parent=63 // pred_check
        %p378 = pneg %p39
      $region66: #{custom_clip_forward.11} parent=63 // pred_check_branch
        %380 = sbr.rel (%p378) target = $region68
      $region67: #{custom_clip_forward.11} parent=63 // pred_region
        %p381 = scmp.lt.s32.totalorder %s19, 3
        %s382 = scalar_select %p381, %s19, 3
        %s383 = smul.addr %s382, 2
        %s384 = smul.addr %s383, 8
        %s385 = scalar_lea.vmem %s0, %s384
      $region68: #{custom_clip_forward.11} parent=63 // pred_fallthru
        _
    $region64: #{custom_clip_forward.11} parent=5 // pred_fallthru
      _
    %p386 = scmp.le.s32.totalorder 1, %s19
    %p387 = scmp.lt.s32.totalorder %s19, 5
    %p388 = pnand %p386, %p387
    %p389 = pneg %p388
    // Predicated region
    $region69: #{custom_clip_forward.11} parent=5 // pred_check
      _
    $region70: #{custom_clip_forward.11} parent=5 // pred_check_branch
      %391 = sbr.rel (%p388) target = $region72
    $region71: #{custom_clip_forward.11} parent=5 // pred_region
      %s392 = ssub.s32 %s19, 1
      %p393 = scmp.lt.s32.totalorder %s24, 3
      %s394 = scalar_select %p393, %s24, 3
      %s395 = smul.addr %s394, 2
      %s396 = smul.addr %s395, 8
      %s397 = scalar_lea.vmem %s0, %s396
      %p398 = pneg %p45
      %p399 = pneg %p42
      %p400 = pneg %p66
      %p401 = pneg %p63
      %p402 = pneg %p87
      %p403 = pneg %p84
      %p404 = pneg %p108
      %p405 = pneg %p105
      %p406 = pneg %p129
      %p407 = pneg %p126
      %p408 = pneg %p150
      %p409 = pneg %p147
      %p410 = pneg %p171
      %p411 = pneg %p168
      %p412 = pneg %p192
      %p413 = pneg %p189
      %p414 = pneg %p213
      %p415 = pneg %p210
      %p416 = pneg %p234
      %p417 = pneg %p231
      %p418 = pneg %p255
      %p419 = pneg %p252
      %p420 = pneg %p276
      %p421 = pneg %p273
      %p422 = pneg %p297
      %p423 = pneg %p294
      %p424 = pneg %p323
      %p425 = pneg %p320
      %p426 = scmp.lt.s32.totalorder %s24, 3
      %s427 = scalar_select %p426, %s24, 3
      %s428 = smul.addr %s427, 2
      %s429 = smul.addr %s428, 8
      %s430 = scalar_lea.vmem %s13, %s429
      %p431 = scmp.lt.s32.totalorder %s24, 3
      %s432 = scalar_select %p431, %s24, 3
      %s433 = smul.addr %s432, 2
      %s434 = smul.addr %s433, 8
      %s435 = scalar_lea.vmem %s0, %s434
      %p436 = scmp.lt.s32.totalorder %s24, 3
      %s437 = scalar_select %p436, %s24, 3
      %s438 = smul.addr %s437, 2
      %s439 = smul.addr %s438, 8
      %s440 = scalar_lea.vmem %s13, %s439
      %v442 = vld [vmem:[%s435] sm:$0xff]
      %v443 = vld [vmem:[%s435 + $0x8] sm:$0xff]
      %vm444 = vcmask 523264
      %v445 = vsel %vm444, %v442, 0.0
      %446 = vadd.xlane.f32.xlu0 %v445
      %v447 = vpop.xlane.xlu0 %446
      %v448 = vsel %vm444, %v443, 0.0
      %449 = vadd.xlane.f32.xlu0 %v448
      %v450 = vpop.xlane.xlu0 %449
      %v451 = vrcp.pop 64.0
      %v452 = vmul.f32 64.0, %v451
      %v453 = vsub.f32 1.0, %v452
      %v454 = vmul.f32 %v451, %v453
      %v455 = vadd.f32 %v451, %v454
      %vm456 = vweird.f32 %v451
      %v457 = vsel %vm456, %v451, %v455
      %v458 = vmul.f32 %v447, %v457
      %v459 = vmul.f32 %v450, %v457
      %v460 = vsub.f32 %v442, %v458
      %v461 = vsub.f32 %v443, %v459
      %v462 = vmul.f32 %v460, %v460
      %v463 = vmul.f32 %v461, %v461
      %v464 = vsel %vm444, %v462, 0.0
      %465 = vadd.xlane.f32.xlu0 %v464
      %v466 = vpop.xlane.xlu0 %465
      %v467 = vsel %vm444, %v463, 0.0
      %468 = vadd.xlane.f32.xlu0 %v467
      %v469 = vpop.xlane.xlu0 %468
      %v470 = vmul.f32 %v466, %v457
      %v471 = vmul.f32 %v469, %v457
      %v472 = vadd.f32 %v470, 1e-05
      %v473 = vadd.f32 %v471, 1e-05
      %v474 = vrsqrt.pop %v472
      %v475 = vmul.f32 %v474, %v472
      %v476 = vmul.f32 %v475, %v474
      %v477 = vmul.f32 0.5, %v476
      %v478 = vsub.f32 1.5, %v477
      %v479 = vmul.f32 %v474, %v478
      %vm480 = vweird.f32 %v472
      %vm481 = vweird.f32 %v474
      %vm482 = vmor %vm480, %vm481
      %v483 = vsel %vm482, %v474, %v479
      %v484 = vrsqrt.pop %v473
      %v485 = vmul.f32 %v484, %v473
      %v486 = vmul.f32 %v485, %v484
      %v487 = vmul.f32 0.5, %v486
      %v488 = vsub.f32 1.5, %v487
      %v489 = vmul.f32 %v484, %v488
      %vm490 = vweird.f32 %v473
      %vm491 = vweird.f32 %v484
      %vm492 = vmor %vm490, %vm491
      %v493 = vsel %vm492, %v484, %v489
      %v494 = vmul.f32 %v460, %v483
      %v495 = vmul.f32 %v461, %v493
      %v496 = vld [vmem:[%s1] sm:$0x1]
      %v498 = vperm.slane %v496, 0
      %v500 = vmul.f32 %v494, %v498
      %v501 = vmul.f32 %v495, %v498
      %v502 = vld [vmem:[%s2] sm:$0x1]
      %v504 = vperm.slane %v502, 0
      %v506 = vadd.f32 %v500, %v504
      %v507 = vadd.f32 %v501, %v504
      %v508 = vpack.c.bf16 %v507, %v506
      %v509 = vld [vmem:[%s3] sm:$0xff]
      %v510 = vld [vmem:[%s3 + $0x8] sm:$0xff]
      %v511 = vld [vmem:[%s3 + $0x10] sm:$0xff]
      %v512 = vld [vmem:[%s3 + $0x18] sm:$0xff]
      %v513 = vld [vmem:[%s3 + $0x20] sm:$0xff]
      %v514 = vld [vmem:[%s3 + $0x28] sm:$0xff]
      %v515 = vld [vmem:[%s3 + $0x30] sm:$0xff]
      %v516 = vld [vmem:[%s3 + $0x38] sm:$0xff]
      %v517 = vld [vmem:[%s4] sm:$0x3]
      %v519 = vperm.slane %v517, 0
      %v520 = vperm.slane %v517, 1
      %v531 = vunpack.c.l.b16 %v509
      %v532 = vunpack.c.h.b16 %v509
      %v533 = vunpack.c.l.b16 %v510
      %v534 = vunpack.c.h.b16 %v510
      %v535 = vunpack.c.l.b16 %v511
      %v536 = vunpack.c.h.b16 %v511
      %v537 = vunpack.c.l.b16 %v512
      %v538 = vunpack.c.h.b16 %v512
      %v539 = vunpack.c.l.b16 %v513
      %v540 = vunpack.c.h.b16 %v513
      %v541 = vunpack.c.l.b16 %v514
      %v542 = vunpack.c.h.b16 %v514
      %v543 = vunpack.c.l.b16 %v515
      %v544 = vunpack.c.h.b16 %v515
      %v545 = vunpack.c.l.b16 %v516
      %v546 = vunpack.c.h.b16 %v516
      %v547 = vpack.c.b16 %v533, %v531
      %v548 = vpack.c.b16 %v534, %v532
      %v549 = vpack.c.b16 %v537, %v535
      %v550 = vpack.c.b16 %v538, %v536
      %v551 = vpack.c.b16 %v541, %v539
      %v552 = vpack.c.b16 %v542, %v540
      %v553 = vpack.c.b16 %v545, %v543
      %v554 = vpack.c.b16 %v546, %v544
      %v564 = vsel %vm444, %v508, 0
      %566 = vmatpush.bf16.msra.mxu0 0
      %567 = vmatpush.bf16.msra.mxu0 0
      %568 = vmatpush.bf16.msra.mxu0 0
      %569 = vmatpush.bf16.msra.mxu0 0
      %570 = vmatpush.bf16.msra.mxu0 %v553
      %571 = vmatpush.bf16.msra.mxu0 %v551
      %572 = vmatpush.bf16.msra.mxu0 %v549
      %573 = vmatpush.bf16.msra.mxu0 %v547
      %574 = vmatmul.bf16.gmra.mxu0 %v564
      %v575 = vpop.f32.mrf.mxu0
      %v576 = vadd.f32 %v519, %v575
      %v577 = vpop.f32.mrf.mxu0
      %v578 = vadd.f32 %v519, %v577
      %579 = vdwg.mxu0
      %580 = vmatpush.bf16.msra.mxu0 0
      %581 = vmatpush.bf16.msra.mxu0 0
      %582 = vmatpush.bf16.msra.mxu0 0
      %583 = vmatpush.bf16.msra.mxu0 0
      %584 = vmatpush.bf16.msra.mxu0 %v554
      %585 = vmatpush.bf16.msra.mxu0 %v552
      %586 = vmatpush.bf16.msra.mxu0 %v550
      %587 = vmatpush.bf16.msra.mxu0 %v548
      %588 = vmatmul.bf16.gmra.mxu0 %v564
      %v589 = vpop.f32.mrf.mxu0
      %v590 = vadd.f32 %v520, %v589
      %v591 = vpop.f32.mrf.mxu0
      %v592 = vadd.f32 %v520, %v591
      %593 = vdwg.mxu0
      %v594 = vlaneseq
      %v595 = vshrl.u32 %v594, 7
      %v596 = vadd.s32 %v595, 8
      %v597 = vlaneseq
      %v598 = vand.u32 %v597, 127
      %vm599 = vcmp.le.s32.totalorder %v598, %v595
      %vm600 = vcmp.le.s32.totalorder %v598, %v596
      %v601 = vsel %vm599, 0.0, -1e+09
      %v602 = vsel %vm600, 0.0, -1e+09
      %v603 = vld [vmem:[%s5] sm:$0xf]
      %v604 = vld [vmem:[%s5 + $0x4] sm:$0xf]
      %v605 = vld [vmem:[%s5 + $0x8] sm:$0xf]
      %v606 = vld [vmem:[%s5 + $0xc] sm:$0xf]
      %v607 = vld [vmem:[%s5 + $0x10] sm:$0xf]
      %v608 = vld [vmem:[%s5 + $0x14] sm:$0xf]
      %v609 = vld [vmem:[%s5 + $0x18] sm:$0xf]
      %v610 = vld [vmem:[%s5 + $0x1c] sm:$0xf]
      %v611 = vpack.c.bf16 %v578, %v576
      %613 = vrot.lane.b32.xlu0 %v611, 64
      %v614 = vpop.permute.xlu0 %613
      %vm615 = vcmask 130048
      %v617 = vsel %vm615, %v611, 0
      %v620 = vsel %vm615, %v614, 0
      %622 = vmatpush.bf16.xpose.msra.mxu0 0
      %623 = vmatpush.bf16.xpose.msra.mxu0 0
      %624 = vmatpush.bf16.xpose.msra.mxu0 0
      %625 = vmatpush.bf16.xpose.msra.mxu0 0
      %626 = vmatpush.bf16.xpose.msra.mxu0 0
      %627 = vmatpush.bf16.xpose.msra.mxu0 0
      %628 = vmatpush.bf16.xpose.msra.mxu0 0
      %629 = vmatpush.bf16.xpose.msra.mxu0 %v620
      %630 = vmatmul.bf16.gmra.mxu0 %v617
      %v631 = vpop.f32.mrf.mxu0
      %v632 = vadd.f32 0.0, %v631
      %v633 = vpop.f32.mrf.mxu0
      %v634 = vadd.f32 0.0, %v633
      %635 = vdwg.mxu0
      %v636 = vmul.f32 %v632, 0.25
      %v637 = vmul.f32 %v634, 0.25
      %v638 = vadd.f32 %v636, %v601
      %v639 = vadd.f32 %v637, %v602
      %v640 = vsel %vm615, %v638, -inf
      %641 = vmax.xlane.f32.xlu0 %v640
      %v642 = vpop.xlane.xlu0 %641
      %v643 = vsel %vm615, %v639, -inf
      %644 = vmax.xlane.f32.xlu0 %v643
      %v645 = vpop.xlane.xlu0 %644
      %v646 = vsub.f32 %v638, %v642
      %v647 = vsub.f32 %v639, %v645
      %v648 = vmul.f32 %v646, 1.442695
      %v649 = vpow.pop %v648
      %v650 = vmul.f32 %v647, 1.442695
      %v651 = vpow.pop %v650
      %v652 = vsel %vm615, %v649, 0.0
      %653 = vadd.xlane.f32.xlu0 %v652
      %v654 = vpop.xlane.xlu0 %653
      %v655 = vsel %vm615, %v651, 0.0
      %656 = vadd.xlane.f32.xlu0 %v655
      %v657 = vpop.xlane.xlu0 %656
      %v658 = vrcp.pop %v654
      %v659 = vrcp.pop %v657
      %v660 = vmul.f32 %v649, %v658
      %v661 = vmul.f32 %v651, %v659
      %v662 = vpack.c.bf16 %v661, %v660
      %v663 = vpack.c.bf16 %v592, %v590
      %v665 = vsel %vm615, %v662, 0
      %667 = vmatpush.bf16.msra.mxu0 0
      %668 = vmatpush.bf16.msra.mxu0 0
      %669 = vmatpush.bf16.msra.mxu0 0
      %670 = vmatpush.bf16.msra.mxu0 0
      %671 = vmatpush.bf16.msra.mxu0 0
      %672 = vmatpush.bf16.msra.mxu0 0
      %673 = vmatpush.bf16.msra.mxu0 0
      %674 = vmatpush.bf16.msra.mxu0 %v663
      %675 = vmatmul.bf16.gmra.mxu0 %v665
      %v676 = vpop.f32.mrf.mxu0
      %v677 = vadd.f32 0.0, %v676
      %v678 = vpop.f32.mrf.mxu0
      %v679 = vadd.f32 0.0, %v678
      %680 = vdwg.mxu0
      %v681 = vpack.c.bf16 %v679, %v677
      %682 = vrot.lane.b32.xlu0 %v611, 112
      %v683 = vpop.permute.xlu0 %682
      %684 = vrot.lane.b32.xlu0 %v611, 48
      %v685 = vpop.permute.xlu0 %684
      %v687 = vsel %vm615, %v683, 0
      %v690 = vsel %vm615, %v685, 0
      %692 = vmatpush.bf16.xpose.msra.mxu0 0
      %693 = vmatpush.bf16.xpose.msra.mxu0 0
      %694 = vmatpush.bf16.xpose.msra.mxu0 0
      %695 = vmatpush.bf16.xpose.msra.mxu0 0
      %696 = vmatpush.bf16.xpose.msra.mxu0 0
      %697 = vmatpush.bf16.xpose.msra.mxu0 0
      %698 = vmatpush.bf16.xpose.msra.mxu0 0
      %699 = vmatpush.bf16.xpose.msra.mxu0 %v690
      %700 = vmatmul.bf16.gmra.mxu0 %v687
      %v701 = vpop.f32.mrf.mxu0
      %v702 = vadd.f32 0.0, %v701
      %v703 = vpop.f32.mrf.mxu0
      %v704 = vadd.f32 0.0, %v703
      %705 = vdwg.mxu0
      %v706 = vmul.f32 %v702, 0.25
      %v707 = vmul.f32 %v704, 0.25
      %v708 = vadd.f32 %v706, %v601
      %v709 = vadd.f32 %v707, %v602
      %v710 = vsel %vm615, %v708, -inf
      %711 = vmax.xlane.f32.xlu0 %v710
      %v712 = vpop.xlane.xlu0 %711
      %v713 = vsel %vm615, %v709, -inf
      %714 = vmax.xlane.f32.xlu0 %v713
      %v715 = vpop.xlane.xlu0 %714
      %v716 = vsub.f32 %v708, %v712
      %v717 = vsub.f32 %v709, %v715
      %v718 = vmul.f32 %v716, 1.442695
      %v719 = vpow.pop %v718
      %v720 = vmul.f32 %v717, 1.442695
      %v721 = vpow.pop %v720
      %v722 = vsel %vm615, %v719, 0.0
      %723 = vadd.xlane.f32.xlu0 %v722
      %v724 = vpop.xlane.xlu0 %723
      %v725 = vsel %vm615, %v721, 0.0
      %726 = vadd.xlane.f32.xlu0 %v725
      %v727 = vpop.xlane.xlu0 %726
      %v728 = vrcp.pop %v724
      %v729 = vrcp.pop %v727
      %v730 = vmul.f32 %v719, %v728
      %v731 = vmul.f32 %v721, %v729
      %v732 = vpack.c.bf16 %v731, %v730
      %734 = vrot.lane.b32.xlu0 %v663, 112
      %v735 = vpop.permute.xlu0 %734
      %v738 = vsel %vm615, %v732, 0
      %740 = vmatpush.bf16.msra.mxu0 0
      %741 = vmatpush.bf16.msra.mxu0 0
      %742 = vmatpush.bf16.msra.mxu0 0
      %743 = vmatpush.bf16.msra.mxu0 0
      %744 = vmatpush.bf16.msra.mxu0 0
      %745 = vmatpush.bf16.msra.mxu0 0
      %746 = vmatpush.bf16.msra.mxu0 0
      %747 = vmatpush.bf16.msra.mxu0 %v735
      %748 = vmatmul.bf16.gmra.mxu0 %v738
      %v749 = vpop.f32.mrf.mxu0
      %v750 = vadd.f32 0.0, %v749
      %v751 = vpop.f32.mrf.mxu0
      %v752 = vadd.f32 0.0, %v751
      %753 = vdwg.mxu0
      %v754 = vpack.c.bf16 %v752, %v750
      %v757 = vunpack.c.l.b16 %v605
      %v758 = vunpack.c.l.b16 %v606
      %v759 = vpack.c.b16 %v758, %v757
      %v762 = vsel %vm615, %v754, 0
      %764 = vmatpush.bf16.msra.mxu0 0
      %765 = vmatpush.bf16.msra.mxu0 0
      %766 = vmatpush.bf16.msra.mxu0 0
      %767 = vmatpush.bf16.msra.mxu0 0
      %768 = vmatpush.bf16.msra.mxu0 0
      %769 = vmatpush.bf16.msra.mxu0 0
      %770 = vmatpush.bf16.msra.mxu0 0
      %771 = vmatpush.bf16.msra.mxu0 %v759
      %772 = vmatmul.bf16.gmra.mxu0 %v762
      %v773 = vpop.f32.mrf.mxu0
      %v774 = vadd.f32 0.0, %v773
      %v775 = vpop.f32.mrf.mxu0
      %v776 = vadd.f32 0.0, %v775
      %777 = vdwg.mxu0
      %v780 = vunpack.c.l.b16 %v603
      %v781 = vunpack.c.l.b16 %v604
      %v782 = vpack.c.b16 %v781, %v780
      %v785 = vsel %vm615, %v681, 0
      %787 = vmatpush.bf16.msra.mxu0 0
      %788 = vmatpush.bf16.msra.mxu0 0
      %789 = vmatpush.bf16.msra.mxu0 0
      %790 = vmatpush.bf16.msra.mxu0 0
      %791 = vmatpush.bf16.msra.mxu0 0
      %792 = vmatpush.bf16.msra.mxu0 0
      %793 = vmatpush.bf16.msra.mxu0 0
      %794 = vmatpush.bf16.msra.mxu0 %v782
      %795 = vmatmul.bf16.gmra.mxu0 %v785
      %v796 = vpop.f32.mrf.mxu0
      %v797 = vadd.f32 %v774, %v796
      %v798 = vpop.f32.mrf.mxu0
      %v799 = vadd.f32 %v776, %v798
      %800 = vdwg.mxu0
      %801 = vrot.lane.b32.xlu0 %v611, 96
      %v802 = vpop.permute.xlu0 %801
      %803 = vrot.lane.b32.xlu0 %v611, 32
      %v804 = vpop.permute.xlu0 %803
      %v806 = vsel %vm615, %v802, 0
      %v809 = vsel %vm615, %v804, 0
      %811 = vmatpush.bf16.xpose.msra.mxu0 0
      %812 = vmatpush.bf16.xpose.msra.mxu0 0
      %813 = vmatpush.bf16.xpose.msra.mxu0 0
      %814 = vmatpush.bf16.xpose.msra.mxu0 0
      %815 = vmatpush.bf16.xpose.msra.mxu0 0
      %816 = vmatpush.bf16.xpose.msra.mxu0 0
      %817 = vmatpush.bf16.xpose.msra.mxu0 0
      %818 = vmatpush.bf16.xpose.msra.mxu0 %v809
      %819 = vmatmul.bf16.gmra.mxu0 %v806
      %v820 = vpop.f32.mrf.mxu0
      %v821 = vadd.f32 0.0, %v820
      %v822 = vpop.f32.mrf.mxu0
      %v823 = vadd.f32 0.0, %v822
      %824 = vdwg.mxu0
      %v825 = vmul.f32 %v821, 0.25
      %v826 = vmul.f32 %v823, 0.25
      %v827 = vadd.f32 %v825, %v601
      %v828 = vadd.f32 %v826, %v602
      %v829 = vsel %vm615, %v827, -inf
      %830 = vmax.xlane.f32.xlu0 %v829
      %v831 = vpop.xlane.xlu0 %830
      %v832 = vsel %vm615, %v828, -inf
      %833 = vmax.xlane.f32.xlu0 %v832
      %v834 = vpop.xlane.xlu0 %833
      %v835 = vsub.f32 %v827, %v831
      %v836 = vsub.f32 %v828, %v834
      %v837 = vmul.f32 %v835, 1.442695
      %v838 = vpow.pop %v837
      %v839 = vmul.f32 %v836, 1.442695
      %v840 = vpow.pop %v839
      %v841 = vsel %vm615, %v838, 0.0
      %842 = vadd.xlane.f32.xlu0 %v841
      %v843 = vpop.xlane.xlu0 %842
      %v844 = vsel %vm615, %v840, 0.0
      %845 = vadd.xlane.f32.xlu0 %v844
      %v846 = vpop.xlane.xlu0 %845
      %v847 = vrcp.pop %v843
      %v848 = vrcp.pop %v846
      %v849 = vmul.f32 %v838, %v847
      %v850 = vmul.f32 %v840, %v848
      %v851 = vpack.c.bf16 %v850, %v849
      %852 = vrot.lane.b32.xlu0 %v663, 96
      %v853 = vpop.permute.xlu0 %852
      %v856 = vsel %vm615, %v851, 0
      %858 = vmatpush.bf16.msra.mxu0 0
      %859 = vmatpush.bf16.msra.mxu0 0
      %860 = vmatpush.bf16.msra.mxu0 0
      %861 = vmatpush.bf16.msra.mxu0 0
      %862 = vmatpush.bf16.msra.mxu0 0
      %863 = vmatpush.bf16.msra.mxu0 0
      %864 = vmatpush.bf16.msra.mxu0 0
      %865 = vmatpush.bf16.msra.mxu0 %v853
      %866 = vmatmul.bf16.gmra.mxu0 %v856
      %v867 = vpop.f32.mrf.mxu0
      %v868 = vadd.f32 0.0, %v867
      %v869 = vpop.f32.mrf.mxu0
      %v870 = vadd.f32 0.0, %v869
      %871 = vdwg.mxu0
      %v872 = vpack.c.bf16 %v870, %v868
      %v875 = vunpack.c.l.b16 %v607
      %v876 = vunpack.c.l.b16 %v608
      %v877 = vpack.c.b16 %v876, %v875
      %v880 = vsel %vm615, %v872, 0
      %882 = vmatpush.bf16.msra.mxu0 0
      %883 = vmatpush.bf16.msra.mxu0 0
      %884 = vmatpush.bf16.msra.mxu0 0
      %885 = vmatpush.bf16.msra.mxu0 0
      %886 = vmatpush.bf16.msra.mxu0 0
      %887 = vmatpush.bf16.msra.mxu0 0
      %888 = vmatpush.bf16.msra.mxu0 0
      %889 = vmatpush.bf16.msra.mxu0 %v877
      %890 = vmatmul.bf16.gmra.mxu0 %v880
      %v891 = vpop.f32.mrf.mxu0
      %v892 = vadd.f32 0.0, %v891
      %v893 = vpop.f32.mrf.mxu0
      %v894 = vadd.f32 0.0, %v893
      %895 = vdwg.mxu0
      %v896 = vadd.f32 %v797, %v892
      %v897 = vadd.f32 %v799, %v894
      %898 = vrot.lane.b32.xlu0 %v611, 80
      %v899 = vpop.permute.xlu0 %898
      %900 = vrot.lane.b32.xlu0 %v611, 16
      %v901 = vpop.permute.xlu0 %900
      %v903 = vsel %vm615, %v899, 0
      %v906 = vsel %vm615, %v901, 0
      %908 = vmatpush.bf16.xpose.msra.mxu0 0
      %909 = vmatpush.bf16.xpose.msra.mxu0 0
      %910 = vmatpush.bf16.xpose.msra.mxu0 0
      %911 = vmatpush.bf16.xpose.msra.mxu0 0
      %912 = vmatpush.bf16.xpose.msra.mxu0 0
      %913 = vmatpush.bf16.xpose.msra.mxu0 0
      %914 = vmatpush.bf16.xpose.msra.mxu0 0
      %915 = vmatpush.bf16.xpose.msra.mxu0 %v906
      %916 = vmatmul.bf16.gmra.mxu0 %v903
      %v917 = vpop.f32.mrf.mxu0
      %v918 = vadd.f32 0.0, %v917
      %v919 = vpop.f32.mrf.mxu0
      %v920 = vadd.f32 0.0, %v919
      %921 = vdwg.mxu0
      %v922 = vmul.f32 %v918, 0.25
      %v923 = vmul.f32 %v920, 0.25
      %v924 = vadd.f32 %v922, %v601
      %v925 = vadd.f32 %v923, %v602
      %v926 = vsel %vm615, %v924, -inf
      %927 = vmax.xlane.f32.xlu0 %v926
      %v928 = vpop.xlane.xlu0 %927
      %v929 = vsel %vm615, %v925, -inf
      %930 = vmax.xlane.f32.xlu0 %v929
      %v931 = vpop.xlane.xlu0 %930
      %v932 = vsub.f32 %v924, %v928
      %v933 = vsub.f32 %v925, %v931
      %v934 = vmul.f32 %v932, 1.442695
      %v935 = vpow.pop %v934
      %v936 = vmul.f32 %v933, 1.442695
      %v937 = vpow.pop %v936
      %v938 = vsel %vm615, %v935, 0.0
      %939 = vadd.xlane.f32.xlu0 %v938
      %v940 = vpop.xlane.xlu0 %939
      %v941 = vsel %vm615, %v937, 0.0
      %942 = vadd.xlane.f32.xlu0 %v941
      %v943 = vpop.xlane.xlu0 %942
      %v944 = vrcp.pop %v940
      %v945 = vrcp.pop %v943
      %v946 = vmul.f32 %v935, %v944
      %v947 = vmul.f32 %v937, %v945
      %v948 = vpack.c.bf16 %v947, %v946
      %949 = vrot.lane.b32.xlu0 %v663, 80
      %v950 = vpop.permute.xlu0 %949
      %v953 = vsel %vm615, %v948, 0
      %955 = vmatpush.bf16.msra.mxu0 0
      %956 = vmatpush.bf16.msra.mxu0 0
      %957 = vmatpush.bf16.msra.mxu0 0
      %958 = vmatpush.bf16.msra.mxu0 0
      %959 = vmatpush.bf16.msra.mxu0 0
      %960 = vmatpush.bf16.msra.mxu0 0
      %961 = vmatpush.bf16.msra.mxu0 0
      %962 = vmatpush.bf16.msra.mxu0 %v950
      %963 = vmatmul.bf16.gmra.mxu0 %v953
      %v964 = vpop.f32.mrf.mxu0
      %v965 = vadd.f32 0.0, %v964
      %v966 = vpop.f32.mrf.mxu0
      %v967 = vadd.f32 0.0, %v966
      %968 = vdwg.mxu0
      %v969 = vpack.c.bf16 %v967, %v965
      %v972 = vunpack.c.l.b16 %v609
      %v973 = vunpack.c.l.b16 %v610
      %v974 = vpack.c.b16 %v973, %v972
      %v977 = vsel %vm615, %v969, 0
      %979 = vmatpush.bf16.msra.mxu0 0
      %980 = vmatpush.bf16.msra.mxu0 0
      %981 = vmatpush.bf16.msra.mxu0 0
      %982 = vmatpush.bf16.msra.mxu0 0
      %983 = vmatpush.bf16.msra.mxu0 0
      %984 = vmatpush.bf16.msra.mxu0 0
      %985 = vmatpush.bf16.msra.mxu0 0
      %986 = vmatpush.bf16.msra.mxu0 %v974
      %987 = vmatmul.bf16.gmra.mxu0 %v977
      %v988 = vpop.f32.mrf.mxu0
      %v989 = vadd.f32 0.0, %v988
      %v990 = vpop.f32.mrf.mxu0
      %v991 = vadd.f32 0.0, %v990
      %992 = vdwg.mxu0
      %v993 = vadd.f32 %v896, %v989
      %v994 = vadd.f32 %v897, %v991
      %v995 = vadd.f32 %v442, %v993
      %v996 = vadd.f32 %v443, %v994
      %v997 = vld [vmem:[%s6] sm:$0x1]
      %v999 = vperm.slane %v997, 0
      %v1001 = vadd.f32 %v995, %v999
      %v1002 = vadd.f32 %v996, %v999
      %v1003 = vsel %vm444, %v1001, 0.0
      %1004 = vadd.xlane.f32.xlu0 %v1003
      %v1005 = vpop.xlane.xlu0 %1004
      %v1006 = vsel %vm444, %v1002, 0.0
      %1007 = vadd.xlane.f32.xlu0 %v1006
      %v1008 = vpop.xlane.xlu0 %1007
      %v1009 = vmul.f32 %v1005, %v457
      %v1010 = vmul.f32 %v1008, %v457
      %v1011 = vsub.f32 %v1001, %v1009
      %v1012 = vsub.f32 %v1002, %v1010
      %v1013 = vmul.f32 %v1011, %v1011
      %v1014 = vmul.f32 %v1012, %v1012
      %v1015 = vsel %vm444, %v1013, 0.0
      %1016 = vadd.xlane.f32.xlu0 %v1015
      %v1017 = vpop.xlane.xlu0 %1016
      %v1018 = vsel %vm444, %v1014, 0.0
      %1019 = vadd.xlane.f32.xlu0 %v1018
      %v1020 = vpop.xlane.xlu0 %1019
      %v1021 = vmul.f32 %v1017, %v457
      %v1022 = vmul.f32 %v1020, %v457
      %v1023 = vadd.f32 %v1021, 1e-05
      %v1024 = vadd.f32 %v1022, 1e-05
      %v1025 = vrsqrt.pop %v1023
      %v1026 = vmul.f32 %v1025, %v1023
      %v1027 = vmul.f32 %v1026, %v1025
      %v1028 = vmul.f32 0.5, %v1027
      %v1029 = vsub.f32 1.5, %v1028
      %v1030 = vmul.f32 %v1025, %v1029
      %vm1031 = vweird.f32 %v1023
      %vm1032 = vweird.f32 %v1025
      %vm1033 = vmor %vm1031, %vm1032
      %v1034 = vsel %vm1033, %v1025, %v1030
      %v1035 = vrsqrt.pop %v1024
      %v1036 = vmul.f32 %v1035, %v1024
      %v1037 = vmul.f32 %v1036, %v1035
      %v1038 = vmul.f32 0.5, %v1037
      %v1039 = vsub.f32 1.5, %v1038
      %v1040 = vmul.f32 %v1035, %v1039
      %vm1041 = vweird.f32 %v1024
      %vm1042 = vweird.f32 %v1035
      %vm1043 = vmor %vm1041, %vm1042
      %v1044 = vsel %vm1043, %v1035, %v1040
      %v1045 = vmul.f32 %v1011, %v1034
      %v1046 = vmul.f32 %v1012, %v1044
      %v1047 = vld [vmem:[%s7] sm:$0x1]
      %v1049 = vperm.slane %v1047, 0
      %v1051 = vmul.f32 %v1045, %v1049
      %v1052 = vmul.f32 %v1046, %v1049
      %v1053 = vld [vmem:[%s8] sm:$0x1]
      %v1055 = vperm.slane %v1053, 0
      %v1057 = vadd.f32 %v1051, %v1055
      %v1058 = vadd.f32 %v1052, %v1055
      %v1059 = vpack.c.bf16 %v1058, %v1057
      %v1060 = vld [vmem:[%s9] sm:$0xff]
      %v1061 = vld [vmem:[%s9 + $0x8] sm:$0xff]
      %v1062 = vld [vmem:[%s9 + $0x10] sm:$0xff]
      %v1063 = vld [vmem:[%s9 + $0x18] sm:$0xff]
      %v1064 = vld [vmem:[%s9 + $0x20] sm:$0xff]
      %v1065 = vld [vmem:[%s9 + $0x28] sm:$0xff]
      %v1066 = vld [vmem:[%s9 + $0x30] sm:$0xff]
      %v1067 = vld [vmem:[%s9 + $0x38] sm:$0xff]
      %v1068 = vld [vmem:[%s10] sm:$0x3]
      %v1070 = vperm.slane %v1068, 0
      %v1071 = vperm.slane %v1068, 1
      %v1082 = vunpack.c.l.b16 %v1060
      %v1083 = vunpack.c.h.b16 %v1060
      %v1084 = vunpack.c.l.b16 %v1061
      %v1085 = vunpack.c.h.b16 %v1061
      %v1086 = vunpack.c.l.b16 %v1062
      %v1087 = vunpack.c.h.b16 %v1062
      %v1088 = vunpack.c.l.b16 %v1063
      %v1089 = vunpack.c.h.b16 %v1063
      %v1090 = vunpack.c.l.b16 %v1064
      %v1091 = vunpack.c.h.b16 %v1064
      %v1092 = vunpack.c.l.b16 %v1065
      %v1093 = vunpack.c.h.b16 %v1065
      %v1094 = vunpack.c.l.b16 %v1066
      %v1095 = vunpack.c.h.b16 %v1066
      %v1096 = vunpack.c.l.b16 %v1067
      %v1097 = vunpack.c.h.b16 %v1067
      %v1098 = vpack.c.b16 %v1084, %v1082
      %v1099 = vpack.c.b16 %v1085, %v1083
      %v1100 = vpack.c.b16 %v1088, %v1086
      %v1101 = vpack.c.b16 %v1089, %v1087
      %v1102 = vpack.c.b16 %v1092, %v1090
      %v1103 = vpack.c.b16 %v1093, %v1091
      %v1104 = vpack.c.b16 %v1096, %v1094
      %v1105 = vpack.c.b16 %v1097, %v1095
      %v1115 = vsel %vm444, %v1059, 0
      %1117 = vmatpush.bf16.msra.mxu0 0
      %1118 = vmatpush.bf16.msra.mxu0 0
      %1119 = vmatpush.bf16.msra.mxu0 0
      %1120 = vmatpush.bf16.msra.mxu0 0
      %1121 = vmatpush.bf16.msra.mxu0 %v1104
      %1122 = vmatpush.bf16.msra.mxu0 %v1102
      %1123 = vmatpush.bf16.msra.mxu0 %v1100
      %1124 = vmatpush.bf16.msra.mxu0 %v1098
      %1125 = vmatmul.bf16.gmra.mxu0 %v1115
      %v1126 = vpop.f32.mrf.mxu0
      %v1127 = vadd.f32 %v1070, %v1126
      %v1128 = vpop.f32.mrf.mxu0
      %v1129 = vadd.f32 %v1070, %v1128
      %1130 = vdwg.mxu0
      %1131 = vmatpush.bf16.msra.mxu0 0
      %1132 = vmatpush.bf16.msra.mxu0 0
      %1133 = vmatpush.bf16.msra.mxu0 0
      %1134 = vmatpush.bf16.msra.mxu0 0
      %1135 = vmatpush.bf16.msra.mxu0 %v1105
      %1136 = vmatpush.bf16.msra.mxu0 %v1103
      %1137 = vmatpush.bf16.msra.mxu0 %v1101
      %1138 = vmatpush.bf16.msra.mxu0 %v1099
      %1139 = vmatmul.bf16.gmra.mxu0 %v1115
      %v1140 = vpop.f32.mrf.mxu0
      %v1141 = vadd.f32 %v1071, %v1140
      %v1142 = vpop.f32.mrf.mxu0
      %v1143 = vadd.f32 %v1071, %v1142
      %1144 = vdwg.mxu0
      %v1145 = vmul.f32 %v1127, 1.702
      %v1146 = vmul.f32 %v1141, 1.702
      %v1147 = vmul.f32 %v1129, 1.702
      %v1148 = vmul.f32 %v1143, 1.702
      %v1149 = vxor.u32 %v1145, 2147483648
      %v1150 = vxor.u32 %v1146, 2147483648
      %v1151 = vxor.u32 %v1147, 2147483648
      %v1152 = vxor.u32 %v1148, 2147483648
      %v1153 = vmul.f32 %v1149, 1.442695
      %v1154 = vpow.pop %v1153
      %v1155 = vmul.f32 %v1150, 1.442695
      %v1156 = vpow.pop %v1155
      %v1157 = vmul.f32 %v1151, 1.442695
      %v1158 = vpow.pop %v1157
      %v1159 = vmul.f32 %v1152, 1.442695
      %v1160 = vpow.pop %v1159
      %v1161 = vadd.f32 %v1154, 1.0
      %v1162 = vadd.f32 %v1156, 1.0
      %v1163 = vadd.f32 %v1158, 1.0
      %v1164 = vadd.f32 %v1160, 1.0
      %v1165 = vrcp.pop %v1161
      %v1166 = vmul.f32 %v1161, %v1165
      %v1167 = vsub.f32 1.0, %v1166
      %v1168 = vmul.f32 %v1165, %v1167
      %v1169 = vadd.f32 %v1165, %v1168
      %vm1170 = vweird.f32 %v1161
      %vm1171 = vweird.f32 %v1165
      %vm1172 = vmor %vm1170, %vm1171
      %v1173 = vsel %vm1172, %v1165, %v1169
      %v1174 = vand.u32 2147483647, %v1161
      %vm1175 = vcmp.eq.f32.partialorder %v1174, 8.507059e+37
      %v1176 = vand.u32 %v1161, 2147483648
      %v1177 = vor.u32 1.1754944e-38, %v1176
      %v1178 = vsel %vm1175, %v1177, %v1173
      %v1179 = vmul.f32 1.0, %v1178
      %v1180 = vrcp.pop %v1162
      %v1181 = vmul.f32 %v1162, %v1180
      %v1182 = vsub.f32 1.0, %v1181
      %v1183 = vmul.f32 %v1180, %v1182
      %v1184 = vadd.f32 %v1180, %v1183
      %vm1185 = vweird.f32 %v1162
      %vm1186 = vweird.f32 %v1180
      %vm1187 = vmor %vm1185, %vm1186
      %v1188 = vsel %vm1187, %v1180, %v1184
      %v1189 = vand.u32 2147483647, %v1162
      %vm1190 = vcmp.eq.f32.partialorder %v1189, 8.507059e+37
      %v1191 = vand.u32 %v1162, 2147483648
      %v1192 = vor.u32 1.1754944e-38, %v1191
      %v1193 = vsel %vm1190, %v1192, %v1188
      %v1194 = vmul.f32 1.0, %v1193
      %v1195 = vrcp.pop %v1163
      %v1196 = vmul.f32 %v1163, %v1195
      %v1197 = vsub.f32 1.0, %v1196
      %v1198 = vmul.f32 %v1195, %v1197
      %v1199 = vadd.f32 %v1195, %v1198
      %vm1200 = vweird.f32 %v1163
      %vm1201 = vweird.f32 %v1195
      %vm1202 = vmor %vm1200, %vm1201
      %v1203 = vsel %vm1202, %v1195, %v1199
      %v1204 = vand.u32 2147483647, %v1163
      %vm1205 = vcmp.eq.f32.partialorder %v1204, 8.507059e+37
      %v1206 = vand.u32 %v1163, 2147483648
      %v1207 = vor.u32 1.1754944e-38, %v1206
      %v1208 = vsel %vm1205, %v1207, %v1203
      %v1209 = vmul.f32 1.0, %v1208
      %v1210 = vrcp.pop %v1164
      %v1211 = vmul.f32 %v1164, %v1210
      %v1212 = vsub.f32 1.0, %v1211
      %v1213 = vmul.f32 %v1210, %v1212
      %v1214 = vadd.f32 %v1210, %v1213
      %vm1215 = vweird.f32 %v1164
      %vm1216 = vweird.f32 %v1210
      %vm1217 = vmor %vm1215, %vm1216
      %v1218 = vsel %vm1217, %v1210, %v1214
      %v1219 = vand.u32 2147483647, %v1164
      %vm1220 = vcmp.eq.f32.partialorder %v1219, 8.507059e+37
      %v1221 = vand.u32 %v1164, 2147483648
      %v1222 = vor.u32 1.1754944e-38, %v1221
      %v1223 = vsel %vm1220, %v1222, %v1218
      %v1224 = vmul.f32 1.0, %v1223
      %v1225 = vmul.f32 %v1127, %v1179
      %v1226 = vmul.f32 %v1141, %v1194
      %v1227 = vmul.f32 %v1129, %v1209
      %v1228 = vmul.f32 %v1143, %v1224
      %v1229 = vpack.c.bf16 %v1227, %v1225
      %v1230 = vpack.c.bf16 %v1228, %v1226
      %v1231 = vld [vmem:[%s11] sm:$0xf]
      %v1232 = vld [vmem:[%s11 + $0x4] sm:$0xf]
      %v1233 = vld [vmem:[%s11 + $0x8] sm:$0xf]
      %v1234 = vld [vmem:[%s11 + $0xc] sm:$0xf]
      %v1235 = vld [vmem:[%s11 + $0x10] sm:$0xf]
      %v1236 = vld [vmem:[%s11 + $0x14] sm:$0xf]
      %v1237 = vld [vmem:[%s11 + $0x18] sm:$0xf]
      %v1238 = vld [vmem:[%s11 + $0x1c] sm:$0xf]
      %v1239 = vld [vmem:[%s11 + $0x20] sm:$0xf]
      %v1240 = vld [vmem:[%s11 + $0x24] sm:$0xf]
      %v1241 = vld [vmem:[%s11 + $0x28] sm:$0xf]
      %v1242 = vld [vmem:[%s11 + $0x2c] sm:$0xf]
      %v1243 = vld [vmem:[%s11 + $0x30] sm:$0xf]
      %v1244 = vld [vmem:[%s11 + $0x34] sm:$0xf]
      %v1245 = vld [vmem:[%s11 + $0x38] sm:$0xf]
      %v1246 = vld [vmem:[%s11 + $0x3c] sm:$0xf]
      %v1247 = vld [vmem:[%s11 + $0x40] sm:$0xf]
      %v1248 = vld [vmem:[%s11 + $0x44] sm:$0xf]
      %v1249 = vld [vmem:[%s11 + $0x48] sm:$0xf]
      %v1250 = vld [vmem:[%s11 + $0x4c] sm:$0xf]
      %v1251 = vld [vmem:[%s11 + $0x50] sm:$0xf]
      %v1252 = vld [vmem:[%s11 + $0x54] sm:$0xf]
      %v1253 = vld [vmem:[%s11 + $0x58] sm:$0xf]
      %v1254 = vld [vmem:[%s11 + $0x5c] sm:$0xf]
      %v1255 = vld [vmem:[%s11 + $0x60] sm:$0xf]
      %v1256 = vld [vmem:[%s11 + $0x64] sm:$0xf]
      %v1257 = vld [vmem:[%s11 + $0x68] sm:$0xf]
      %v1258 = vld [vmem:[%s11 + $0x6c] sm:$0xf]
      %v1259 = vld [vmem:[%s11 + $0x70] sm:$0xf]
      %v1260 = vld [vmem:[%s11 + $0x74] sm:$0xf]
      %v1261 = vld [vmem:[%s11 + $0x78] sm:$0xf]
      %v1262 = vld [vmem:[%s11 + $0x7c] sm:$0xf]
      %v1263 = vld [vmem:[%s12] sm:$0x1]
      %v1265 = vperm.slane %v1263, 0
      %v1299 = vunpack.c.l.b16 %v1231
      %v1300 = vunpack.c.l.b16 %v1232
      %v1301 = vunpack.c.l.b16 %v1233
      %v1302 = vunpack.c.l.b16 %v1234
      %v1303 = vunpack.c.l.b16 %v1235
      %v1304 = vunpack.c.l.b16 %v1236
      %v1305 = vunpack.c.l.b16 %v1237
      %v1306 = vunpack.c.l.b16 %v1238
      %v1307 = vunpack.c.l.b16 %v1239
      %v1308 = vunpack.c.l.b16 %v1240
      %v1309 = vunpack.c.l.b16 %v1241
      %v1310 = vunpack.c.l.b16 %v1242
      %v1311 = vunpack.c.l.b16 %v1243
      %v1312 = vunpack.c.l.b16 %v1244
      %v1313 = vunpack.c.l.b16 %v1245
      %v1314 = vunpack.c.l.b16 %v1246
      %v1315 = vunpack.c.l.b16 %v1247
      %v1316 = vunpack.c.l.b16 %v1248
      %v1317 = vunpack.c.l.b16 %v1249
      %v1318 = vunpack.c.l.b16 %v1250
      %v1319 = vunpack.c.l.b16 %v1251
      %v1320 = vunpack.c.l.b16 %v1252
      %v1321 = vunpack.c.l.b16 %v1253
      %v1322 = vunpack.c.l.b16 %v1254
      %v1323 = vunpack.c.l.b16 %v1255
      %v1324 = vunpack.c.l.b16 %v1256
      %v1325 = vunpack.c.l.b16 %v1257
      %v1326 = vunpack.c.l.b16 %v1258
      %v1327 = vunpack.c.l.b16 %v1259
      %v1328 = vunpack.c.l.b16 %v1260
      %v1329 = vunpack.c.l.b16 %v1261
      %v1330 = vunpack.c.l.b16 %v1262
      %v1331 = vpack.c.b16 %v1300, %v1299
      %v1332 = vpack.c.b16 %v1302, %v1301
      %v1333 = vpack.c.b16 %v1304, %v1303
      %v1334 = vpack.c.b16 %v1306, %v1305
      %v1335 = vpack.c.b16 %v1308, %v1307
      %v1336 = vpack.c.b16 %v1310, %v1309
      %v1337 = vpack.c.b16 %v1312, %v1311
      %v1338 = vpack.c.b16 %v1314, %v1313
      %v1339 = vpack.c.b16 %v1316, %v1315
      %v1340 = vpack.c.b16 %v1318, %v1317
      %v1341 = vpack.c.b16 %v1320, %v1319
      %v1342 = vpack.c.b16 %v1322, %v1321
      %v1343 = vpack.c.b16 %v1324, %v1323
      %v1344 = vpack.c.b16 %v1326, %v1325
      %v1345 = vpack.c.b16 %v1328, %v1327
      %v1346 = vpack.c.b16 %v1330, %v1329
      %1363 = vmatpush.bf16.msra.mxu0 %v1338
      %1364 = vmatpush.bf16.msra.mxu0 %v1337
      %1365 = vmatpush.bf16.msra.mxu0 %v1336
      %1366 = vmatpush.bf16.msra.mxu0 %v1335
      %1367 = vmatpush.bf16.msra.mxu0 %v1334
      %1368 = vmatpush.bf16.msra.mxu0 %v1333
      %1369 = vmatpush.bf16.msra.mxu0 %v1332
      %1370 = vmatpush.bf16.msra.mxu0 %v1331
      %1371 = vmatmul.bf16.gmra.mxu0 %v1229
      %v1372 = vpop.f32.mrf.mxu0
      %v1373 = vadd.f32 %v1265, %v1372
      %v1374 = vpop.f32.mrf.mxu0
      %v1375 = vadd.f32 %v1265, %v1374
      %1376 = vdwg.mxu0
      %1377 = vmatpush.bf16.msra.mxu0 %v1346
      %1378 = vmatpush.bf16.msra.mxu0 %v1345
      %1379 = vmatpush.bf16.msra.mxu0 %v1344
      %1380 = vmatpush.bf16.msra.mxu0 %v1343
      %1381 = vmatpush.bf16.msra.mxu0 %v1342
      %1382 = vmatpush.bf16.msra.mxu0 %v1341
      %1383 = vmatpush.bf16.msra.mxu0 %v1340
      %1384 = vmatpush.bf16.msra.mxu0 %v1339
      %1385 = vmatmul.bf16.gmra.mxu0 %v1230
      %v1386 = vpop.f32.mrf.mxu0
      %v1387 = vadd.f32 %v1373, %v1386
      %v1388 = vpop.f32.mrf.mxu0
      %v1389 = vadd.f32 %v1375, %v1388
      %1390 = vdwg.mxu0
      %v1391 = vadd.f32 %v1001, %v1387
      %v1392 = vadd.f32 %v1002, %v1389
      %1393 = vst.msk [vmem:[%s440] sm:$0xff] %vm444, %v1391
      %1394 = vst.msk [vmem:[%s440 + $0x8] sm:$0xff] %vm444, %v1392
      %p1395 = scmp.lt.s32.totalorder %s24, 3
      %s1396 = scalar_select %p1395, %s24, 3
      %s1397 = smul.addr %s1396, 2
      %s1398 = smul.addr %s1397, 8
      %s1399 = scalar_lea.vmem %s13, %s1398
      // Predicated region
      $region73: #{custom_clip_forward.11} parent=71 // pred_check
        %p1400 = pneg %p320
      $region74: #{custom_clip_forward.11} parent=71 // pred_check_branch
        %1402 = sbr.rel (%p1400) target = $region76
      $region75: #{custom_clip_forward.11} parent=71 // pred_region
        _
      $region76: #{custom_clip_forward.11} parent=71 // pred_fallthru
        _
    $region72: #{custom_clip_forward.11} parent=5 // pred_fallthru
      _
    %p1403 = scmp.le.s32.totalorder 2, %s19
    // Predicated region
    $region77: #{custom_clip_forward.11} parent=5 // pred_check
      %p1404 = pneg %p1403
    $region78: #{custom_clip_forward.11} parent=5 // pred_check_branch
      %1406 = sbr.rel (%p1404) target = $region80
    $region79: #{custom_clip_forward.11} parent=5 // pred_region
      %s1407 = ssub.s32 %s19, 2
      // Predicated region
      $region81: #{custom_clip_forward.11} parent=79 // pred_check
        %p1408 = pneg %p326
      $region82: #{custom_clip_forward.11} parent=79 // pred_check_branch
        %1410 = sbr.rel (%p1408) target = $region84
      $region83: #{custom_clip_forward.11} parent=79 // pred_region
        %p1411 = scmp.lt.s32.totalorder %s25, 3
        %s1412 = scalar_select %p1411, %s25, 3
        %s1413 = smul.addr %s1412, 2
        %s1414 = smul.addr %s1413, 8
        %s1415 = scalar_lea.vmem %s13, %s1414
      $region84: #{custom_clip_forward.11} parent=79 // pred_fallthru
        _
    $region80: #{custom_clip_forward.11} parent=5 // pred_fallthru
      _
  $region6: #{custom_clip_forward.11} parent=0 // loop_footer
    %s23 = sadd.s32 1, %s19
  $region7: #{custom_clip_forward.11} parent=0 // loop_footer_branch
    %18 = sbr.rel target = $region3
  $region8: #{custom_clip_forward.11} parent=0 // loop_exit
    _

// kernel: custom_clip_forward.14
$region0: #{custom_clip_forward.14}
  #allocation0 [shape = 'u32[]', space=smem, size = 0x4, offset = 0x4, fixed_abs, tag = 'smem constant byte address 0x4 - core index']
  #allocation1 [shape = 'u32[72,128]{1,0:T(1,128)}', space=vmem, size = 0x9000, scoped, tag = 'internal scratch']
  %s0 = inlined_call_operand.vmem [shape: f32[10,64], index: 0, kind: input, shape index: {}]
  %s1 = inlined_call_operand.vmem [shape: f32[1,64], index: 1, kind: input, shape index: {}]
  %s2 = inlined_call_operand.vmem [shape: f32[1,64], index: 2, kind: input, shape index: {}]
  %s3 = inlined_call_operand.vmem [shape: f32[10,64], index: 3, kind: output, shape index: {}]
  %s4 = sld [smem:[#allocation0]]
  $region22: #{custom_clip_forward.14} parent=0
    _
  %s6 = ssub.s32 1, %s4
  %s7 = scalar_select 0, %s6, %s4
  // Predicated region
  $region2: #{custom_clip_forward.14} parent=0 // pred_check
    _
  $region3: #{custom_clip_forward.14} parent=0 // pred_check_branch
    %9 = sbr.rel (0) target = $region5
  $region4: #{custom_clip_forward.14} parent=0 // pred_region
    _
  $region5: #{custom_clip_forward.14} parent=0 // pred_fallthru
    _
  // Predicated region
  $region6: #{custom_clip_forward.14} parent=0 // pred_check
    _
  $region7: #{custom_clip_forward.14} parent=0 // pred_check_branch
    %11 = sbr.rel (0) target = $region9
  $region8: #{custom_clip_forward.14} parent=0 // pred_region
    _
  $region9: #{custom_clip_forward.14} parent=0 // pred_fallthru
    _
  // Predicated region
  $region10: #{custom_clip_forward.14} parent=0 // pred_check
    _
  $region11: #{custom_clip_forward.14} parent=0 // pred_check_branch
    %13 = sbr.rel (0) target = $region13
  $region12: #{custom_clip_forward.14} parent=0 // pred_region
    _
  $region13: #{custom_clip_forward.14} parent=0 // pred_fallthru
    _
  %v14 = vld [vmem:[%s0] sm:$0xff]
  %v15 = vld [vmem:[%s0 + $0x8] sm:$0x3]
  %vm16 = vcmask 523264
  %v17 = vsel %vm16, %v14, 0.0
  %18 = vadd.xlane.f32.xlu0 %v17
  %v19 = vpop.xlane.xlu0 %18
  %vm20 = vcmask 517120
  %v21 = vsel %vm20, %v15, 0.0
  %22 = vadd.xlane.f32.xlu0 %v21
  %v23 = vpop.xlane.xlu0 %22
  %v24 = vrcp.pop 64.0
  %v25 = vmul.f32 64.0, %v24
  %v26 = vsub.f32 1.0, %v25
  %v27 = vmul.f32 %v24, %v26
  %v28 = vadd.f32 %v24, %v27
  %vm29 = vweird.f32 %v24
  %v30 = vsel %vm29, %v24, %v28
  %v31 = vmul.f32 %v19, %v30
  %v32 = vmul.f32 %v23, %v30
  %v33 = vsub.f32 %v14, %v31
  %v34 = vsub.f32 %v15, %v32
  %v35 = vmul.f32 %v33, %v33
  %v36 = vmul.f32 %v34, %v34
  %v37 = vsel %vm16, %v35, 0.0
  %38 = vadd.xlane.f32.xlu0 %v37
  %v39 = vpop.xlane.xlu0 %38
  %v40 = vsel %vm20, %v36, 0.0
  %41 = vadd.xlane.f32.xlu0 %v40
  %v42 = vpop.xlane.xlu0 %41
  %v43 = vmul.f32 %v39, %v30
  %v44 = vmul.f32 %v42, %v30
  %v45 = vadd.f32 %v43, 1e-05
  %v46 = vadd.f32 %v44, 1e-05
  %v47 = vrsqrt.pop %v45
  %v48 = vmul.f32 %v47, %v45
  %v49 = vmul.f32 %v48, %v47
  %v50 = vmul.f32 0.5, %v49
  %v51 = vsub.f32 1.5, %v50
  %v52 = vmul.f32 %v47, %v51
  %vm53 = vweird.f32 %v45
  %vm54 = vweird.f32 %v47
  %vm55 = vmor %vm53, %vm54
  %v56 = vsel %vm55, %v47, %v52
  %v57 = vrsqrt.pop %v46
  %v58 = vmul.f32 %v57, %v46
  %v59 = vmul.f32 %v58, %v57
  %v60 = vmul.f32 0.5, %v59
  %v61 = vsub.f32 1.5, %v60
  %v62 = vmul.f32 %v57, %v61
  %vm63 = vweird.f32 %v46
  %vm64 = vweird.f32 %v57
  %vm65 = vmor %vm63, %vm64
  %v66 = vsel %vm65, %v57, %v62
  %v67 = vmul.f32 %v33, %v56
  %v68 = vmul.f32 %v34, %v66
  %v69 = vld [vmem:[%s1] sm:$0x1]
  %v71 = vperm.slane %v69, 0
  %v73 = vmul.f32 %v67, %v71
  %v74 = vmul.f32 %v68, %v71
  %v75 = vld [vmem:[%s2] sm:$0x1]
  %v77 = vperm.slane %v75, 0
  %v79 = vadd.f32 %v73, %v77
  %v80 = vadd.f32 %v74, %v77
  %81 = vst.msk [vmem:[%s3] sm:$0xff] %vm16, %v79
  %82 = vst.msk [vmem:[%s3 + $0x8] sm:$0x3] %vm20, %v80
  // Predicated region
  $region14: #{custom_clip_forward.14} parent=0 // pred_check
    _
  $region15: #{custom_clip_forward.14} parent=0 // pred_check_branch
    %84 = sbr.rel (0) target = $region17
  $region16: #{custom_clip_forward.14} parent=0 // pred_region
    _
  $region17: #{custom_clip_forward.14} parent=0 // pred_fallthru
    _
  // Predicated region
  $region18: #{custom_clip_forward.14} parent=0 // pred_check
    _
  $region19: #{custom_clip_forward.14} parent=0 // pred_check_branch
    %86 = sbr.rel (0) target = $region21
  $region20: #{custom_clip_forward.14} parent=0 // pred_region
    _
  $region21: #{custom_clip_forward.14} parent=0 // pred_fallthru
    _

// kernel: custom_clip_forward.15
$region0: #{custom_clip_forward.15}
  #allocation0 [shape = 'u32[]', space=smem, size = 0x4, offset = 0x4, fixed_abs, tag = 'smem constant byte address 0x4 - core index']
  #allocation1 [shape = 'u32[72,128]{1,0:T(1,128)}', space=vmem, size = 0x9000, scoped, tag = 'internal scratch']
  %s0 = inlined_call_operand.vmem [shape: f32[2,8,64], index: 0, kind: input, shape index: {}]
  %s1 = inlined_call_operand.vmem [shape: f32[1,64], index: 1, kind: input, shape index: {}]
  %s2 = inlined_call_operand.vmem [shape: f32[1,64], index: 2, kind: input, shape index: {}]
  %s3 = inlined_call_operand.vmem [shape: bf16[64,192], index: 3, kind: input, shape index: {}]
  %s4 = inlined_call_operand.vmem [shape: f32[1,192], index: 4, kind: input, shape index: {}]
  %s5 = inlined_call_operand.vmem [shape: bf16[64,64], index: 5, kind: input, shape index: {}]
  %s6 = inlined_call_operand.vmem [shape: f32[1,64], index: 6, kind: input, shape index: {}]
  %s7 = inlined_call_operand.vmem [shape: f32[1,64], index: 7, kind: input, shape index: {}]
  %s8 = inlined_call_operand.vmem [shape: f32[1,64], index: 8, kind: input, shape index: {}]
  %s9 = inlined_call_operand.vmem [shape: bf16[64,256], index: 9, kind: input, shape index: {}]
  %s10 = inlined_call_operand.vmem [shape: f32[1,256], index: 10, kind: input, shape index: {}]
  %s11 = inlined_call_operand.vmem [shape: bf16[256,64], index: 11, kind: input, shape index: {}]
  %s12 = inlined_call_operand.vmem [shape: f32[1,64], index: 12, kind: input, shape index: {}]
  %s13 = inlined_call_operand.vmem [shape: f32[2,8,64], index: 13, kind: output, shape index: {}]
  %s14 = sld [smem:[#allocation0]]
  $region85: #{custom_clip_forward.15} parent=0
    _
  %s16 = ssub.s32 1, %s14
  %s17 = scalar_select 0, %s16, %s14
  loop: start=0, step=1, limit=4
  $region2: #{custom_clip_forward.15} parent=0 // loop_pre_header
    _
  $region3: #{custom_clip_forward.15} parent=0 // loop_header
    %s19 = sphi 0, %s23
    %p20 = scmp.ge.s32.totalorder %s19, 4
    %s29 = sphi 0, %s31
    %s32 = sphi 0, %s29
    %s33 = sphi 0, %s32
    %s49 = sphi 0, %s33
    %s53 = sphi 0, %s53
    %s55 = sphi 0, %s53
    %s56 = sphi 0, %s55
    %s70 = sphi 0, %s56
    %s74 = sphi 0, %s74
    %s76 = sphi 0, %s74
    %s77 = sphi 0, %s76
    %s91 = sphi 0, %s77
    %s95 = sphi 0, %s95
    %s97 = sphi 0, %s95
    %s98 = sphi 0, %s97
    %s112 = sphi 0, %s98
    %s116 = sphi 0, %s116
    %s118 = sphi 0, %s116
    %s119 = sphi 0, %s118
    %s133 = sphi 0, %s119
    %s137 = sphi 0, %s137
    %s139 = sphi 0, %s137
    %s140 = sphi 0, %s139
    %s154 = sphi 0, %s140
    %s158 = sphi 0, %s158
    %s160 = sphi 0, %s158
    %s161 = sphi 0, %s160
    %s175 = sphi 0, %s161
    %s179 = sphi 0, %s179
    %s181 = sphi 0, %s179
    %s182 = sphi 0, %s181
    %s196 = sphi 0, %s182
    %s200 = sphi 0, %s200
    %s202 = sphi 0, %s200
    %s203 = sphi 0, %s202
    %s217 = sphi 0, %s203
    %s221 = sphi 0, %s221
    %s223 = sphi 0, %s221
    %s224 = sphi 0, %s223
    %s238 = sphi 0, %s224
    %s242 = sphi 0, %s242
    %s244 = sphi 0, %s242
    %s245 = sphi 0, %s244
    %s259 = sphi 0, %s245
    %s263 = sphi 0, %s263
    %s265 = sphi 0, %s263
    %s266 = sphi 0, %s265
    %s280 = sphi 0, %s266
    %s284 = sphi 0, %s284
    %s286 = sphi 0, %s284
    %s287 = sphi 0, %s286
    %s301 = sphi 0, %s287
    %s307 = sphi 0, %s309
    %s310 = sphi 0, %s307
    %s311 = sphi 0, %s310
    %s327 = sphi 0, %s311
  $region4: #{custom_clip_forward.15} parent=0 // loop_header_branch
    %22 = sbr.rel (%p20) target = $region8
  $region5: #{custom_clip_forward.15} parent=0 // loop_body
    %s24 = ssub.s32 %s19, 1
    %s25 = ssub.s32 %s19, 2
    %s26 = sadd.s32 %s19, 1
    %s27 = ssub.s32 %s19, %s26
    %p28 = scmp.eq.s32.totalorder %s27, 0
    %s30 = sadd.s32 %s29, 1
    %s31 = scalar_select %p28, %s29, %s30
    %p34 = pneg %p28
    %p35 = scmp.eq.s32.totalorder %s19, 1
    %p36 = por %p34, %p35
    %p37 = scmp.ne.s32.totalorder %s29, %s32
    %p38 = scmp.eq.s32.totalorder %s19, 0
    %p39 = por %p37, %p38
    %p40 = scmp.ne.s32.totalorder %s29, %s32
    %p41 = scmp.eq.s32.totalorder %s24, 1
    %p42 = por %p40, %p41
    %p43 = scmp.ne.s32.totalorder %s32, %s33
    %p44 = scmp.eq.s32.totalorder %s24, 0
    %p45 = por %p43, %p44
    %p46 = scmp.ne.s32.totalorder %s32, %s33
    %p47 = scmp.eq.s32.totalorder %s25, 1
    %p48 = por %p46, %p47
    %p50 = scmp.ne.s32.totalorder %s33, %s49
    %p51 = scmp.eq.s32.totalorder %s25, 0
    %p52 = por %p50, %p51
    %s54 = sadd.s32 %s53, 1
    %p57 = scmp.eq.s32.totalorder %s19, 1
    %p58 = scmp.ne.s32.totalorder %s53, %s55
    %p59 = scmp.eq.s32.totalorder %s19, 0
    %p60 = por %p58, %p59
    %p61 = scmp.ne.s32.totalorder %s53, %s55
    %p62 = scmp.eq.s32.totalorder %s24, 1
    %p63 = por %p61, %p62
    %p64 = scmp.ne.s32.totalorder %s55, %s56
    %p65 = scmp.eq.s32.totalorder %s24, 0
    %p66 = por %p64, %p65
    %p67 = scmp.ne.s32.totalorder %s55, %s56
    %p68 = scmp.eq.s32.totalorder %s25, 1
    %p69 = por %p67, %p68
    %p71 = scmp.ne.s32.totalorder %s56, %s70
    %p72 = scmp.eq.s32.totalorder %s25, 0
    %p73 = por %p71, %p72
    %s75 = sadd.s32 %s74, 1
    %p78 = scmp.eq.s32.totalorder %s19, 1
    %p79 = scmp.ne.s32.totalorder %s74, %s76
    %p80 = scmp.eq.s32.totalorder %s19, 0
    %p81 = por %p79, %p80
    %p82 = scmp.ne.s32.totalorder %s74, %s76
    %p83 = scmp.eq.s32.totalorder %s24, 1
    %p84 = por %p82, %p83
    %p85 = scmp.ne.s32.totalorder %s76, %s77
    %p86 = scmp.eq.s32.totalorder %s24, 0
    %p87 = por %p85, %p86
    %p88 = scmp.ne.s32.totalorder %s76, %s77
    %p89 = scmp.eq.s32.totalorder %s25, 1
    %p90 = por %p88, %p89
    %p92 = scmp.ne.s32.totalorder %s77, %s91
    %p93 = scmp.eq.s32.totalorder %s25, 0
    %p94 = por %p92, %p93
    %s96 = sadd.s32 %s95, 1
    %p99 = scmp.eq.s32.totalorder %s19, 1
    %p100 = scmp.ne.s32.totalorder %s95, %s97
    %p101 = scmp.eq.s32.totalorder %s19, 0
    %p102 = por %p100, %p101
    %p103 = scmp.ne.s32.totalorder %s95, %s97
    %p104 = scmp.eq.s32.totalorder %s24, 1
    %p105 = por %p103, %p104
    %p106 = scmp.ne.s32.totalorder %s97, %s98
    %p107 = scmp.eq.s32.totalorder %s24, 0
    %p108 = por %p106, %p107
    %p109 = scmp.ne.s32.totalorder %s97, %s98
    %p110 = scmp.eq.s32.totalorder %s25, 1
    %p111 = por %p109, %p110
    %p113 = scmp.ne.s32.totalorder %s98, %s112
    %p114 = scmp.eq.s32.totalorder %s25, 0
    %p115 = por %p113, %p114
    %s117 = sadd.s32 %s116, 1
    %p120 = scmp.eq.s32.totalorder %s19, 1
    %p121 = scmp.ne.s32.totalorder %s116, %s118
    %p122 = scmp.eq.s32.totalorder %s19, 0
    %p123 = por %p121, %p122
    %p124 = scmp.ne.s32.totalorder %s116, %s118
    %p125 = scmp.eq.s32.totalorder %s24, 1
    %p126 = por %p124, %p125
    %p127 = scmp.ne.s32.totalorder %s118, %s119
    %p128 = scmp.eq.s32.totalorder %s24, 0
    %p129 = por %p127, %p128
    %p130 = scmp.ne.s32.totalorder %s118, %s119
    %p131 = scmp.eq.s32.totalorder %s25, 1
    %p132 = por %p130, %p131
    %p134 = scmp.ne.s32.totalorder %s119, %s133
    %p135 = scmp.eq.s32.totalorder %s25, 0
    %p136 = por %p134, %p135
    %s138 = sadd.s32 %s137, 1
    %p141 = scmp.eq.s32.totalorder %s19, 1
    %p142 = scmp.ne.s32.totalorder %s137, %s139
    %p143 = scmp.eq.s32.totalorder %s19, 0
    %p144 = por %p142, %p143
    %p145 = scmp.ne.s32.totalorder %s137, %s139
    %p146 = scmp.eq.s32.totalorder %s24, 1
    %p147 = por %p145, %p146
    %p148 = scmp.ne.s32.totalorder %s139, %s140
    %p149 = scmp.eq.s32.totalorder %s24, 0
    %p150 = por %p148, %p149
    %p151 = scmp.ne.s32.totalorder %s139, %s140
    %p152 = scmp.eq.s32.totalorder %s25, 1
    %p153 = por %p151, %p152
    %p155 = scmp.ne.s32.totalorder %s140, %s154
    %p156 = scmp.eq.s32.totalorder %s25, 0
    %p157 = por %p155, %p156
    %s159 = sadd.s32 %s158, 1
    %p162 = scmp.eq.s32.totalorder %s19, 1
    %p163 = scmp.ne.s32.totalorder %s158, %s160
    %p164 = scmp.eq.s32.totalorder %s19, 0
    %p165 = por %p163, %p164
    %p166 = scmp.ne.s32.totalorder %s158, %s160
    %p167 = scmp.eq.s32.totalorder %s24, 1
    %p168 = por %p166, %p167
    %p169 = scmp.ne.s32.totalorder %s160, %s161
    %p170 = scmp.eq.s32.totalorder %s24, 0
    %p171 = por %p169, %p170
    %p172 = scmp.ne.s32.totalorder %s160, %s161
    %p173 = scmp.eq.s32.totalorder %s25, 1
    %p174 = por %p172, %p173
    %p176 = scmp.ne.s32.totalorder %s161, %s175
    %p177 = scmp.eq.s32.totalorder %s25, 0
    %p178 = por %p176, %p177
    %s180 = sadd.s32 %s179, 1
    %p183 = scmp.eq.s32.totalorder %s19, 1
    %p184 = scmp.ne.s32.totalorder %s179, %s181
    %p185 = scmp.eq.s32.totalorder %s19, 0
    %p186 = por %p184, %p185
    %p187 = scmp.ne.s32.totalorder %s179, %s181
    %p188 = scmp.eq.s32.totalorder %s24, 1
    %p189 = por %p187, %p188
    %p190 = scmp.ne.s32.totalorder %s181, %s182
    %p191 = scmp.eq.s32.totalorder %s24, 0
    %p192 = por %p190, %p191
    %p193 = scmp.ne.s32.totalorder %s181, %s182
    %p194 = scmp.eq.s32.totalorder %s25, 1
    %p195 = por %p193, %p194
    %p197 = scmp.ne.s32.totalorder %s182, %s196
    %p198 = scmp.eq.s32.totalorder %s25, 0
    %p199 = por %p197, %p198
    %s201 = sadd.s32 %s200, 1
    %p204 = scmp.eq.s32.totalorder %s19, 1
    %p205 = scmp.ne.s32.totalorder %s200, %s202
    %p206 = scmp.eq.s32.totalorder %s19, 0
    %p207 = por %p205, %p206
    %p208 = scmp.ne.s32.totalorder %s200, %s202
    %p209 = scmp.eq.s32.totalorder %s24, 1
    %p210 = por %p208, %p209
    %p211 = scmp.ne.s32.totalorder %s202, %s203
    %p212 = scmp.eq.s32.totalorder %s24, 0
    %p213 = por %p211, %p212
    %p214 = scmp.ne.s32.totalorder %s202, %s203
    %p215 = scmp.eq.s32.totalorder %s25, 1
    %p216 = por %p214, %p215
    %p218 = scmp.ne.s32.totalorder %s203, %s217
    %p219 = scmp.eq.s32.totalorder %s25, 0
    %p220 = por %p218, %p219
    %s222 = sadd.s32 %s221, 1
    %p225 = scmp.eq.s32.totalorder %s19, 1
    %p226 = scmp.ne.s32.totalorder %s221, %s223
    %p227 = scmp.eq.s32.totalorder %s19, 0
    %p228 = por %p226, %p227
    %p229 = scmp.ne.s32.totalorder %s221, %s223
    %p230 = scmp.eq.s32.totalorder %s24, 1
    %p231 = por %p229, %p230
    %p232 = scmp.ne.s32.totalorder %s223, %s224
    %p233 = scmp.eq.s32.totalorder %s24, 0
    %p234 = por %p232, %p233
    %p235 = scmp.ne.s32.totalorder %s223, %s224
    %p236 = scmp.eq.s32.totalorder %s25, 1
    %p237 = por %p235, %p236
    %p239 = scmp.ne.s32.totalorder %s224, %s238
    %p240 = scmp.eq.s32.totalorder %s25, 0
    %p241 = por %p239, %p240
    %s243 = sadd.s32 %s242, 1
    %p246 = scmp.eq.s32.totalorder %s19, 1
    %p247 = scmp.ne.s32.totalorder %s242, %s244
    %p248 = scmp.eq.s32.totalorder %s19, 0
    %p249 = por %p247, %p248
    %p250 = scmp.ne.s32.totalorder %s242, %s244
    %p251 = scmp.eq.s32.totalorder %s24, 1
    %p252 = por %p250, %p251
    %p253 = scmp.ne.s32.totalorder %s244, %s245
    %p254 = scmp.eq.s32.totalorder %s24, 0
    %p255 = por %p253, %p254
    %p256 = scmp.ne.s32.totalorder %s244, %s245
    %p257 = scmp.eq.s32.totalorder %s25, 1
    %p258 = por %p256, %p257
    %p260 = scmp.ne.s32.totalorder %s245, %s259
    %p261 = scmp.eq.s32.totalorder %s25, 0
    %p262 = por %p260, %p261
    %s264 = sadd.s32 %s263, 1
    %p267 = scmp.eq.s32.totalorder %s19, 1
    %p268 = scmp.ne.s32.totalorder %s263, %s265
    %p269 = scmp.eq.s32.totalorder %s19, 0
    %p270 = por %p268, %p269
    %p271 = scmp.ne.s32.totalorder %s263, %s265
    %p272 = scmp.eq.s32.totalorder %s24, 1
    %p273 = por %p271, %p272
    %p274 = scmp.ne.s32.totalorder %s265, %s266
    %p275 = scmp.eq.s32.totalorder %s24, 0
    %p276 = por %p274, %p275
    %p277 = scmp.ne.s32.totalorder %s265, %s266
    %p278 = scmp.eq.s32.totalorder %s25, 1
    %p279 = por %p277, %p278
    %p281 = scmp.ne.s32.totalorder %s266, %s280
    %p282 = scmp.eq.s32.totalorder %s25, 0
    %p283 = por %p281, %p282
    %s285 = sadd.s32 %s284, 1
    %p288 = scmp.eq.s32.totalorder %s19, 1
    %p289 = scmp.ne.s32.totalorder %s284, %s286
    %p290 = scmp.eq.s32.totalorder %s19, 0
    %p291 = por %p289, %p290
    %p292 = scmp.ne.s32.totalorder %s284, %s286
    %p293 = scmp.eq.s32.totalorder %s24, 1
    %p294 = por %p292, %p293
    %p295 = scmp.ne.s32.totalorder %s286, %s287
    %p296 = scmp.eq.s32.totalorder %s24, 0
    %p297 = por %p295, %p296
    %p298 = scmp.ne.s32.totalorder %s286, %s287
    %p299 = scmp.eq.s32.totalorder %s25, 1
    %p300 = por %p298, %p299
    %p302 = scmp.ne.s32.totalorder %s287, %s301
    %p303 = scmp.eq.s32.totalorder %s25, 0
    %p304 = por %p302, %p303
    %s305 = ssub.s32 %s19, %s26
    %p306 = scmp.eq.s32.totalorder %s305, 0
    %s308 = sadd.s32 %s307, 1
    %s309 = scalar_select %p306, %s307, %s308
    %p312 = pneg %p306
    %p313 = scmp.eq.s32.totalorder %s19, 1
    %p314 = por %p312, %p313
    %p315 = scmp.ne.s32.totalorder %s307, %s310
    %p316 = scmp.eq.s32.totalorder %s19, 0
    %p317 = por %p315, %p316
    %p318 = scmp.ne.s32.totalorder %s307, %s310
    %p319 = scmp.eq.s32.totalorder %s24, 1
    %p320 = por %p318, %p319
    %p321 = scmp.ne.s32.totalorder %s310, %s311
    %p322 = scmp.eq.s32.totalorder %s24, 0
    %p323 = por %p321, %p322
    %p324 = scmp.ne.s32.totalorder %s310, %s311
    %p325 = scmp.eq.s32.totalorder %s25, 1
    %p326 = por %p324, %p325
    %p328 = scmp.ne.s32.totalorder %s311, %s327
    %p329 = scmp.eq.s32.totalorder %s25, 0
    %p330 = por %p328, %p329
    %p331 = scmp.le.s32.totalorder 1, %s19
    %p332 = scmp.lt.s32.totalorder %s19, 3
    %p333 = pnand %p331, %p332
    %p334 = pneg %p333
    // Predicated region
    $region9: #{custom_clip_forward.15} parent=5 // pred_check
      _
    $region10: #{custom_clip_forward.15} parent=5 // pred_check_branch
      %336 = sbr.rel (%p333) target = $region12
    $region11: #{custom_clip_forward.15} parent=5 // pred_region
      %s337 = ssub.s32 %s19, 1
      // Predicated region
      $region13: #{custom_clip_forward.15} parent=11 // pred_check
        %p338 = pneg %p66
      $region14: #{custom_clip_forward.15} parent=11 // pred_check_branch
        %340 = sbr.rel (%p338) target = $region16
      $region15: #{custom_clip_forward.15} parent=11 // pred_region
        _
      $region16: #{custom_clip_forward.15} parent=11 // pred_fallthru
        _
      // Predicated region
      $region17: #{custom_clip_forward.15} parent=11 // pred_check
        %p341 = pneg %p87
      $region18: #{custom_clip_forward.15} parent=11 // pred_check_branch
        %343 = sbr.rel (%p341) target = $region20
      $region19: #{custom_clip_forward.15} parent=11 // pred_region
        _
      $region20: #{custom_clip_forward.15} parent=11 // pred_fallthru
        _
      // Predicated region
      $region21: #{custom_clip_forward.15} parent=11 // pred_check
        %p344 = pneg %p108
      $region22: #{custom_clip_forward.15} parent=11 // pred_check_branch
        %346 = sbr.rel (%p344) target = $region24
      $region23: #{custom_clip_forward.15} parent=11 // pred_region
        _
      $region24: #{custom_clip_forward.15} parent=11 // pred_fallthru
        _
      // Predicated region
      $region25: #{custom_clip_forward.15} parent=11 // pred_check
        %p347 = pneg %p129
      $region26: #{custom_clip_forward.15} parent=11 // pred_check_branch
        %349 = sbr.rel (%p347) target = $region28
      $region27: #{custom_clip_forward.15} parent=11 // pred_region
        _
      $region28: #{custom_clip_forward.15} parent=11 // pred_fallthru
        _
      // Predicated region
      $region29: #{custom_clip_forward.15} parent=11 // pred_check
        %p350 = pneg %p150
      $region30: #{custom_clip_forward.15} parent=11 // pred_check_branch
        %352 = sbr.rel (%p350) target = $region32
      $region31: #{custom_clip_forward.15} parent=11 // pred_region
        _
      $region32: #{custom_clip_forward.15} parent=11 // pred_fallthru
        _
      // Predicated region
      $region33: #{custom_clip_forward.15} parent=11 // pred_check
        %p353 = pneg %p171
      $region34: #{custom_clip_forward.15} parent=11 // pred_check_branch
        %355 = sbr.rel (%p353) target = $region36
      $region35: #{custom_clip_forward.15} parent=11 // pred_region
        _
      $region36: #{custom_clip_forward.15} parent=11 // pred_fallthru
        _
      // Predicated region
      $region37: #{custom_clip_forward.15} parent=11 // pred_check
        %p356 = pneg %p192
      $region38: #{custom_clip_forward.15} parent=11 // pred_check_branch
        %358 = sbr.rel (%p356) target = $region40
      $region39: #{custom_clip_forward.15} parent=11 // pred_region
        _
      $region40: #{custom_clip_forward.15} parent=11 // pred_fallthru
        _
      // Predicated region
      $region41: #{custom_clip_forward.15} parent=11 // pred_check
        %p359 = pneg %p213
      $region42: #{custom_clip_forward.15} parent=11 // pred_check_branch
        %361 = sbr.rel (%p359) target = $region44
      $region43: #{custom_clip_forward.15} parent=11 // pred_region
        _
      $region44: #{custom_clip_forward.15} parent=11 // pred_fallthru
        _
      // Predicated region
      $region45: #{custom_clip_forward.15} parent=11 // pred_check
        %p362 = pneg %p234
      $region46: #{custom_clip_forward.15} parent=11 // pred_check_branch
        %364 = sbr.rel (%p362) target = $region48
      $region47: #{custom_clip_forward.15} parent=11 // pred_region
        _
      $region48: #{custom_clip_forward.15} parent=11 // pred_fallthru
        _
      // Predicated region
      $region49: #{custom_clip_forward.15} parent=11 // pred_check
        %p365 = pneg %p255
      $region50: #{custom_clip_forward.15} parent=11 // pred_check_branch
        %367 = sbr.rel (%p365) target = $region52
      $region51: #{custom_clip_forward.15} parent=11 // pred_region
        _
      $region52: #{custom_clip_forward.15} parent=11 // pred_fallthru
        _
      // Predicated region
      $region53: #{custom_clip_forward.15} parent=11 // pred_check
        %p368 = pneg %p276
      $region54: #{custom_clip_forward.15} parent=11 // pred_check_branch
        %370 = sbr.rel (%p368) target = $region56
      $region55: #{custom_clip_forward.15} parent=11 // pred_region
        _
      $region56: #{custom_clip_forward.15} parent=11 // pred_fallthru
        _
      // Predicated region
      $region57: #{custom_clip_forward.15} parent=11 // pred_check
        %p371 = pneg %p297
      $region58: #{custom_clip_forward.15} parent=11 // pred_check_branch
        %373 = sbr.rel (%p371) target = $region60
      $region59: #{custom_clip_forward.15} parent=11 // pred_region
        _
      $region60: #{custom_clip_forward.15} parent=11 // pred_fallthru
        _
    $region12: #{custom_clip_forward.15} parent=5 // pred_fallthru
      _
    %p374 = scmp.lt.s32.totalorder %s19, 2
    // Predicated region
    $region61: #{custom_clip_forward.15} parent=5 // pred_check
      %p375 = pneg %p374
    $region62: #{custom_clip_forward.15} parent=5 // pred_check_branch
      %377 = sbr.rel (%p375) target = $region64
    $region63: #{custom_clip_forward.15} parent=5 // pred_region
      // Predicated region
      $region65: #{custom_clip_forward.15} parent=63 // pred_check
        %p378 = pneg %p39
      $region66: #{custom_clip_forward.15} parent=63 // pred_check_branch
        %380 = sbr.rel (%p378) target = $region68
      $region67: #{custom_clip_forward.15} parent=63 // pred_region
        %p381 = scmp.lt.s32.totalorder %s19, 1
        %s382 = scalar_select %p381, %s19, 1
        %s383 = smul.addr %s382, 8
        %s384 = scalar_lea.vmem %s0, %s383
      $region68: #{custom_clip_forward.15} parent=63 // pred_fallthru
        _
    $region64: #{custom_clip_forward.15} parent=5 // pred_fallthru
      _
    %p385 = scmp.le.s32.totalorder 1, %s19
    %p386 = scmp.lt.s32.totalorder %s19, 3
    %p387 = pnand %p385, %p386
    %p388 = pneg %p387
    // Predicated region
    $region69: #{custom_clip_forward.15} parent=5 // pred_check
      _
    $region70: #{custom_clip_forward.15} parent=5 // pred_check_branch
      %390 = sbr.rel (%p387) target = $region72
    $region71: #{custom_clip_forward.15} parent=5 // pred_region
      %s391 = ssub.s32 %s19, 1
      %p392 = scmp.lt.s32.totalorder %s24, 1
      %s393 = scalar_select %p392, %s24, 1
      %s394 = smul.addr %s393, 8
      %s395 = scalar_lea.vmem %s0, %s394
      %p396 = pneg %p45
      %p397 = pneg %p42
      %p398 = pneg %p66
      %p399 = pneg %p63
      %p400 = pneg %p87
      %p401 = pneg %p84
      %p402 = pneg %p108
      %p403 = pneg %p105
      %p404 = pneg %p129
      %p405 = pneg %p126
      %p406 = pneg %p150
      %p407 = pneg %p147
      %p408 = pneg %p171
      %p409 = pneg %p168
      %p410 = pneg %p192
      %p411 = pneg %p189
      %p412 = pneg %p213
      %p413 = pneg %p210
      %p414 = pneg %p234
      %p415 = pneg %p231
      %p416 = pneg %p255
      %p417 = pneg %p252
      %p418 = pneg %p276
      %p419 = pneg %p273
      %p420 = pneg %p297
      %p421 = pneg %p294
      %p422 = pneg %p323
      %p423 = pneg %p320
      %p424 = scmp.lt.s32.totalorder %s24, 1
      %s425 = scalar_select %p424, %s24, 1
      %s426 = smul.addr %s425, 8
      %s427 = scalar_lea.vmem %s13, %s426
      %p428 = scmp.lt.s32.totalorder %s24, 1
      %s429 = scalar_select %p428, %s24, 1
      %s430 = smul.addr %s429, 8
      %s431 = scalar_lea.vmem %s0, %s430
      %p432 = scmp.lt.s32.totalorder %s24, 1
      %s433 = scalar_select %p432, %s24, 1
      %s434 = smul.addr %s433, 8
      %s435 = scalar_lea.vmem %s13, %s434
      %v437 = vld [vmem:[%s431] sm:$0xff]
      %vm438 = vcmask 523264
      %v439 = vsel %vm438, %v437, 0.0
      %440 = vadd.xlane.f32.xlu0 %v439
      %v441 = vpop.xlane.xlu0 %440
      %v442 = vrcp.pop 64.0
      %v443 = vmul.f32 64.0, %v442
      %v444 = vsub.f32 1.0, %v443
      %v445 = vmul.f32 %v442, %v444
      %v446 = vadd.f32 %v442, %v445
      %vm447 = vweird.f32 %v442
      %v448 = vsel %vm447, %v442, %v446
      %v449 = vmul.f32 %v441, %v448
      %v450 = vsub.f32 %v437, %v449
      %v451 = vmul.f32 %v450, %v450
      %v452 = vsel %vm438, %v451, 0.0
      %453 = vadd.xlane.f32.xlu0 %v452
      %v454 = vpop.xlane.xlu0 %453
      %v455 = vmul.f32 %v454, %v448
      %v456 = vadd.f32 %v455, 1e-05
      %v457 = vrsqrt.pop %v456
      %v458 = vmul.f32 %v457, %v456
      %v459 = vmul.f32 %v458, %v457
      %v460 = vmul.f32 0.5, %v459
      %v461 = vsub.f32 1.5, %v460
      %v462 = vmul.f32 %v457, %v461
      %vm463 = vweird.f32 %v456
      %vm464 = vweird.f32 %v457
      %vm465 = vmor %vm463, %vm464
      %v466 = vsel %vm465, %v457, %v462
      %v467 = vmul.f32 %v450, %v466
      %v468 = vld [vmem:[%s1] sm:$0x1]
      %v470 = vperm.slane %v468, 0
      %v472 = vmul.f32 %v467, %v470
      %v473 = vld [vmem:[%s2] sm:$0x1]
      %v475 = vperm.slane %v473, 0
      %v477 = vadd.f32 %v472, %v475
      %v478 = vpack.c.bf16 %v477, %v477
      %v479 = vld [vmem:[%s3] sm:$0xff]
      %v480 = vld [vmem:[%s3 + $0x8] sm:$0xff]
      %v481 = vld [vmem:[%s3 + $0x10] sm:$0xff]
      %v482 = vld [vmem:[%s3 + $0x18] sm:$0xff]
      %v483 = vld [vmem:[%s3 + $0x20] sm:$0xff]
      %v484 = vld [vmem:[%s3 + $0x28] sm:$0xff]
      %v485 = vld [vmem:[%s3 + $0x30] sm:$0xff]
      %v486 = vld [vmem:[%s3 + $0x38] sm:$0xff]
      %v487 = vld [vmem:[%s4] sm:$0x3]
      %v489 = vperm.slane %v487, 0
      %v490 = vperm.slane %v487, 1
      %v501 = vunpack.c.l.b16 %v479
      %v502 = vunpack.c.h.b16 %v479
      %v503 = vunpack.c.l.b16 %v480
      %v504 = vunpack.c.h.b16 %v480
      %v505 = vunpack.c.l.b16 %v481
      %v506 = vunpack.c.h.b16 %v481
      %v507 = vunpack.c.l.b16 %v482
      %v508 = vunpack.c.h.b16 %v482
      %v509 = vunpack.c.l.b16 %v483
      %v510 = vunpack.c.h.b16 %v483
      %v511 = vunpack.c.l.b16 %v484
      %v512 = vunpack.c.h.b16 %v484
      %v513 = vunpack.c.l.b16 %v485
      %v514 = vunpack.c.h.b16 %v485
      %v515 = vunpack.c.l.b16 %v486
      %v516 = vunpack.c.h.b16 %v486
      %v517 = vpack.c.b16 %v503, %v501
      %v518 = vpack.c.b16 %v504, %v502
      %v519 = vpack.c.b16 %v507, %v505
      %v520 = vpack.c.b16 %v508, %v506
      %v521 = vpack.c.b16 %v511, %v509
      %v522 = vpack.c.b16 %v512, %v510
      %v523 = vpack.c.b16 %v515, %v513
      %v524 = vpack.c.b16 %v516, %v514
      %v534 = vsel %vm438, %v478, 0
      %536 = vmatpush.bf16.msra.mxu0 0
      %537 = vmatpush.bf16.msra.mxu0 0
      %538 = vmatpush.bf16.msra.mxu0 0
      %539 = vmatpush.bf16.msra.mxu0 0
      %540 = vmatpush.bf16.msra.mxu0 %v523
      %541 = vmatpush.bf16.msra.mxu0 %v521
      %542 = vmatpush.bf16.msra.mxu0 %v519
      %543 = vmatpush.bf16.msra.mxu0 %v517
      %544 = vmatmul.bf16.gmra.mxu0 %v534
      %v545 = vpop.f32.mrf.mxu0
      %v546 = vadd.f32 %v489, %v545
      %v547 = vpop.f32.mrf.mxu0
      %548 = vdwg.mxu0
      %549 = vmatpush.bf16.msra.mxu0 0
      %550 = vmatpush.bf16.msra.mxu0 0
      %551 = vmatpush.bf16.msra.mxu0 0
      %552 = vmatpush.bf16.msra.mxu0 0
      %553 = vmatpush.bf16.msra.mxu0 %v524
      %554 = vmatpush.bf16.msra.mxu0 %v522
      %555 = vmatpush.bf16.msra.mxu0 %v520
      %556 = vmatpush.bf16.msra.mxu0 %v518
      %557 = vmatmul.bf16.gmra.mxu0 %v534
      %v558 = vpop.f32.mrf.mxu0
      %v559 = vadd.f32 %v490, %v558
      %v560 = vpop.f32.mrf.mxu0
      %561 = vdwg.mxu0
      %v562 = vld [vmem:[%s5] sm:$0xf]
      %v563 = vld [vmem:[%s5 + $0x4] sm:$0xf]
      %v564 = vld [vmem:[%s5 + $0x8] sm:$0xf]
      %v565 = vld [vmem:[%s5 + $0xc] sm:$0xf]
      %v566 = vld [vmem:[%s5 + $0x10] sm:$0xf]
      %v567 = vld [vmem:[%s5 + $0x14] sm:$0xf]
      %v568 = vld [vmem:[%s5 + $0x18] sm:$0xf]
      %v569 = vld [vmem:[%s5 + $0x1c] sm:$0xf]
      %v570 = vpack.c.bf16 %v546, %v546
      %572 = vrot.lane.b32.xlu0 %v570, 64
      %v573 = vpop.permute.xlu0 %572
      %vm574 = vcmask 130048
      %v576 = vsel %vm574, %v570, 0
      %v579 = vsel %vm574, %v573, 0
      %581 = vmatpush.bf16.xpose.msra.mxu0 0
      %582 = vmatpush.bf16.xpose.msra.mxu0 0
      %583 = vmatpush.bf16.xpose.msra.mxu0 0
      %584 = vmatpush.bf16.xpose.msra.mxu0 0
      %585 = vmatpush.bf16.xpose.msra.mxu0 0
      %586 = vmatpush.bf16.xpose.msra.mxu0 0
      %587 = vmatpush.bf16.xpose.msra.mxu0 0
      %588 = vmatpush.bf16.xpose.msra.mxu0 %v579
      %589 = vmatmul.bf16.gmra.mxu0 %v576
      %v590 = vpop.f32.mrf.mxu0
      %v591 = vadd.f32 0.0, %v590
      %v592 = vpop.f32.mrf.mxu0
      %593 = vdwg.mxu0
      %v594 = vmul.f32 %v591, 0.25
      %vm595 = vcmask 64512
      %v596 = vsel %vm595, %v594, -inf
      %597 = vmax.xlane.f32.xlu0 %v596
      %v598 = vpop.xlane.xlu0 %597
      %v599 = vsub.f32 %v594, %v598
      %v600 = vmul.f32 %v599, 1.442695
      %v601 = vpow.pop %v600
      %v602 = vsel %vm595, %v601, 0.0
      %603 = vadd.xlane.f32.xlu0 %v602
      %v604 = vpop.xlane.xlu0 %603
      %v605 = vrcp.pop %v604
      %v606 = vmul.f32 %v601, %v605
      %v607 = vpack.c.bf16 %v606, %v606
      %v608 = vpack.c.bf16 %v559, %v559
      %v610 = vsel %vm595, %v607, 0
      %vm612 = vcmask 1043456
      %v614 = vsel %vm612, %v608, 0
      %616 = vmatpush.bf16.msra.mxu0 0
      %617 = vmatpush.bf16.msra.mxu0 0
      %618 = vmatpush.bf16.msra.mxu0 0
      %619 = vmatpush.bf16.msra.mxu0 0
      %620 = vmatpush.bf16.msra.mxu0 0
      %621 = vmatpush.bf16.msra.mxu0 0
      %622 = vmatpush.bf16.msra.mxu0 0
      %623 = vmatpush.bf16.msra.mxu0 %v614
      %624 = vmatmul.bf16.gmra.mxu0 %v610
      %v625 = vpop.f32.mrf.mxu0
      %v626 = vadd.f32 0.0, %v625
      %v627 = vpop.f32.mrf.mxu0
      %628 = vdwg.mxu0
      %v629 = vpack.c.bf16 %v626, %v626
      %630 = vrot.lane.b32.xlu0 %v570, 112
      %v631 = vpop.permute.xlu0 %630
      %632 = vrot.lane.b32.xlu0 %v570, 48
      %v633 = vpop.permute.xlu0 %632
      %v635 = vsel %vm574, %v631, 0
      %v638 = vsel %vm574, %v633, 0
      %640 = vmatpush.bf16.xpose.msra.mxu0 0
      %641 = vmatpush.bf16.xpose.msra.mxu0 0
      %642 = vmatpush.bf16.xpose.msra.mxu0 0
      %643 = vmatpush.bf16.xpose.msra.mxu0 0
      %644 = vmatpush.bf16.xpose.msra.mxu0 0
      %645 = vmatpush.bf16.xpose.msra.mxu0 0
      %646 = vmatpush.bf16.xpose.msra.mxu0 0
      %647 = vmatpush.bf16.xpose.msra.mxu0 %v638
      %648 = vmatmul.bf16.gmra.mxu0 %v635
      %v649 = vpop.f32.mrf.mxu0
      %v650 = vadd.f32 0.0, %v649
      %v651 = vpop.f32.mrf.mxu0
      %652 = vdwg.mxu0
      %v653 = vmul.f32 %v650, 0.25
      %v654 = vsel %vm595, %v653, -inf
      %655 = vmax.xlane.f32.xlu0 %v654
      %v656 = vpop.xlane.xlu0 %655
      %v657 = vsub.f32 %v653, %v656
      %v658 = vmul.f32 %v657, 1.442695
      %v659 = vpow.pop %v658
      %v660 = vsel %vm595, %v659, 0.0
      %661 = vadd.xlane.f32.xlu0 %v660
      %v662 = vpop.xlane.xlu0 %661
      %v663 = vrcp.pop %v662
      %v664 = vmul.f32 %v659, %v663
      %v665 = vpack.c.bf16 %v664, %v664
      %667 = vrot.lane.b32.xlu0 %v608, 112
      %v668 = vpop.permute.xlu0 %667
      %v670 = vsel %vm595, %v665, 0
      %v673 = vsel %vm612, %v668, 0
      %675 = vmatpush.bf16.msra.mxu0 0
      %676 = vmatpush.bf16.msra.mxu0 0
      %677 = vmatpush.bf16.msra.mxu0 0
      %678 = vmatpush.bf16.msra.mxu0 0
      %679 = vmatpush.bf16.msra.mxu0 0
      %680 = vmatpush.bf16.msra.mxu0 0
      %681 = vmatpush.bf16.msra.mxu0 0
      %682 = vmatpush.bf16.msra.mxu0 %v673
      %683 = vmatmul.bf16.gmra.mxu0 %v670
      %v684 = vpop.f32.mrf.mxu0
      %v685 = vadd.f32 0.0, %v684
      %v686 = vpop.f32.mrf.mxu0
      %687 = vdwg.mxu0
      %v688 = vpack.c.bf16 %v685, %v685
      %v691 = vunpack.c.l.b16 %v564
      %v692 = vunpack.c.l.b16 %v565
      %v693 = vpack.c.b16 %v692, %v691
      %v696 = vsel %vm574, %v688, 0
      %698 = vmatpush.bf16.msra.mxu0 0
      %699 = vmatpush.bf16.msra.mxu0 0
      %700 = vmatpush.bf16.msra.mxu0 0
      %701 = vmatpush.bf16.msra.mxu0 0
      %702 = vmatpush.bf16.msra.mxu0 0
      %703 = vmatpush.bf16.msra.mxu0 0
      %704 = vmatpush.bf16.msra.mxu0 0
      %705 = vmatpush.bf16.msra.mxu0 %v693
      %706 = vmatmul.bf16.gmra.mxu0 %v696
      %v707 = vpop.f32.mrf.mxu0
      %v708 = vadd.f32 0.0, %v707
      %v709 = vpop.f32.mrf.mxu0
      %710 = vdwg.mxu0
      %v713 = vunpack.c.l.b16 %v562
      %v714 = vunpack.c.l.b16 %v563
      %v715 = vpack.c.b16 %v714, %v713
      %v718 = vsel %vm574, %v629, 0
      %720 = vmatpush.bf16.msra.mxu0 0
      %721 = vmatpush.bf16.msra.mxu0 0
      %722 = vmatpush.bf16.msra.mxu0 0
      %723 = vmatpush.bf16.msra.mxu0 0
      %724 = vmatpush.bf16.msra.mxu0 0
      %725 = vmatpush.bf16.msra.mxu0 0
      %726 = vmatpush.bf16.msra.mxu0 0
      %727 = vmatpush.bf16.msra.mxu0 %v715
      %728 = vmatmul.bf16.gmra.mxu0 %v718
      %v729 = vpop.f32.mrf.mxu0
      %v730 = vadd.f32 %v708, %v729
      %v731 = vpop.f32.mrf.mxu0
      %732 = vdwg.mxu0
      %733 = vrot.lane.b32.xlu0 %v570, 96
      %v734 = vpop.permute.xlu0 %733
      %735 = vrot.lane.b32.xlu0 %v570, 32
      %v736 = vpop.permute.xlu0 %735
      %v738 = vsel %vm574, %v734, 0
      %v741 = vsel %vm574, %v736, 0
      %743 = vmatpush.bf16.xpose.msra.mxu0 0
      %744 = vmatpush.bf16.xpose.msra.mxu0 0
      %745 = vmatpush.bf16.xpose.msra.mxu0 0
      %746 = vmatpush.bf16.xpose.msra.mxu0 0
      %747 = vmatpush.bf16.xpose.msra.mxu0 0
      %748 = vmatpush.bf16.xpose.msra.mxu0 0
      %749 = vmatpush.bf16.xpose.msra.mxu0 0
      %750 = vmatpush.bf16.xpose.msra.mxu0 %v741
      %751 = vmatmul.bf16.gmra.mxu0 %v738
      %v752 = vpop.f32.mrf.mxu0
      %v753 = vadd.f32 0.0, %v752
      %v754 = vpop.f32.mrf.mxu0
      %755 = vdwg.mxu0
      %v756 = vmul.f32 %v753, 0.25
      %v757 = vsel %vm595, %v756, -inf
      %758 = vmax.xlane.f32.xlu0 %v757
      %v759 = vpop.xlane.xlu0 %758
      %v760 = vsub.f32 %v756, %v759
      %v761 = vmul.f32 %v760, 1.442695
      %v762 = vpow.pop %v761
      %v763 = vsel %vm595, %v762, 0.0
      %764 = vadd.xlane.f32.xlu0 %v763
      %v765 = vpop.xlane.xlu0 %764
      %v766 = vrcp.pop %v765
      %v767 = vmul.f32 %v762, %v766
      %v768 = vpack.c.bf16 %v767, %v767
      %769 = vrot.lane.b32.xlu0 %v608, 96
      %v770 = vpop.permute.xlu0 %769
      %v772 = vsel %vm595, %v768, 0
      %v775 = vsel %vm612, %v770, 0
      %777 = vmatpush.bf16.msra.mxu0 0
      %778 = vmatpush.bf16.msra.mxu0 0
      %779 = vmatpush.bf16.msra.mxu0 0
      %780 = vmatpush.bf16.msra.mxu0 0
      %781 = vmatpush.bf16.msra.mxu0 0
      %782 = vmatpush.bf16.msra.mxu0 0
      %783 = vmatpush.bf16.msra.mxu0 0
      %784 = vmatpush.bf16.msra.mxu0 %v775
      %785 = vmatmul.bf16.gmra.mxu0 %v772
      %v786 = vpop.f32.mrf.mxu0
      %v787 = vadd.f32 0.0, %v786
      %v788 = vpop.f32.mrf.mxu0
      %789 = vdwg.mxu0
      %v790 = vpack.c.bf16 %v787, %v787
      %v793 = vunpack.c.l.b16 %v566
      %v794 = vunpack.c.l.b16 %v567
      %v795 = vpack.c.b16 %v794, %v793
      %v798 = vsel %vm574, %v790, 0
      %800 = vmatpush.bf16.msra.mxu0 0
      %801 = vmatpush.bf16.msra.mxu0 0
      %802 = vmatpush.bf16.msra.mxu0 0
      %803 = vmatpush.bf16.msra.mxu0 0
      %804 = vmatpush.bf16.msra.mxu0 0
      %805 = vmatpush.bf16.msra.mxu0 0
      %806 = vmatpush.bf16.msra.mxu0 0
      %807 = vmatpush.bf16.msra.mxu0 %v795
      %808 = vmatmul.bf16.gmra.mxu0 %v798
      %v809 = vpop.f32.mrf.mxu0
      %v810 = vadd.f32 0.0, %v809
      %v811 = vpop.f32.mrf.mxu0
      %812 = vdwg.mxu0
      %v813 = vadd.f32 %v730, %v810
      %814 = vrot.lane.b32.xlu0 %v570, 80
      %v815 = vpop.permute.xlu0 %814
      %816 = vrot.lane.b32.xlu0 %v570, 16
      %v817 = vpop.permute.xlu0 %816
      %v819 = vsel %vm574, %v815, 0
      %v822 = vsel %vm574, %v817, 0
      %824 = vmatpush.bf16.xpose.msra.mxu0 0
      %825 = vmatpush.bf16.xpose.msra.mxu0 0
      %826 = vmatpush.bf16.xpose.msra.mxu0 0
      %827 = vmatpush.bf16.xpose.msra.mxu0 0
      %828 = vmatpush.bf16.xpose.msra.mxu0 0
      %829 = vmatpush.bf16.xpose.msra.mxu0 0
      %830 = vmatpush.bf16.xpose.msra.mxu0 0
      %831 = vmatpush.bf16.xpose.msra.mxu0 %v822
      %832 = vmatmul.bf16.gmra.mxu0 %v819
      %v833 = vpop.f32.mrf.mxu0
      %v834 = vadd.f32 0.0, %v833
      %v835 = vpop.f32.mrf.mxu0
      %836 = vdwg.mxu0
      %v837 = vmul.f32 %v834, 0.25
      %v838 = vsel %vm595, %v837, -inf
      %839 = vmax.xlane.f32.xlu0 %v838
      %v840 = vpop.xlane.xlu0 %839
      %v841 = vsub.f32 %v837, %v840
      %v842 = vmul.f32 %v841, 1.442695
      %v843 = vpow.pop %v842
      %v844 = vsel %vm595, %v843, 0.0
      %845 = vadd.xlane.f32.xlu0 %v844
      %v846 = vpop.xlane.xlu0 %845
      %v847 = vrcp.pop %v846
      %v848 = vmul.f32 %v843, %v847
      %v849 = vpack.c.bf16 %v848, %v848
      %850 = vrot.lane.b32.xlu0 %v608, 80
      %v851 = vpop.permute.xlu0 %850
      %v853 = vsel %vm595, %v849, 0
      %v856 = vsel %vm612, %v851, 0
      %858 = vmatpush.bf16.msra.mxu0 0
      %859 = vmatpush.bf16.msra.mxu0 0
      %860 = vmatpush.bf16.msra.mxu0 0
      %861 = vmatpush.bf16.msra.mxu0 0
      %862 = vmatpush.bf16.msra.mxu0 0
      %863 = vmatpush.bf16.msra.mxu0 0
      %864 = vmatpush.bf16.msra.mxu0 0
      %865 = vmatpush.bf16.msra.mxu0 %v856
      %866 = vmatmul.bf16.gmra.mxu0 %v853
      %v867 = vpop.f32.mrf.mxu0
      %v868 = vadd.f32 0.0, %v867
      %v869 = vpop.f32.mrf.mxu0
      %870 = vdwg.mxu0
      %v871 = vpack.c.bf16 %v868, %v868
      %v874 = vunpack.c.l.b16 %v568
      %v875 = vunpack.c.l.b16 %v569
      %v876 = vpack.c.b16 %v875, %v874
      %v879 = vsel %vm574, %v871, 0
      %881 = vmatpush.bf16.msra.mxu0 0
      %882 = vmatpush.bf16.msra.mxu0 0
      %883 = vmatpush.bf16.msra.mxu0 0
      %884 = vmatpush.bf16.msra.mxu0 0
      %885 = vmatpush.bf16.msra.mxu0 0
      %886 = vmatpush.bf16.msra.mxu0 0
      %887 = vmatpush.bf16.msra.mxu0 0
      %888 = vmatpush.bf16.msra.mxu0 %v876
      %889 = vmatmul.bf16.gmra.mxu0 %v879
      %v890 = vpop.f32.mrf.mxu0
      %v891 = vadd.f32 0.0, %v890
      %v892 = vpop.f32.mrf.mxu0
      %893 = vdwg.mxu0
      %v894 = vadd.f32 %v813, %v891
      %v895 = vadd.f32 %v437, %v894
      %v896 = vld [vmem:[%s6] sm:$0x1]
      %v898 = vperm.slane %v896, 0
      %v900 = vadd.f32 %v895, %v898
      %v901 = vsel %vm438, %v900, 0.0
      %902 = vadd.xlane.f32.xlu0 %v901
      %v903 = vpop.xlane.xlu0 %902
      %v904 = vmul.f32 %v903, %v448
      %v905 = vsub.f32 %v900, %v904
      %v906 = vmul.f32 %v905, %v905
      %v907 = vsel %vm438, %v906, 0.0
      %908 = vadd.xlane.f32.xlu0 %v907
      %v909 = vpop.xlane.xlu0 %908
      %v910 = vmul.f32 %v909, %v448
      %v911 = vadd.f32 %v910, 1e-05
      %v912 = vrsqrt.pop %v911
      %v913 = vmul.f32 %v912, %v911
      %v914 = vmul.f32 %v913, %v912
      %v915 = vmul.f32 0.5, %v914
      %v916 = vsub.f32 1.5, %v915
      %v917 = vmul.f32 %v912, %v916
      %vm918 = vweird.f32 %v911
      %vm919 = vweird.f32 %v912
      %vm920 = vmor %vm918, %vm919
      %v921 = vsel %vm920, %v912, %v917
      %v922 = vmul.f32 %v905, %v921
      %v923 = vld [vmem:[%s7] sm:$0x1]
      %v925 = vperm.slane %v923, 0
      %v927 = vmul.f32 %v922, %v925
      %v928 = vld [vmem:[%s8] sm:$0x1]
      %v930 = vperm.slane %v928, 0
      %v932 = vadd.f32 %v927, %v930
      %v933 = vpack.c.bf16 %v932, %v932
      %v934 = vld [vmem:[%s9] sm:$0xff]
      %v935 = vld [vmem:[%s9 + $0x8] sm:$0xff]
      %v936 = vld [vmem:[%s9 + $0x10] sm:$0xff]
      %v937 = vld [vmem:[%s9 + $0x18] sm:$0xff]
      %v938 = vld [vmem:[%s9 + $0x20] sm:$0xff]
      %v939 = vld [vmem:[%s9 + $0x28] sm:$0xff]
      %v940 = vld [vmem:[%s9 + $0x30] sm:$0xff]
      %v941 = vld [vmem:[%s9 + $0x38] sm:$0xff]
      %v942 = vld [vmem:[%s10] sm:$0x3]
      %v944 = vperm.slane %v942, 0
      %v945 = vperm.slane %v942, 1
      %v956 = vunpack.c.l.b16 %v934
      %v957 = vunpack.c.h.b16 %v934
      %v958 = vunpack.c.l.b16 %v935
      %v959 = vunpack.c.h.b16 %v935
      %v960 = vunpack.c.l.b16 %v936
      %v961 = vunpack.c.h.b16 %v936
      %v962 = vunpack.c.l.b16 %v937
      %v963 = vunpack.c.h.b16 %v937
      %v964 = vunpack.c.l.b16 %v938
      %v965 = vunpack.c.h.b16 %v938
      %v966 = vunpack.c.l.b16 %v939
      %v967 = vunpack.c.h.b16 %v939
      %v968 = vunpack.c.l.b16 %v940
      %v969 = vunpack.c.h.b16 %v940
      %v970 = vunpack.c.l.b16 %v941
      %v971 = vunpack.c.h.b16 %v941
      %v972 = vpack.c.b16 %v958, %v956
      %v973 = vpack.c.b16 %v959, %v957
      %v974 = vpack.c.b16 %v962, %v960
      %v975 = vpack.c.b16 %v963, %v961
      %v976 = vpack.c.b16 %v966, %v964
      %v977 = vpack.c.b16 %v967, %v965
      %v978 = vpack.c.b16 %v970, %v968
      %v979 = vpack.c.b16 %v971, %v969
      %v989 = vsel %vm438, %v933, 0
      %991 = vmatpush.bf16.msra.mxu0 0
      %992 = vmatpush.bf16.msra.mxu0 0
      %993 = vmatpush.bf16.msra.mxu0 0
      %994 = vmatpush.bf16.msra.mxu0 0
      %995 = vmatpush.bf16.msra.mxu0 %v978
      %996 = vmatpush.bf16.msra.mxu0 %v976
      %997 = vmatpush.bf16.msra.mxu0 %v974
      %998 = vmatpush.bf16.msra.mxu0 %v972
      %999 = vmatmul.bf16.gmra.mxu0 %v989
      %v1000 = vpop.f32.mrf.mxu0
      %v1001 = vadd.f32 %v944, %v1000
      %v1002 = vpop.f32.mrf.mxu0
      %1003 = vdwg.mxu0
      %1004 = vmatpush.bf16.msra.mxu0 0
      %1005 = vmatpush.bf16.msra.mxu0 0
      %1006 = vmatpush.bf16.msra.mxu0 0
      %1007 = vmatpush.bf16.msra.mxu0 0
      %1008 = vmatpush.bf16.msra.mxu0 %v979
      %1009 = vmatpush.bf16.msra.mxu0 %v977
      %1010 = vmatpush.bf16.msra.mxu0 %v975
      %1011 = vmatpush.bf16.msra.mxu0 %v973
      %1012 = vmatmul.bf16.gmra.mxu0 %v989
      %v1013 = vpop.f32.mrf.mxu0
      %v1014 = vadd.f32 %v945, %v1013
      %v1015 = vpop.f32.mrf.mxu0
      %1016 = vdwg.mxu0
      %v1017 = vmul.f32 %v1001, 1.702
      %v1018 = vmul.f32 %v1014, 1.702
      %v1019 = vxor.u32 %v1017, 2147483648
      %v1020 = vxor.u32 %v1018, 2147483648
      %v1021 = vmul.f32 %v1019, 1.442695
      %v1022 = vpow.pop %v1021
      %v1023 = vmul.f32 %v1020, 1.442695
      %v1024 = vpow.pop %v1023
      %v1025 = vadd.f32 %v1022, 1.0
      %v1026 = vadd.f32 %v1024, 1.0
      %v1027 = vrcp.pop %v1025
      %v1028 = vmul.f32 %v1025, %v1027
      %v1029 = vsub.f32 1.0, %v1028
      %v1030 = vmul.f32 %v1027, %v1029
      %v1031 = vadd.f32 %v1027, %v1030
      %vm1032 = vweird.f32 %v1025
      %vm1033 = vweird.f32 %v1027
      %vm1034 = vmor %vm1032, %vm1033
      %v1035 = vsel %vm1034, %v1027, %v1031
      %v1036 = vand.u32 2147483647, %v1025
      %vm1037 = vcmp.eq.f32.partialorder %v1036, 8.507059e+37
      %v1038 = vand.u32 %v1025, 2147483648
      %v1039 = vor.u32 1.1754944e-38, %v1038
      %v1040 = vsel %vm1037, %v1039, %v1035
      %v1041 = vmul.f32 1.0, %v1040
      %v1042 = vrcp.pop %v1026
      %v1043 = vmul.f32 %v1026, %v1042
      %v1044 = vsub.f32 1.0, %v1043
      %v1045 = vmul.f32 %v1042, %v1044
      %v1046 = vadd.f32 %v1042, %v1045
      %vm1047 = vweird.f32 %v1026
      %vm1048 = vweird.f32 %v1042
      %vm1049 = vmor %vm1047, %vm1048
      %v1050 = vsel %vm1049, %v1042, %v1046
      %v1051 = vand.u32 2147483647, %v1026
      %vm1052 = vcmp.eq.f32.partialorder %v1051, 8.507059e+37
      %v1053 = vand.u32 %v1026, 2147483648
      %v1054 = vor.u32 1.1754944e-38, %v1053
      %v1055 = vsel %vm1052, %v1054, %v1050
      %v1056 = vmul.f32 1.0, %v1055
      %v1057 = vmul.f32 %v1001, %v1041
      %v1058 = vmul.f32 %v1014, %v1056
      %v1059 = vpack.c.bf16 %v1057, %v1057
      %v1060 = vpack.c.bf16 %v1058, %v1058
      %v1061 = vld [vmem:[%s11] sm:$0xf]
      %v1062 = vld [vmem:[%s11 + $0x4] sm:$0xf]
      %v1063 = vld [vmem:[%s11 + $0x8] sm:$0xf]
      %v1064 = vld [vmem:[%s11 + $0xc] sm:$0xf]
      %v1065 = vld [vmem:[%s11 + $0x10] sm:$0xf]
      %v1066 = vld [vmem:[%s11 + $0x14] sm:$0xf]
      %v1067 = vld [vmem:[%s11 + $0x18] sm:$0xf]
      %v1068 = vld [vmem:[%s11 + $0x1c] sm:$0xf]
      %v1069 = vld [vmem:[%s11 + $0x20] sm:$0xf]
      %v1070 = vld [vmem:[%s11 + $0x24] sm:$0xf]
      %v1071 = vld [vmem:[%s11 + $0x28] sm:$0xf]
      %v1072 = vld [vmem:[%s11 + $0x2c] sm:$0xf]
      %v1073 = vld [vmem:[%s11 + $0x30] sm:$0xf]
      %v1074 = vld [vmem:[%s11 + $0x34] sm:$0xf]
      %v1075 = vld [vmem:[%s11 + $0x38] sm:$0xf]
      %v1076 = vld [vmem:[%s11 + $0x3c] sm:$0xf]
      %v1077 = vld [vmem:[%s11 + $0x40] sm:$0xf]
      %v1078 = vld [vmem:[%s11 + $0x44] sm:$0xf]
      %v1079 = vld [vmem:[%s11 + $0x48] sm:$0xf]
      %v1080 = vld [vmem:[%s11 + $0x4c] sm:$0xf]
      %v1081 = vld [vmem:[%s11 + $0x50] sm:$0xf]
      %v1082 = vld [vmem:[%s11 + $0x54] sm:$0xf]
      %v1083 = vld [vmem:[%s11 + $0x58] sm:$0xf]
      %v1084 = vld [vmem:[%s11 + $0x5c] sm:$0xf]
      %v1085 = vld [vmem:[%s11 + $0x60] sm:$0xf]
      %v1086 = vld [vmem:[%s11 + $0x64] sm:$0xf]
      %v1087 = vld [vmem:[%s11 + $0x68] sm:$0xf]
      %v1088 = vld [vmem:[%s11 + $0x6c] sm:$0xf]
      %v1089 = vld [vmem:[%s11 + $0x70] sm:$0xf]
      %v1090 = vld [vmem:[%s11 + $0x74] sm:$0xf]
      %v1091 = vld [vmem:[%s11 + $0x78] sm:$0xf]
      %v1092 = vld [vmem:[%s11 + $0x7c] sm:$0xf]
      %v1093 = vld [vmem:[%s12] sm:$0x1]
      %v1095 = vperm.slane %v1093, 0
      %v1129 = vunpack.c.l.b16 %v1061
      %v1130 = vunpack.c.l.b16 %v1062
      %v1131 = vunpack.c.l.b16 %v1063
      %v1132 = vunpack.c.l.b16 %v1064
      %v1133 = vunpack.c.l.b16 %v1065
      %v1134 = vunpack.c.l.b16 %v1066
      %v1135 = vunpack.c.l.b16 %v1067
      %v1136 = vunpack.c.l.b16 %v1068
      %v1137 = vunpack.c.l.b16 %v1069
      %v1138 = vunpack.c.l.b16 %v1070
      %v1139 = vunpack.c.l.b16 %v1071
      %v1140 = vunpack.c.l.b16 %v1072
      %v1141 = vunpack.c.l.b16 %v1073
      %v1142 = vunpack.c.l.b16 %v1074
      %v1143 = vunpack.c.l.b16 %v1075
      %v1144 = vunpack.c.l.b16 %v1076
      %v1145 = vunpack.c.l.b16 %v1077
      %v1146 = vunpack.c.l.b16 %v1078
      %v1147 = vunpack.c.l.b16 %v1079
      %v1148 = vunpack.c.l.b16 %v1080
      %v1149 = vunpack.c.l.b16 %v1081
      %v1150 = vunpack.c.l.b16 %v1082
      %v1151 = vunpack.c.l.b16 %v1083
      %v1152 = vunpack.c.l.b16 %v1084
      %v1153 = vunpack.c.l.b16 %v1085
      %v1154 = vunpack.c.l.b16 %v1086
      %v1155 = vunpack.c.l.b16 %v1087
      %v1156 = vunpack.c.l.b16 %v1088
      %v1157 = vunpack.c.l.b16 %v1089
      %v1158 = vunpack.c.l.b16 %v1090
      %v1159 = vunpack.c.l.b16 %v1091
      %v1160 = vunpack.c.l.b16 %v1092
      %v1161 = vpack.c.b16 %v1130, %v1129
      %v1162 = vpack.c.b16 %v1132, %v1131
      %v1163 = vpack.c.b16 %v1134, %v1133
      %v1164 = vpack.c.b16 %v1136, %v1135
      %v1165 = vpack.c.b16 %v1138, %v1137
      %v1166 = vpack.c.b16 %v1140, %v1139
      %v1167 = vpack.c.b16 %v1142, %v1141
      %v1168 = vpack.c.b16 %v1144, %v1143
      %v1169 = vpack.c.b16 %v1146, %v1145
      %v1170 = vpack.c.b16 %v1148, %v1147
      %v1171 = vpack.c.b16 %v1150, %v1149
      %v1172 = vpack.c.b16 %v1152, %v1151
      %v1173 = vpack.c.b16 %v1154, %v1153
      %v1174 = vpack.c.b16 %v1156, %v1155
      %v1175 = vpack.c.b16 %v1158, %v1157
      %v1176 = vpack.c.b16 %v1160, %v1159
      %1193 = vmatpush.bf16.msra.mxu0 %v1168
      %1194 = vmatpush.bf16.msra.mxu0 %v1167
      %1195 = vmatpush.bf16.msra.mxu0 %v1166
      %1196 = vmatpush.bf16.msra.mxu0 %v1165
      %1197 = vmatpush.bf16.msra.mxu0 %v1164
      %1198 = vmatpush.bf16.msra.mxu0 %v1163
      %1199 = vmatpush.bf16.msra.mxu0 %v1162
      %1200 = vmatpush.bf16.msra.mxu0 %v1161
      %1201 = vmatmul.bf16.gmra.mxu0 %v1059
      %v1202 = vpop.f32.mrf.mxu0
      %v1203 = vadd.f32 %v1095, %v1202
      %v1204 = vpop.f32.mrf.mxu0
      %1205 = vdwg.mxu0
      %1206 = vmatpush.bf16.msra.mxu0 %v1176
      %1207 = vmatpush.bf16.msra.mxu0 %v1175
      %1208 = vmatpush.bf16.msra.mxu0 %v1174
      %1209 = vmatpush.bf16.msra.mxu0 %v1173
      %1210 = vmatpush.bf16.msra.mxu0 %v1172
      %1211 = vmatpush.bf16.msra.mxu0 %v1171
      %1212 = vmatpush.bf16.msra.mxu0 %v1170
      %1213 = vmatpush.bf16.msra.mxu0 %v1169
      %1214 = vmatmul.bf16.gmra.mxu0 %v1060
      %v1215 = vpop.f32.mrf.mxu0
      %v1216 = vadd.f32 %v1203, %v1215
      %v1217 = vpop.f32.mrf.mxu0
      %1218 = vdwg.mxu0
      %v1219 = vadd.f32 %v900, %v1216
      %1220 = vst.msk [vmem:[%s435] sm:$0xff] %vm438, %v1219
      %p1221 = scmp.lt.s32.totalorder %s24, 1
      %s1222 = scalar_select %p1221, %s24, 1
      %s1223 = smul.addr %s1222, 8
      %s1224 = scalar_lea.vmem %s13, %s1223
      // Predicated region
      $region73: #{custom_clip_forward.15} parent=71 // pred_check
        %p1225 = pneg %p320
      $region74: #{custom_clip_forward.15} parent=71 // pred_check_branch
        %1227 = sbr.rel (%p1225) target = $region76
      $region75: #{custom_clip_forward.15} parent=71 // pred_region
        _
      $region76: #{custom_clip_forward.15} parent=71 // pred_fallthru
        _
    $region72: #{custom_clip_forward.15} parent=5 // pred_fallthru
      _
    %p1228 = scmp.le.s32.totalorder 2, %s19
    // Predicated region
    $region77: #{custom_clip_forward.15} parent=5 // pred_check
      %p1229 = pneg %p1228
    $region78: #{custom_clip_forward.15} parent=5 // pred_check_branch
      %1231 = sbr.rel (%p1229) target = $region80
    $region79: #{custom_clip_forward.15} parent=5 // pred_region
      %s1232 = ssub.s32 %s19, 2
      // Predicated region
      $region81: #{custom_clip_forward.15} parent=79 // pred_check
        %p1233 = pneg %p326
      $region82: #{custom_clip_forward.15} parent=79 // pred_check_branch
        %1235 = sbr.rel (%p1233) target = $region84
      $region83: #{custom_clip_forward.15} parent=79 // pred_region
        %p1236 = scmp.lt.s32.totalorder %s25, 1
        %s1237 = scalar_select %p1236, %s25, 1
        %s1238 = smul.addr %s1237, 8
        %s1239 = scalar_lea.vmem %s13, %s1238
      $region84: #{custom_clip_forward.15} parent=79 // pred_fallthru
        _
    $region80: #{custom_clip_forward.15} parent=5 // pred_fallthru
      _
  $region6: #{custom_clip_forward.15} parent=0 // loop_footer
    %s23 = sadd.s32 1, %s19
  $region7: #{custom_clip_forward.15} parent=0 // loop_footer_branch
    %18 = sbr.rel target = $region3
  $region8: #{custom_clip_forward.15} parent=0 // loop_exit
    _

// kernel: custom_clip_forward.17
$region0: #{custom_clip_forward.17}
  #allocation0 [shape = 'u32[]', space=smem, size = 0x4, offset = 0x4, fixed_abs, tag = 'smem constant byte address 0x4 - core index']
  #allocation1 [shape = 'u32[72,128]{1,0:T(1,128)}', space=vmem, size = 0x9000, scoped, tag = 'internal scratch']
  #allocation2 [shape = 's32[1]{0}', space=sflag, size = 0x4, scoped, tag = 'scoped memory for custom_clip_forward.17']
  #allocation3 [shape = 'u8[512]{0}', space=smem, size = 0x200, scoped, tag = 'prefetched SMEM operand 0']
  #allocation4 [shape = 'f32[1,1]{1,0:T(1,128)S(1)}', space=vmem, size = 0x200, scoped, tag = 'scoped memory for custom_clip_forward.17']
  %s0 = inlined_call_operand.vmem [shape: s32[4], index: 0, kind: input, shape index: {}]
  %s1 = inlined_call_operand.vmem [shape: f32[4,16,64], index: 1, kind: input, shape index: {}]
  %s2 = inlined_call_operand.vmem [shape: f32[1,64], index: 2, kind: input, shape index: {}]
  %s3 = inlined_call_operand.vmem [shape: f32[1,64], index: 3, kind: input, shape index: {}]
  %s4 = inlined_call_operand.vmem [shape: bf16[64,32], index: 4, kind: input, shape index: {}]
  %s5 = inlined_call_operand.vmem [shape: f32[2,64], index: 5, kind: input, shape index: {}]
  %s6 = inlined_call_operand.vmem [shape: f32[1,64], index: 6, kind: input, shape index: {}]
  %s7 = inlined_call_operand.vmem [shape: f32[1,64], index: 7, kind: input, shape index: {}]
  %s8 = inlined_call_operand.vmem [shape: bf16[64,32], index: 8, kind: input, shape index: {}]
  %s9 = inlined_call_operand.<no memory space> [shape: f32[1,1], index: 9, kind: input, shape index: {}]
  %s10 = inlined_call_operand.hbm [shape: f32[2,4], index: 10, kind: output, shape index: {0}]
  %s11 = inlined_call_operand.hbm [shape: f32[2,32], index: 11, kind: output, shape index: {1}]
  %s12 = inlined_call_operand.hbm [shape: f32[4,32], index: 12, kind: output, shape index: {2}]
  %13 = xla_tuple %s10, %s11, %s12
  %s14 = sld [smem:[#allocation0]]
  $region62: #{custom_clip_forward.17} parent=0
    _
  %s16 = ssub.s32 1, %s14
  %s17 = scalar_select 0, %s16, %s14
  %s19 = sshll.u32 %s0, 4
  %s20 = int_to_ptr.vmem [resolvable:$true] %s19
  %22 = dma.vmem_to_smem %s20, 16, [#allocation3], [#allocation2]
  %v23 = vstv %s9
  %24 = vst [vmem:[#allocation4] sm:$0x1] %v23
  %26 = dma.done [#allocation2], 16
  %27 = sfence
  $region1: #{custom_clip_forward.17} parent=0
    #allocation5 [shape = 'u8[1024]{0}', space=vmem, size = 0x400, scoped, tag = 'output window, operand 0, single buffered']
    #allocation6 [shape = 's32[1]{0}', space=sflag, size = 0x4, scoped, tag = 'scoped memory for custom_clip_forward.17']
    #allocation7 [shape = 'u8[1024]{0}', space=vmem, size = 0x400, scoped, tag = 'output window, operand 1, single buffered']
    #allocation8 [shape = 's32[1]{0}', space=sflag, size = 0x4, scoped, tag = 'scoped memory for custom_clip_forward.17']
    #allocation9 [shape = 'u8[2048]{0}', space=vmem, size = 0x800, scoped, tag = 'output window, operand 2, single buffered']
    %28 = vsyncpa [#allocation6], 0
    %29 = vsyncpa [#allocation8], 0
    // Predicated region
    $region2: #{custom_clip_forward.17} parent=1 // pred_check
      _
    $region3: #{custom_clip_forward.17} parent=1 // pred_check_branch
      %31 = sbr.rel (0) target = $region5
    $region4: #{custom_clip_forward.17} parent=1 // pred_region
      _
    $region5: #{custom_clip_forward.17} parent=1 // pred_fallthru
      _
    // Predicated region
    $region6: #{custom_clip_forward.17} parent=1 // pred_check
      _
    $region7: #{custom_clip_forward.17} parent=1 // pred_check_branch
      %33 = sbr.rel (0) target = $region9
    $region8: #{custom_clip_forward.17} parent=1 // pred_region
      _
    $region9: #{custom_clip_forward.17} parent=1 // pred_fallthru
      _
    // Predicated region
    $region10: #{custom_clip_forward.17} parent=1 // pred_check
      _
    $region11: #{custom_clip_forward.17} parent=1 // pred_check_branch
      %35 = sbr.rel (0) target = $region13
    $region12: #{custom_clip_forward.17} parent=1 // pred_region
      _
    $region13: #{custom_clip_forward.17} parent=1 // pred_fallthru
      _
    // Predicated region
    $region14: #{custom_clip_forward.17} parent=1 // pred_check
      _
    $region15: #{custom_clip_forward.17} parent=1 // pred_check_branch
      %37 = sbr.rel (0) target = $region17
    $region16: #{custom_clip_forward.17} parent=1 // pred_region
      _
    $region17: #{custom_clip_forward.17} parent=1 // pred_fallthru
      _
    // Predicated region
    $region18: #{custom_clip_forward.17} parent=1 // pred_check
      _
    $region19: #{custom_clip_forward.17} parent=1 // pred_check_branch
      %39 = sbr.rel (0) target = $region21
    $region20: #{custom_clip_forward.17} parent=1 // pred_region
      _
    $region21: #{custom_clip_forward.17} parent=1 // pred_fallthru
      _
    // Predicated region
    $region22: #{custom_clip_forward.17} parent=1 // pred_check
      _
    $region23: #{custom_clip_forward.17} parent=1 // pred_check_branch
      %41 = sbr.rel (0) target = $region25
    $region24: #{custom_clip_forward.17} parent=1 // pred_region
      _
    $region25: #{custom_clip_forward.17} parent=1 // pred_fallthru
      _
    // Predicated region
    $region26: #{custom_clip_forward.17} parent=1 // pred_check
      _
    $region27: #{custom_clip_forward.17} parent=1 // pred_check_branch
      %43 = sbr.rel (0) target = $region29
    $region28: #{custom_clip_forward.17} parent=1 // pred_region
      _
    $region29: #{custom_clip_forward.17} parent=1 // pred_fallthru
      _
    // Predicated region
    $region30: #{custom_clip_forward.17} parent=1 // pred_check
      _
    $region31: #{custom_clip_forward.17} parent=1 // pred_check_branch
      %45 = sbr.rel (0) target = $region33
    $region32: #{custom_clip_forward.17} parent=1 // pred_region
      _
    $region33: #{custom_clip_forward.17} parent=1 // pred_fallthru
      _
    // Predicated region
    $region34: #{custom_clip_forward.17} parent=1 // pred_check
      _
    $region35: #{custom_clip_forward.17} parent=1 // pred_check_branch
      %47 = sbr.rel (0) target = $region37
    $region36: #{custom_clip_forward.17} parent=1 // pred_region
      _
    $region37: #{custom_clip_forward.17} parent=1 // pred_fallthru
      _
    %v49 = vlaneseq
    %v50 = vshrl.u32 %v49, 7
    %v51 = vadd.s32 %v50, 8
    %s52 = sld [smem:[#allocation3]]
    %v53 = vstv %s52
    %vm54 = vcmp.eq.s32.totalorder %v50, %v53
    %vm55 = vcmp.eq.s32.totalorder %v51, %v53
    %v56 = vsel %vm54, 1, 0
    %v57 = vsel %vm55, 1, 0
    %v58 = vcvt.s32.f32 %v56
    %v59 = vcvt.s32.f32 %v57
    %v60 = vld [vmem:[%s1] sm:$0xff]
    %v61 = vld [vmem:[%s1 + $0x8] sm:$0xff]
    %v62 = vmul.f32 %v60, %v58
    %v63 = vmul.f32 %v61, %v59
    %vm64 = vcmask 523264
    %v65 = vsel %vm64, %v62, 0.0
    %v66 = vsel %vm64, %v63, 0.0
    %v67 = vadd.f32 %v65, %v66
    %v68 = vrot.slane %v67, 4
    %v69 = vadd.f32 %v67, %v68
    %v70 = vrot.slane %v69, 2
    %v71 = vadd.f32 %v69, %v70
    %v72 = vrot.slane %v71, 1
    %v73 = vadd.f32 %v71, %v72
    %s74 = sld [smem:[#allocation3 + $0x1]]
    %v75 = vstv %s74
    %vm76 = vcmp.eq.s32.totalorder %v50, %v75
    %vm77 = vcmp.eq.s32.totalorder %v51, %v75
    %v78 = vsel %vm76, 1, 0
    %v79 = vsel %vm77, 1, 0
    %v80 = vcvt.s32.f32 %v78
    %v81 = vcvt.s32.f32 %v79
    %s82 = scalar_lea.vmem %s1, 16
    %v83 = vld [vmem:[%s82] sm:$0xff]
    %v84 = vld [vmem:[%s82 + $0x8] sm:$0xff]
    %v85 = vmul.f32 %v83, %v80
    %v86 = vmul.f32 %v84, %v81
    %v87 = vsel %vm64, %v85, 0.0
    %v88 = vsel %vm64, %v86, 0.0
    %v89 = vadd.f32 %v87, %v88
    %v90 = vrot.slane %v89, 4
    %v91 = vadd.f32 %v89, %v90
    %v92 = vrot.slane %v91, 2
    %v93 = vadd.f32 %v91, %v92
    %v94 = vrot.slane %v93, 1
    %v95 = vadd.f32 %v93, %v94
    %s96 = sld [smem:[#allocation3 + $0x2]]
    %v97 = vstv %s96
    %vm98 = vcmp.eq.s32.totalorder %v50, %v97
    %vm99 = vcmp.eq.s32.totalorder %v51, %v97
    %v100 = vsel %vm98, 1, 0
    %v101 = vsel %vm99, 1, 0
    %v102 = vcvt.s32.f32 %v100
    %v103 = vcvt.s32.f32 %v101
    %s104 = scalar_lea.vmem %s1, 32
    %v105 = vld [vmem:[%s104] sm:$0xff]
    %v106 = vld [vmem:[%s104 + $0x8] sm:$0xff]
    %v107 = vmul.f32 %v105, %v102
    %v108 = vmul.f32 %v106, %v103
    %v109 = vsel %vm64, %v107, 0.0
    %v110 = vsel %vm64, %v108, 0.0
    %v111 = vadd.f32 %v109, %v110
    %v112 = vrot.slane %v111, 4
    %v113 = vadd.f32 %v111, %v112
    %v114 = vrot.slane %v113, 2
    %v115 = vadd.f32 %v113, %v114
    %v116 = vrot.slane %v115, 1
    %v117 = vadd.f32 %v115, %v116
    %s118 = sld [smem:[#allocation3 + $0x3]]
    %v119 = vstv %s118
    %vm120 = vcmp.eq.s32.totalorder %v50, %v119
    %vm121 = vcmp.eq.s32.totalorder %v51, %v119
    %v122 = vsel %vm120, 1, 0
    %v123 = vsel %vm121, 1, 0
    %v124 = vcvt.s32.f32 %v122
    %v125 = vcvt.s32.f32 %v123
    %s126 = scalar_lea.vmem %s1, 48
    %v127 = vld [vmem:[%s126] sm:$0xff]
    %v128 = vld [vmem:[%s126 + $0x8] sm:$0xff]
    %v129 = vmul.f32 %v127, %v124
    %v130 = vmul.f32 %v128, %v125
    %v131 = vsel %vm64, %v129, 0.0
    %v132 = vsel %vm64, %v130, 0.0
    %v133 = vadd.f32 %v131, %v132
    %v134 = vrot.slane %v133, 4
    %v135 = vadd.f32 %v133, %v134
    %v136 = vrot.slane %v135, 2
    %v137 = vadd.f32 %v135, %v136
    %v138 = vrot.slane %v137, 1
    %v139 = vadd.f32 %v137, %v138
    %vm140 = vcmask 1040384
    %v141 = vsel %vm140, %v73, %v95
    %vm142 = vcmask 1041408
    %v143 = vsel %vm142, %v141, %v117
    %vm144 = vcmask 1042432
    %v145 = vsel %vm144, %v143, %v139
    %vm146 = vcmask 519168
    %v147 = vsel %vm146, %v145, 0.0
    %148 = vadd.xlane.f32.xlu0 %v147
    %v149 = vpop.xlane.xlu0 %148
    %v150 = vrcp.pop 64.0
    %v151 = vmul.f32 64.0, %v150
    %v152 = vsub.f32 1.0, %v151
    %v153 = vmul.f32 %v150, %v152
    %v154 = vadd.f32 %v150, %v153
    %vm155 = vweird.f32 %v150
    %v156 = vsel %vm155, %v150, %v154
    %v157 = vmul.f32 %v149, %v156
    %v158 = vsub.f32 %v145, %v157
    %v159 = vmul.f32 %v158, %v158
    %v160 = vsel %vm146, %v159, 0.0
    %161 = vadd.xlane.f32.xlu0 %v160
    %v162 = vpop.xlane.xlu0 %161
    %v163 = vmul.f32 %v162, %v156
    %v164 = vadd.f32 %v163, 1e-05
    %v165 = vrsqrt.pop %v164
    %v166 = vmul.f32 %v165, %v164
    %v167 = vmul.f32 %v166, %v165
    %v168 = vmul.f32 0.5, %v167
    %v169 = vsub.f32 1.5, %v168
    %v170 = vmul.f32 %v165, %v169
    %vm171 = vweird.f32 %v164
    %vm172 = vweird.f32 %v165
    %vm173 = vmor %vm171, %vm172
    %v174 = vsel %vm173, %v165, %v170
    %v175 = vmul.f32 %v158, %v174
    %v176 = vld [vmem:[%s2] sm:$0x1]
    %v178 = vperm.slane %v176, 0
    %v180 = vmul.f32 %v175, %v178
    %v181 = vld [vmem:[%s3] sm:$0x1]
    %v183 = vperm.slane %v181, 0
    %v185 = vadd.f32 %v180, %v183
    %v186 = vpack.c.bf16 %v185, %v185
    %v187 = vld [vmem:[%s4] sm:$0xf]
    %v188 = vld [vmem:[%s4 + $0x4] sm:$0xf]
    %v189 = vld [vmem:[%s4 + $0x8] sm:$0xf]
    %v190 = vld [vmem:[%s4 + $0xc] sm:$0xf]
    %v191 = vld [vmem:[%s4 + $0x10] sm:$0xf]
    %v192 = vld [vmem:[%s4 + $0x14] sm:$0xf]
    %v193 = vld [vmem:[%s4 + $0x18] sm:$0xf]
    %v194 = vld [vmem:[%s4 + $0x1c] sm:$0xf]
    %v203 = vunpack.c.l.b16 %v187
    %v204 = vunpack.c.l.b16 %v188
    %v205 = vunpack.c.l.b16 %v189
    %v206 = vunpack.c.l.b16 %v190
    %v207 = vunpack.c.l.b16 %v191
    %v208 = vunpack.c.l.b16 %v192
    %v209 = vunpack.c.l.b16 %v193
    %v210 = vunpack.c.l.b16 %v194
    %v211 = vpack.c.b16 %v204, %v203
    %v212 = vpack.c.b16 %v206, %v205
    %v213 = vpack.c.b16 %v208, %v207
    %v214 = vpack.c.b16 %v210, %v209
    %v220 = vsel %vm64, %v186, 0
    %222 = vmatpush.bf16.msra.mxu0 0
    %223 = vmatpush.bf16.msra.mxu0 0
    %224 = vmatpush.bf16.msra.mxu0 0
    %225 = vmatpush.bf16.msra.mxu0 0
    %226 = vmatpush.bf16.msra.mxu0 %v214
    %227 = vmatpush.bf16.msra.mxu0 %v213
    %228 = vmatpush.bf16.msra.mxu0 %v212
    %229 = vmatpush.bf16.msra.mxu0 %v211
    %230 = vmatmul.bf16.gmra.mxu0 %v220
    %v231 = vpop.f32.mrf.mxu0
    %v232 = vadd.f32 0.0, %v231
    %v233 = vpop.f32.mrf.mxu0
    %234 = vdwg.mxu0
    %v235 = vld [vmem:[%s5] sm:$0x3]
    %vm236 = vcmask 517120
    %v237 = vsel %vm236, %v235, 0.0
    %238 = vadd.xlane.f32.xlu0 %v237
    %v239 = vpop.xlane.xlu0 %238
    %v240 = vmul.f32 %v239, %v156
    %v241 = vsub.f32 %v235, %v240
    %v242 = vmul.f32 %v241, %v241
    %v243 = vsel %vm236, %v242, 0.0
    %244 = vadd.xlane.f32.xlu0 %v243
    %v245 = vpop.xlane.xlu0 %244
    %v246 = vmul.f32 %v245, %v156
    %v247 = vadd.f32 %v246, 1e-05
    %v248 = vrsqrt.pop %v247
    %v249 = vmul.f32 %v248, %v247
    %v250 = vmul.f32 %v249, %v248
    %v251 = vmul.f32 0.5, %v250
    %v252 = vsub.f32 1.5, %v251
    %v253 = vmul.f32 %v248, %v252
    %vm254 = vweird.f32 %v247
    %vm255 = vweird.f32 %v248
    %vm256 = vmor %vm254, %vm255
    %v257 = vsel %vm256, %v248, %v253
    %v258 = vmul.f32 %v241, %v257
    %v259 = vld [vmem:[%s6] sm:$0x1]
    %v261 = vperm.slane %v259, 0
    %v263 = vmul.f32 %v258, %v261
    %v264 = vld [vmem:[%s7] sm:$0x1]
    %v266 = vperm.slane %v264, 0
    %v268 = vadd.f32 %v263, %v266
    %v269 = vpack.c.bf16 %v268, %v268
    %v270 = vld [vmem:[%s8] sm:$0xf]
    %v271 = vld [vmem:[%s8 + $0x4] sm:$0xf]
    %v272 = vld [vmem:[%s8 + $0x8] sm:$0xf]
    %v273 = vld [vmem:[%s8 + $0xc] sm:$0xf]
    %v274 = vld [vmem:[%s8 + $0x10] sm:$0xf]
    %v275 = vld [vmem:[%s8 + $0x14] sm:$0xf]
    %v276 = vld [vmem:[%s8 + $0x18] sm:$0xf]
    %v277 = vld [vmem:[%s8 + $0x1c] sm:$0xf]
    %v286 = vunpack.c.l.b16 %v270
    %v287 = vunpack.c.l.b16 %v271
    %v288 = vunpack.c.l.b16 %v272
    %v289 = vunpack.c.l.b16 %v273
    %v290 = vunpack.c.l.b16 %v274
    %v291 = vunpack.c.l.b16 %v275
    %v292 = vunpack.c.l.b16 %v276
    %v293 = vunpack.c.l.b16 %v277
    %v294 = vpack.c.b16 %v287, %v286
    %v295 = vpack.c.b16 %v289, %v288
    %v296 = vpack.c.b16 %v291, %v290
    %v297 = vpack.c.b16 %v293, %v292
    %v303 = vsel %vm64, %v269, 0
    %305 = vmatpush.bf16.msra.mxu0 0
    %306 = vmatpush.bf16.msra.mxu0 0
    %307 = vmatpush.bf16.msra.mxu0 0
    %308 = vmatpush.bf16.msra.mxu0 0
    %309 = vmatpush.bf16.msra.mxu0 %v297
    %310 = vmatpush.bf16.msra.mxu0 %v296
    %311 = vmatpush.bf16.msra.mxu0 %v295
    %312 = vmatpush.bf16.msra.mxu0 %v294
    %313 = vmatmul.bf16.gmra.mxu0 %v303
    %v314 = vpop.f32.mrf.mxu0
    %v315 = vadd.f32 0.0, %v314
    %v316 = vpop.f32.mrf.mxu0
    %317 = vdwg.mxu0
    %v318 = vmul.f32 %v315, %v315
    %vm319 = vcmask 254976
    %v320 = vsel %vm319, %v318, 0.0
    %321 = vadd.xlane.f32.xlu0 %v320
    %v322 = vpop.xlane.xlu0 %321
    %v323 = vadd.f32 %v322, 1e-12
    %v324 = vrsqrt.pop %v323
    %v325 = vmul.f32 %v324, %v323
    %v326 = vmul.f32 %v325, %v324
    %v327 = vmul.f32 0.5, %v326
    %v328 = vsub.f32 1.5, %v327
    %v329 = vmul.f32 %v324, %v328
    %vm330 = vweird.f32 %v323
    %vm331 = vweird.f32 %v324
    %vm332 = vmor %vm330, %vm331
    %v333 = vsel %vm332, %v324, %v329
    %v334 = vmul.f32 %v315, %v333
    %v335 = vmul.f32 %v232, %v232
    %vm336 = vcmask 257024
    %v337 = vsel %vm336, %v335, 0.0
    %338 = vadd.xlane.f32.xlu0 %v337
    %v339 = vpop.xlane.xlu0 %338
    %v340 = vadd.f32 %v339, 1e-12
    %v341 = vrsqrt.pop %v340
    %v342 = vmul.f32 %v341, %v340
    %v343 = vmul.f32 %v342, %v341
    %v344 = vmul.f32 0.5, %v343
    %v345 = vsub.f32 1.5, %v344
    %v346 = vmul.f32 %v341, %v345
    %vm347 = vweird.f32 %v340
    %vm348 = vweird.f32 %v341
    %vm349 = vmor %vm347, %vm348
    %v350 = vsel %vm349, %v341, %v346
    %v351 = vmul.f32 %v232, %v350
    %vm352 = vcmask 261120
    %v354 = vsel %vm352, %v334, 0
    %v357 = vsel %vm352, %v351, 0
    %359 = vmatpush.xpose.msra.mxu0 0.0
    %360 = vmatpush.xpose.msra.mxu0 0.0
    %361 = vmatpush.xpose.msra.mxu0 0.0
    %362 = vmatpush.xpose.msra.mxu0 0.0
    %363 = vmatpush.xpose.msra.mxu0 0.0
    %364 = vmatpush.xpose.msra.mxu0 0.0
    %365 = vmatpush.xpose.msra.mxu0 0.0
    %366 = vmatpush.xpose.msra.mxu0 0.0
    %367 = vmatpush.xpose.msra.mxu0 0.0
    %368 = vmatpush.xpose.msra.mxu0 0.0
    %369 = vmatpush.xpose.msra.mxu0 0.0
    %370 = vmatpush.xpose.msra.mxu0 0.0
    %371 = vmatpush.xpose.msra.mxu0 0.0
    %372 = vmatpush.xpose.msra.mxu0 0.0
    %373 = vmatpush.xpose.msra.mxu0 0.0
    %374 = vmatpush.xpose.msra.mxu0 %v357
    %375 = vmatmul.f32.gmra.mxu0 %v354
    %v376 = vpop.f32.mrf.mxu0
    %v377 = vadd.f32 0.0, %v376
    %378 = vdwg.mxu0
    %v379 = vld [vmem:[#allocation4] sm:$0x1]
    %s380 = vtos %v379
    %v381 = vstv %s380
    %v382 = vmul.f32 %v381, %v377
    %vm383 = vcmask 25600
    %384 = vst.msk [vmem:[#allocation5] sm:$0x3] %vm383, %v382
    %385 = vst.msk [vmem:[#allocation7] sm:$0x3] %vm319, %v334
    %386 = vst.msk [vmem:[#allocation9] sm:$0xf] %vm336, %v351
    // Predicated region
    $region38: #{custom_clip_forward.17} parent=1 // pred_check
      _
    $region39: #{custom_clip_forward.17} parent=1 // pred_check_branch
      %388 = sbr.rel (0) target = $region41
    $region40: #{custom_clip_forward.17} parent=1 // pred_region
      %390 = vsyncadd [#allocation6], 0
      %s392 = sshll.u32 [#allocation5], 4
      %s393 = int_to_ptr.vmem [resolvable:$true] %s392
      %s394 = sshll.u32 %s10, 4
      %s395 = int_to_ptr.hbm [resolvable:$true] %s394
      %397 = dma.vmem_to_hbm [thread:$0]  %s393, 32, %s395, [#allocation6]
    $region41: #{custom_clip_forward.17} parent=1 // pred_fallthru
      _
    // Predicated region
    $region42: #{custom_clip_forward.17} parent=1 // pred_check
      _
    $region43: #{custom_clip_forward.17} parent=1 // pred_check_branch
      %399 = sbr.rel (0) target = $region45
    $region44: #{custom_clip_forward.17} parent=1 // pred_region
      %401 = vsyncadd [#allocation8], 0
      %s403 = sshll.u32 [#allocation7], 4
      %s404 = int_to_ptr.vmem [resolvable:$true] %s403
      %s405 = sshll.u32 %s11, 4
      %s406 = int_to_ptr.hbm [resolvable:$true] %s405
      %408 = dma.vmem_to_hbm [thread:$0]  %s404, 32, %s406, [#allocation8]
    $region45: #{custom_clip_forward.17} parent=1 // pred_fallthru
      _
    // Predicated region
    $region46: #{custom_clip_forward.17} parent=1 // pred_check
      _
    $region47: #{custom_clip_forward.17} parent=1 // pred_check_branch
      %410 = sbr.rel (0) target = $region49
    $region48: #{custom_clip_forward.17} parent=1 // pred_region
      %412 = vsyncadd [#allocation8], 0
      %s414 = sshll.u32 [#allocation9], 4
      %s415 = int_to_ptr.vmem [resolvable:$true] %s414
      %s416 = sshll.u32 %s12, 4
      %s417 = int_to_ptr.hbm [resolvable:$true] %s416
      %419 = dma.vmem_to_hbm [thread:$0]  %s415, 64, %s417, [#allocation8]
    $region49: #{custom_clip_forward.17} parent=1 // pred_fallthru
      _
    // Predicated region
    $region50: #{custom_clip_forward.17} parent=1 // pred_check
      _
    $region51: #{custom_clip_forward.17} parent=1 // pred_check_branch
      %421 = sbr.rel (0) target = $region53
    $region52: #{custom_clip_forward.17} parent=1 // pred_region
      %423 = dma.done [#allocation6], 32
    $region53: #{custom_clip_forward.17} parent=1 // pred_fallthru
      _
    // Predicated region
    $region54: #{custom_clip_forward.17} parent=1 // pred_check
      _
    $region55: #{custom_clip_forward.17} parent=1 // pred_check_branch
      %425 = sbr.rel (0) target = $region57
    $region56: #{custom_clip_forward.17} parent=1 // pred_region
      %427 = dma.done [#allocation8], 32
    $region57: #{custom_clip_forward.17} parent=1 // pred_fallthru
      _
    // Predicated region
    $region58: #{custom_clip_forward.17} parent=1 // pred_check
      _
    $region59: #{custom_clip_forward.17} parent=1 // pred_check_branch
      %429 = sbr.rel (0) target = $region61
    $region60: #{custom_clip_forward.17} parent=1 // pred_region
      %431 = dma.done [#allocation8], 64
    $region61: #{custom_clip_forward.17} parent=1 // pred_fallthru
      _
    %432 = vsyncpa [#allocation6], 1
    %433 = vsyncpa [#allocation8], 1

</llo_original>
